<compile_context>
chip_gen: v5e
topology: v5e:2x2
jax: 0.10.0
libtpu: 0.0.40
codegen_flags: <defaults>
</compile_context>

<pallas_src>
import numpy as np
import jax
import jax.numpy as jnp
from jax import lax
from jax.experimental import pallas as pl
from jax.experimental.pallas import tpu as pltpu


# ------------------------------- fused kernel --------------------------------

def mnist_fused_kernel(x_ref, w1b_ref, b1_ref, w2b_ref, b2_ref,
                       w3p_ref, b3_ref, w4_ref, b4_ref, out_ref):
    f32 = jnp.float32

    # ---- conv1 (24x24x16), computed as 4 row-residue groups of 6 rows each ----
    # x_ref[0, t, a, :] == input row 4*t + a.  Output columns: (w%2)*256 + (w//2)*16 + c.
    def conv1_rows(r):              # rows 4t + r, t in [0, 6)
        acc = None
        for kh in range(5):
            s = r + kh
            a, off = s % 4, s // 4
            xs = x_ref[0, off:off + 6, a, :]                                  # (6, 28)
            term = jnp.dot(xs, w1b_ref[kh], preferred_element_type=f32)       # (6, 512)
            acc = term if acc is None else acc + term
        return acc

    y_res = [conv1_rows(r) for r in range(4)]

    # pool1 (2x2 max) + bias + ReLU -> z1 split into even / odd spatial rows, (6, 256) each
    b1 = b1_ref[...]
    def pool1(ya, yb):
        m = jnp.maximum(ya, yb)                       # H-pool (row pair)
        m = jnp.maximum(m[:, :256], m[:, 256:])       # W-pool (even/odd column halves)
        return jnp.maximum(m + b1, 0.0)
    z1e = pool1(y_res[0], y_res[1])                   # z1 rows 0,2,4,6,8,10
    z1o = pool1(y_res[2], y_res[3])                   # z1 rows 1,3,5,7,9,11

    # ---- conv2 (8x8x32), banded matmuls, split by output-row parity ----
    planes = (z1e, z1o)
    def conv2_rows(i):              # rows 2m + i, m in [0, 4)
        acc = None
        for kh in range(5):
            s = i + kh
            p, off = s % 2, s // 2
            term = jnp.dot(planes[p][off:off + 4, :], w2b_ref[kh],
                           preferred_element_type=f32)                        # (4, 256)
            acc = term if acc is None else acc + term
        return acc

    y2e = conv2_rows(0)
    y2o = conv2_rows(1)

    # pool2 + bias + ReLU -> z2: (4, 128), rows = out-H, cols = out-W*32 + channel
    m2 = jnp.maximum(y2e, y2o)
    z2 = jnp.maximum(jnp.maximum(m2[:, :128], m2[:, 128:]) + b2_ref[...], 0.0)

    # ---- fc3 (+ReLU) and logits; flatten permutation is folded into w3p ----
    h = b3_ref[...]                                                           # (1, 512)
    for m in range(4):
        h = h + jnp.dot(z2[m:m + 1, :], w3p_ref[m], preferred_element_type=f32)
    h = jnp.maximum(h, 0.0)
    out_ref[0] = jnp.dot(h, w4_ref[...], preferred_element_type=f32) + b4_ref[...]


# --------------------- one-time parameter preparation ------------------------

def prepare_params(params):
    """Hoisted out of the jit path: build matmul-ready, layout-friendly weights once."""
    w1 = np.asarray(params["conv1_w"], np.float32)   # (16, 1, 5, 5)
    b1 = np.asarray(params["conv1_b"], np.float32)
    w2 = np.asarray(params["conv2_w"], np.float32)   # (32, 16, 5, 5)
    b2 = np.asarray(params["conv2_b"], np.float32)
    w3 = np.asarray(params["fc3_w"], np.float32)     # (512, 512)  (out, in)
    b3 = np.asarray(params["fc3_b"], np.float32)
    w4 = np.asarray(params["logits_w"], np.float32)  # (10, 512)
    b4 = np.asarray(params["logits_b"], np.float32)

    # conv1 banded weights: y1[h, col] = sum_kh x[h+kh, :] @ w1b[kh]
    # output column layout: (w%2)*256 + (w//2)*16 + c,  w in [0,24), c in [0,16)
    w1b = np.zeros((5, 28, 512), np.float32)
    for kh in range(5):
        for w_out in range(24):
            col = (w_out % 2) * 256 + (w_out // 2) * 16
            for kw in range(5):
                w1b[kh, w_out + kw, col:col + 16] = w1[:, 0, kh, kw]
    b1t = np.zeros((1, 256), np.float32)
    for wp in range(12):
        b1t[0, wp * 16:(wp + 1) * 16] = b1

    # conv2 banded weights over z1 columns (wp*16 + ci), wp in [0,12)  (cols >=192 are zero)
    # output column layout: (w%2)*128 + (w//2)*32 + co,  w in [0,8), co in [0,32)
    w2b = np.zeros((5, 256, 256), np.float32)
    for kh in range(5):
        for w_out in range(8):
            col = (w_out % 2) * 128 + (w_out // 2) * 32
            for kw in range(5):
                wp_in = w_out + kw
                w2b[kh, wp_in * 16:(wp_in + 1) * 16, col:col + 32] = w2[:, :, kh, kw].T
    b2t = np.zeros((1, 128), np.float32)
    for n in range(4):
        b2t[0, n * 32:(n + 1) * 32] = b2

    # fc3 weight: fold nn.Flatten's (c, h, w) ordering into a row permutation so the kernel
    # consumes z2 directly in its (h, (w, c)) layout.
    w3p = (w3.T.reshape(32, 4, 4, 512)      # (c, h, w, out)
               .transpose(1, 2, 0, 3)       # (h, w, c, out)
               .reshape(4, 128, 512))
    b3r = b3.reshape(1, 512)

    # logits: transpose + zero-pad N 10 -> 128 so the HBM store is lane-dense.
    w4p = np.zeros((512, 128), np.float32)
    w4p[:, :10] = w4.T
    b4p = np.zeros((1, 128), np.float32)
    b4p[0, :10] = b4

    prep = dict(w1b=w1b, b1t=b1t, w2b=w2b, b2t=b2t, w3p=w3p, b3=b3r, w4p=w4p, b4p=b4p)
    return {k: jnp.asarray(v) for k, v in prep.items()}


# --------------------------------- wrapper -----------------------------------

def mnist_cnn_forward(x_nchw, prep):
    """Fused Pallas forward.  x_nchw: (B, 1, 28, 28) f32 -> (B, 10) f32."""
    B = x_nchw.shape[0]
    # View rows mod 4: x_r[b, t, a, w] == x[b, 0, 4*t + a, w]  (metadata-only reshape).
    x_r = x_nchw.reshape(B, 7, 4, 28)

    out = pl.pallas_call(
        mnist_fused_kernel,
        out_shape=jax.ShapeDtypeStruct((B, 1, 128), jnp.float32),
        grid_spec=pltpu.PrefetchScalarGridSpec(
            num_scalar_prefetch=0,
            grid=(B,),
            in_specs=[
                pl.BlockSpec((1, 7, 4, 28), lambda b: (b, 0, 0, 0)),   # input rows (mod-4 view)
                pl.BlockSpec((5, 28, 512), lambda b: (0, 0, 0)),       # conv1 banded weights
                pl.BlockSpec((1, 256), lambda b: (0, 0)),              # conv1 bias (tiled)
                pl.BlockSpec((5, 256, 256), lambda b: (0, 0, 0)),      # conv2 banded weights
                pl.BlockSpec((1, 128), lambda b: (0, 0)),              # conv2 bias (tiled)
                pl.BlockSpec((4, 128, 512), lambda b: (0, 0, 0)),      # fc3 weight (permuted)
                pl.BlockSpec((1, 512), lambda b: (0, 0)),              # fc3 bias
                pl.BlockSpec((512, 128), lambda b: (0, 0)),            # logits weight (padded)
                pl.BlockSpec((1, 128), lambda b: (0, 0)),              # logits bias (padded)
            ],
            out_specs=pl.BlockSpec((1, 1, 128), lambda b: (b, 0, 0)),
        ),
        compiler_params=pltpu.CompilerParams(
            dimension_semantics=("parallel",),
            vmem_limit_bytes=32 * 1024 * 1024,
        ),
    )(x_r, prep["w1b"], prep["b1t"], prep["w2b"], prep["b2t"],
      prep["w3p"], prep["b3"], prep["w4p"], prep["b4p"])

    return out[:, 0, :10]


# --------------------------- pure-JAX reference -------------------------------

def reference_forward(x, params):
    y = lax.conv_general_dilated(
        x, params["conv1_w"], (1, 1), "VALID",
        dimension_numbers=("NCHW", "OIHW", "NCHW"),
    ) + params["conv1_b"][None, :, None, None]
    y = lax.reduce_window(y, -jnp.inf, lax.max, (1, 1, 2, 2), (1, 1, 2, 2), "VALID")
    y = jnp.maximum(y, 0.0)
    y = lax.conv_general_dilated(
        y, params["conv2_w"], (1, 1), "VALID",
        dimension_numbers=("NCHW", "OIHW", "NCHW"),
    ) + params["conv2_b"][None, :, None, None]
    y = lax.reduce_window(y, -jnp.inf, lax.max, (1, 1, 2, 2), (1, 1, 2, 2), "VALID")
    y = jnp.maximum(y, 0.0)
    y = y.reshape(y.shape[0], -1)
    y = jnp.maximum(y @ params["fc3_w"].T + params["fc3_b"], 0.0)
    return y @ params["logits_w"].T + params["logits_b"]


# ----------------------------------- main -------------------------------------

if __name__ == "__main__":
    # Deterministic synthetic parameters (PyTorch shapes).
    ks = jax.random.split(jax.random.PRNGKey(0), 9)
    params = {
        "conv1_w": jax.random.normal(ks[0], (16, 1, 5, 5), jnp.float32) * 0.1,
        "conv1_b": jax.random.normal(ks[1], (16,), jnp.float32) * 0.1,
        "conv2_w": jax.random.normal(ks[2], (32, 16, 5, 5), jnp.float32) * 0.05,
        "conv2_b": jax.random.normal(ks[3], (32,), jnp.float32) * 0.05,
        "fc3_w": jax.random.normal(ks[4], (512, 512), jnp.float32) * 0.02,
        "fc3_b": jax.random.normal(ks[5], (512,), jnp.float32) * 0.02,
        "logits_w": jax.random.normal(ks[6], (10, 512), jnp.float32) * 0.02,
        "logits_b": jax.random.normal(ks[7], (10,), jnp.float32) * 0.02,
    }
    # Input: batch=2, MNIST-shaped (28x28x1 is required by fc3's 32*4*4 input dim).
    x = jax.random.normal(ks[8], (2, 1, 28, 28), jnp.float32)

    prep = prepare_params(params)          # once, outside jit
    fwd = jax.jit(mnist_cnn_forward)
    out = jax.block_until_ready(fwd(x, prep))
    assert out.shape == (2, 10) and out.dtype == jnp.float32

    ref = jax.block_until_ready(reference_forward(x, params))
    assert jnp.allclose(out, ref, rtol=1e-3, atol=1e-3), "mismatch vs reference"

    # TODO(synk): weight_decay / optimizer state in __init__ has no forward-pass
    # semantics, so it is intentionally not represented in the kernel.
    print("KERNEL_OK")
</pallas_src>

<mosaic_0001>
module attributes {stable_mosaic.version = 11 : i64} {
  func.func @mnist_fused_kernel(%arg0: i32, %arg1: memref<1x7x4x28xf32, #tpu.memory_space<vmem>>, %arg2: memref<5x28x512xf32, #tpu.memory_space<vmem>>, %arg3: memref<1x256xf32, #tpu.memory_space<vmem>>, %arg4: memref<5x256x256xf32, #tpu.memory_space<vmem>>, %arg5: memref<1x128xf32, #tpu.memory_space<vmem>>, %arg6: memref<4x128x512xf32, #tpu.memory_space<vmem>>, %arg7: memref<1x512xf32, #tpu.memory_space<vmem>>, %arg8: memref<512x128xf32, #tpu.memory_space<vmem>>, %arg9: memref<1x128xf32, #tpu.memory_space<vmem>>, %arg10: memref<1x1x128xf32, #tpu.memory_space<vmem>>) attributes {dimension_semantics = [#tpu.dimension_semantics<parallel>], iteration_bounds = array<i64: 2>, scalar_prefetch = 0 : i64, scratch_operands = 0 : i64, tpu.core_type = #tpu.core_type<tc>, window_params = [{transform_indices = @transform_0, window_bounds = array<i64: 1, 7, 4, 28>}, {pipeline_mode = #tpu.pipeline_mode<synchronous>, transform_indices = @transform_1, window_bounds = array<i64: 5, 28, 512>}, {pipeline_mode = #tpu.pipeline_mode<synchronous>, transform_indices = @transform_2, window_bounds = array<i64: 1, 256>}, {pipeline_mode = #tpu.pipeline_mode<synchronous>, transform_indices = @transform_3, window_bounds = array<i64: 5, 256, 256>}, {pipeline_mode = #tpu.pipeline_mode<synchronous>, transform_indices = @transform_4, window_bounds = array<i64: 1, 128>}, {pipeline_mode = #tpu.pipeline_mode<synchronous>, transform_indices = @transform_5, window_bounds = array<i64: 4, 128, 512>}, {pipeline_mode = #tpu.pipeline_mode<synchronous>, transform_indices = @transform_6, window_bounds = array<i64: 1, 512>}, {pipeline_mode = #tpu.pipeline_mode<synchronous>, transform_indices = @transform_7, window_bounds = array<i64: 512, 128>}, {pipeline_mode = #tpu.pipeline_mode<synchronous>, transform_indices = @transform_8, window_bounds = array<i64: 1, 128>}, {transform_indices = @transform_9, window_bounds = array<i64: 1, 1, 128>}]} {
    %c0 = arith.constant 0 : index
    %c0_0 = arith.constant 0 : index
    %c0_1 = arith.constant 0 : index
    %c0_2 = arith.constant 0 : index
    %0 = vector.load %arg1[%c0, %c0_0, %c0_1, %c0_2] : memref<1x7x4x28xf32, #tpu.memory_space<vmem>>, vector<1x6x1x28xf32>
    %1 = vector.shape_cast %0 : vector<1x6x1x28xf32> to vector<6x28xf32>
    %c0_3 = arith.constant 0 : index
    %c0_4 = arith.constant 0 : index
    %c0_5 = arith.constant 0 : index
    %2 = vector.load %arg2[%c0_3, %c0_4, %c0_5] : memref<5x28x512xf32, #tpu.memory_space<vmem>>, vector<1x28x512xf32>
    %3 = vector.shape_cast %2 : vector<1x28x512xf32> to vector<28x512xf32>
    %cst = arith.constant dense<0.000000e+00> : vector<6x512xf32>
    %4 = tpu.matmul %1, %3, %cst {dimension_numbers = #tpu.dot_dimension_numbers<[1], [0], [0], [1], [0, 0, 1, 1], [], []>} : vector<6x28xf32>, vector<28x512xf32>, vector<6x512xf32> -> vector<6x512xf32>
    %c0_6 = arith.constant 0 : index
    %c0_7 = arith.constant 0 : index
    %c1 = arith.constant 1 : index
    %c0_8 = arith.constant 0 : index
    %5 = vector.load %arg1[%c0_6, %c0_7, %c1, %c0_8] : memref<1x7x4x28xf32, #tpu.memory_space<vmem>>, vector<1x6x1x28xf32>
    %6 = vector.shape_cast %5 : vector<1x6x1x28xf32> to vector<6x28xf32>
    %c1_9 = arith.constant 1 : index
    %c0_10 = arith.constant 0 : index
    %c0_11 = arith.constant 0 : index
    %7 = vector.load %arg2[%c1_9, %c0_10, %c0_11] : memref<5x28x512xf32, #tpu.memory_space<vmem>>, vector<1x28x512xf32>
    %8 = vector.shape_cast %7 : vector<1x28x512xf32> to vector<28x512xf32>
    %cst_12 = arith.constant dense<0.000000e+00> : vector<6x512xf32>
    %9 = tpu.matmul %6, %8, %cst_12 {dimension_numbers = #tpu.dot_dimension_numbers<[1], [0], [0], [1], [0, 0, 1, 1], [], []>} : vector<6x28xf32>, vector<28x512xf32>, vector<6x512xf32> -> vector<6x512xf32>
    %10 = arith.addf %4, %9 : vector<6x512xf32>
    %c0_13 = arith.constant 0 : index
    %c0_14 = arith.constant 0 : index
    %c2 = arith.constant 2 : index
    %c0_15 = arith.constant 0 : index
    %11 = vector.load %arg1[%c0_13, %c0_14, %c2, %c0_15] : memref<1x7x4x28xf32, #tpu.memory_space<vmem>>, vector<1x6x1x28xf32>
    %12 = vector.shape_cast %11 : vector<1x6x1x28xf32> to vector<6x28xf32>
    %c2_16 = arith.constant 2 : index
    %c0_17 = arith.constant 0 : index
    %c0_18 = arith.constant 0 : index
    %13 = vector.load %arg2[%c2_16, %c0_17, %c0_18] : memref<5x28x512xf32, #tpu.memory_space<vmem>>, vector<1x28x512xf32>
    %14 = vector.shape_cast %13 : vector<1x28x512xf32> to vector<28x512xf32>
    %cst_19 = arith.constant dense<0.000000e+00> : vector<6x512xf32>
    %15 = tpu.matmul %12, %14, %cst_19 {dimension_numbers = #tpu.dot_dimension_numbers<[1], [0], [0], [1], [0, 0, 1, 1], [], []>} : vector<6x28xf32>, vector<28x512xf32>, vector<6x512xf32> -> vector<6x512xf32>
    %16 = arith.addf %10, %15 : vector<6x512xf32>
    %c0_20 = arith.constant 0 : index
    %c0_21 = arith.constant 0 : index
    %c3 = arith.constant 3 : index
    %c0_22 = arith.constant 0 : index
    %17 = vector.load %arg1[%c0_20, %c0_21, %c3, %c0_22] : memref<1x7x4x28xf32, #tpu.memory_space<vmem>>, vector<1x6x1x28xf32>
    %18 = vector.shape_cast %17 : vector<1x6x1x28xf32> to vector<6x28xf32>
    %c3_23 = arith.constant 3 : index
    %c0_24 = arith.constant 0 : index
    %c0_25 = arith.constant 0 : index
    %19 = vector.load %arg2[%c3_23, %c0_24, %c0_25] : memref<5x28x512xf32, #tpu.memory_space<vmem>>, vector<1x28x512xf32>
    %20 = vector.shape_cast %19 : vector<1x28x512xf32> to vector<28x512xf32>
    %cst_26 = arith.constant dense<0.000000e+00> : vector<6x512xf32>
    %21 = tpu.matmul %18, %20, %cst_26 {dimension_numbers = #tpu.dot_dimension_numbers<[1], [0], [0], [1], [0, 0, 1, 1], [], []>} : vector<6x28xf32>, vector<28x512xf32>, vector<6x512xf32> -> vector<6x512xf32>
    %22 = arith.addf %16, %21 : vector<6x512xf32>
    %c0_27 = arith.constant 0 : index
    %c1_28 = arith.constant 1 : index
    %c0_29 = arith.constant 0 : index
    %c0_30 = arith.constant 0 : index
    %23 = vector.load %arg1[%c0_27, %c1_28, %c0_29, %c0_30] : memref<1x7x4x28xf32, #tpu.memory_space<vmem>>, vector<1x6x1x28xf32>
    %24 = vector.shape_cast %23 : vector<1x6x1x28xf32> to vector<6x28xf32>
    %c4 = arith.constant 4 : index
    %c0_31 = arith.constant 0 : index
    %c0_32 = arith.constant 0 : index
    %25 = vector.load %arg2[%c4, %c0_31, %c0_32] : memref<5x28x512xf32, #tpu.memory_space<vmem>>, vector<1x28x512xf32>
    %26 = vector.shape_cast %25 : vector<1x28x512xf32> to vector<28x512xf32>
    %cst_33 = arith.constant dense<0.000000e+00> : vector<6x512xf32>
    %27 = tpu.matmul %24, %26, %cst_33 {dimension_numbers = #tpu.dot_dimension_numbers<[1], [0], [0], [1], [0, 0, 1, 1], [], []>} : vector<6x28xf32>, vector<28x512xf32>, vector<6x512xf32> -> vector<6x512xf32>
    %28 = arith.addf %22, %27 : vector<6x512xf32>
    %c0_34 = arith.constant 0 : index
    %c0_35 = arith.constant 0 : index
    %c1_36 = arith.constant 1 : index
    %c0_37 = arith.constant 0 : index
    %29 = vector.load %arg1[%c0_34, %c0_35, %c1_36, %c0_37] : memref<1x7x4x28xf32, #tpu.memory_space<vmem>>, vector<1x6x1x28xf32>
    %30 = vector.shape_cast %29 : vector<1x6x1x28xf32> to vector<6x28xf32>
    %c0_38 = arith.constant 0 : index
    %c0_39 = arith.constant 0 : index
    %c0_40 = arith.constant 0 : index
    %31 = vector.load %arg2[%c0_38, %c0_39, %c0_40] : memref<5x28x512xf32, #tpu.memory_space<vmem>>, vector<1x28x512xf32>
    %32 = vector.shape_cast %31 : vector<1x28x512xf32> to vector<28x512xf32>
    %cst_41 = arith.constant dense<0.000000e+00> : vector<6x512xf32>
    %33 = tpu.matmul %30, %32, %cst_41 {dimension_numbers = #tpu.dot_dimension_numbers<[1], [0], [0], [1], [0, 0, 1, 1], [], []>} : vector<6x28xf32>, vector<28x512xf32>, vector<6x512xf32> -> vector<6x512xf32>
    %c0_42 = arith.constant 0 : index
    %c0_43 = arith.constant 0 : index
    %c2_44 = arith.constant 2 : index
    %c0_45 = arith.constant 0 : index
    %34 = vector.load %arg1[%c0_42, %c0_43, %c2_44, %c0_45] : memref<1x7x4x28xf32, #tpu.memory_space<vmem>>, vector<1x6x1x28xf32>
    %35 = vector.shape_cast %34 : vector<1x6x1x28xf32> to vector<6x28xf32>
    %c1_46 = arith.constant 1 : index
    %c0_47 = arith.constant 0 : index
    %c0_48 = arith.constant 0 : index
    %36 = vector.load %arg2[%c1_46, %c0_47, %c0_48] : memref<5x28x512xf32, #tpu.memory_space<vmem>>, vector<1x28x512xf32>
    %37 = vector.shape_cast %36 : vector<1x28x512xf32> to vector<28x512xf32>
    %cst_49 = arith.constant dense<0.000000e+00> : vector<6x512xf32>
    %38 = tpu.matmul %35, %37, %cst_49 {dimension_numbers = #tpu.dot_dimension_numbers<[1], [0], [0], [1], [0, 0, 1, 1], [], []>} : vector<6x28xf32>, vector<28x512xf32>, vector<6x512xf32> -> vector<6x512xf32>
    %39 = arith.addf %33, %38 : vector<6x512xf32>
    %c0_50 = arith.constant 0 : index
    %c0_51 = arith.constant 0 : index
    %c3_52 = arith.constant 3 : index
    %c0_53 = arith.constant 0 : index
    %40 = vector.load %arg1[%c0_50, %c0_51, %c3_52, %c0_53] : memref<1x7x4x28xf32, #tpu.memory_space<vmem>>, vector<1x6x1x28xf32>
    %41 = vector.shape_cast %40 : vector<1x6x1x28xf32> to vector<6x28xf32>
    %c2_54 = arith.constant 2 : index
    %c0_55 = arith.constant 0 : index
    %c0_56 = arith.constant 0 : index
    %42 = vector.load %arg2[%c2_54, %c0_55, %c0_56] : memref<5x28x512xf32, #tpu.memory_space<vmem>>, vector<1x28x512xf32>
    %43 = vector.shape_cast %42 : vector<1x28x512xf32> to vector<28x512xf32>
    %cst_57 = arith.constant dense<0.000000e+00> : vector<6x512xf32>
    %44 = tpu.matmul %41, %43, %cst_57 {dimension_numbers = #tpu.dot_dimension_numbers<[1], [0], [0], [1], [0, 0, 1, 1], [], []>} : vector<6x28xf32>, vector<28x512xf32>, vector<6x512xf32> -> vector<6x512xf32>
    %45 = arith.addf %39, %44 : vector<6x512xf32>
    %c0_58 = arith.constant 0 : index
    %c1_59 = arith.constant 1 : index
    %c0_60 = arith.constant 0 : index
    %c0_61 = arith.constant 0 : index
    %46 = vector.load %arg1[%c0_58, %c1_59, %c0_60, %c0_61] : memref<1x7x4x28xf32, #tpu.memory_space<vmem>>, vector<1x6x1x28xf32>
    %47 = vector.shape_cast %46 : vector<1x6x1x28xf32> to vector<6x28xf32>
    %c3_62 = arith.constant 3 : index
    %c0_63 = arith.constant 0 : index
    %c0_64 = arith.constant 0 : index
    %48 = vector.load %arg2[%c3_62, %c0_63, %c0_64] : memref<5x28x512xf32, #tpu.memory_space<vmem>>, vector<1x28x512xf32>
    %49 = vector.shape_cast %48 : vector<1x28x512xf32> to vector<28x512xf32>
    %cst_65 = arith.constant dense<0.000000e+00> : vector<6x512xf32>
    %50 = tpu.matmul %47, %49, %cst_65 {dimension_numbers = #tpu.dot_dimension_numbers<[1], [0], [0], [1], [0, 0, 1, 1], [], []>} : vector<6x28xf32>, vector<28x512xf32>, vector<6x512xf32> -> vector<6x512xf32>
    %51 = arith.addf %45, %50 : vector<6x512xf32>
    %c0_66 = arith.constant 0 : index
    %c1_67 = arith.constant 1 : index
    %c1_68 = arith.constant 1 : index
    %c0_69 = arith.constant 0 : index
    %52 = vector.load %arg1[%c0_66, %c1_67, %c1_68, %c0_69] : memref<1x7x4x28xf32, #tpu.memory_space<vmem>>, vector<1x6x1x28xf32>
    %53 = vector.shape_cast %52 : vector<1x6x1x28xf32> to vector<6x28xf32>
    %c4_70 = arith.constant 4 : index
    %c0_71 = arith.constant 0 : index
    %c0_72 = arith.constant 0 : index
    %54 = vector.load %arg2[%c4_70, %c0_71, %c0_72] : memref<5x28x512xf32, #tpu.memory_space<vmem>>, vector<1x28x512xf32>
    %55 = vector.shape_cast %54 : vector<1x28x512xf32> to vector<28x512xf32>
    %cst_73 = arith.constant dense<0.000000e+00> : vector<6x512xf32>
    %56 = tpu.matmul %53, %55, %cst_73 {dimension_numbers = #tpu.dot_dimension_numbers<[1], [0], [0], [1], [0, 0, 1, 1], [], []>} : vector<6x28xf32>, vector<28x512xf32>, vector<6x512xf32> -> vector<6x512xf32>
    %57 = arith.addf %51, %56 : vector<6x512xf32>
    %c0_74 = arith.constant 0 : index
    %c0_75 = arith.constant 0 : index
    %c2_76 = arith.constant 2 : index
    %c0_77 = arith.constant 0 : index
    %58 = vector.load %arg1[%c0_74, %c0_75, %c2_76, %c0_77] : memref<1x7x4x28xf32, #tpu.memory_space<vmem>>, vector<1x6x1x28xf32>
    %59 = vector.shape_cast %58 : vector<1x6x1x28xf32> to vector<6x28xf32>
    %c0_78 = arith.constant 0 : index
    %c0_79 = arith.constant 0 : index
    %c0_80 = arith.constant 0 : index
    %60 = vector.load %arg2[%c0_78, %c0_79, %c0_80] : memref<5x28x512xf32, #tpu.memory_space<vmem>>, vector<1x28x512xf32>
    %61 = vector.shape_cast %60 : vector<1x28x512xf32> to vector<28x512xf32>
    %cst_81 = arith.constant dense<0.000000e+00> : vector<6x512xf32>
    %62 = tpu.matmul %59, %61, %cst_81 {dimension_numbers = #tpu.dot_dimension_numbers<[1], [0], [0], [1], [0, 0, 1, 1], [], []>} : vector<6x28xf32>, vector<28x512xf32>, vector<6x512xf32> -> vector<6x512xf32>
    %c0_82 = arith.constant 0 : index
    %c0_83 = arith.constant 0 : index
    %c3_84 = arith.constant 3 : index
    %c0_85 = arith.constant 0 : index
    %63 = vector.load %arg1[%c0_82, %c0_83, %c3_84, %c0_85] : memref<1x7x4x28xf32, #tpu.memory_space<vmem>>, vector<1x6x1x28xf32>
    %64 = vector.shape_cast %63 : vector<1x6x1x28xf32> to vector<6x28xf32>
    %c1_86 = arith.constant 1 : index
    %c0_87 = arith.constant 0 : index
    %c0_88 = arith.constant 0 : index
    %65 = vector.load %arg2[%c1_86, %c0_87, %c0_88] : memref<5x28x512xf32, #tpu.memory_space<vmem>>, vector<1x28x512xf32>
    %66 = vector.shape_cast %65 : vector<1x28x512xf32> to vector<28x512xf32>
    %cst_89 = arith.constant dense<0.000000e+00> : vector<6x512xf32>
    %67 = tpu.matmul %64, %66, %cst_89 {dimension_numbers = #tpu.dot_dimension_numbers<[1], [0], [0], [1], [0, 0, 1, 1], [], []>} : vector<6x28xf32>, vector<28x512xf32>, vector<6x512xf32> -> vector<6x512xf32>
    %68 = arith.addf %62, %67 : vector<6x512xf32>
    %c0_90 = arith.constant 0 : index
    %c1_91 = arith.constant 1 : index
    %c0_92 = arith.constant 0 : index
    %c0_93 = arith.constant 0 : index
    %69 = vector.load %arg1[%c0_90, %c1_91, %c0_92, %c0_93] : memref<1x7x4x28xf32, #tpu.memory_space<vmem>>, vector<1x6x1x28xf32>
    %70 = vector.shape_cast %69 : vector<1x6x1x28xf32> to vector<6x28xf32>
    %c2_94 = arith.constant 2 : index
    %c0_95 = arith.constant 0 : index
    %c0_96 = arith.constant 0 : index
    %71 = vector.load %arg2[%c2_94, %c0_95, %c0_96] : memref<5x28x512xf32, #tpu.memory_space<vmem>>, vector<1x28x512xf32>
    %72 = vector.shape_cast %71 : vector<1x28x512xf32> to vector<28x512xf32>
    %cst_97 = arith.constant dense<0.000000e+00> : vector<6x512xf32>
    %73 = tpu.matmul %70, %72, %cst_97 {dimension_numbers = #tpu.dot_dimension_numbers<[1], [0], [0], [1], [0, 0, 1, 1], [], []>} : vector<6x28xf32>, vector<28x512xf32>, vector<6x512xf32> -> vector<6x512xf32>
    %74 = arith.addf %68, %73 : vector<6x512xf32>
    %c0_98 = arith.constant 0 : index
    %c1_99 = arith.constant 1 : index
    %c1_100 = arith.constant 1 : index
    %c0_101 = arith.constant 0 : index
    %75 = vector.load %arg1[%c0_98, %c1_99, %c1_100, %c0_101] : memref<1x7x4x28xf32, #tpu.memory_space<vmem>>, vector<1x6x1x28xf32>
    %76 = vector.shape_cast %75 : vector<1x6x1x28xf32> to vector<6x28xf32>
    %c3_102 = arith.constant 3 : index
    %c0_103 = arith.constant 0 : index
    %c0_104 = arith.constant 0 : index
    %77 = vector.load %arg2[%c3_102, %c0_103, %c0_104] : memref<5x28x512xf32, #tpu.memory_space<vmem>>, vector<1x28x512xf32>
    %78 = vector.shape_cast %77 : vector<1x28x512xf32> to vector<28x512xf32>
    %cst_105 = arith.constant dense<0.000000e+00> : vector<6x512xf32>
    %79 = tpu.matmul %76, %78, %cst_105 {dimension_numbers = #tpu.dot_dimension_numbers<[1], [0], [0], [1], [0, 0, 1, 1], [], []>} : vector<6x28xf32>, vector<28x512xf32>, vector<6x512xf32> -> vector<6x512xf32>
    %80 = arith.addf %74, %79 : vector<6x512xf32>
    %c0_106 = arith.constant 0 : index
    %c1_107 = arith.constant 1 : index
    %c2_108 = arith.constant 2 : index
    %c0_109 = arith.constant 0 : index
    %81 = vector.load %arg1[%c0_106, %c1_107, %c2_108, %c0_109] : memref<1x7x4x28xf32, #tpu.memory_space<vmem>>, vector<1x6x1x28xf32>
    %82 = vector.shape_cast %81 : vector<1x6x1x28xf32> to vector<6x28xf32>
    %c4_110 = arith.constant 4 : index
    %c0_111 = arith.constant 0 : index
    %c0_112 = arith.constant 0 : index
    %83 = vector.load %arg2[%c4_110, %c0_111, %c0_112] : memref<5x28x512xf32, #tpu.memory_space<vmem>>, vector<1x28x512xf32>
    %84 = vector.shape_cast %83 : vector<1x28x512xf32> to vector<28x512xf32>
    %cst_113 = arith.constant dense<0.000000e+00> : vector<6x512xf32>
    %85 = tpu.matmul %82, %84, %cst_113 {dimension_numbers = #tpu.dot_dimension_numbers<[1], [0], [0], [1], [0, 0, 1, 1], [], []>} : vector<6x28xf32>, vector<28x512xf32>, vector<6x512xf32> -> vector<6x512xf32>
    %86 = arith.addf %80, %85 : vector<6x512xf32>
    %c0_114 = arith.constant 0 : index
    %c0_115 = arith.constant 0 : index
    %c3_116 = arith.constant 3 : index
    %c0_117 = arith.constant 0 : index
    %87 = vector.load %arg1[%c0_114, %c0_115, %c3_116, %c0_117] : memref<1x7x4x28xf32, #tpu.memory_space<vmem>>, vector<1x6x1x28xf32>
    %88 = vector.shape_cast %87 : vector<1x6x1x28xf32> to vector<6x28xf32>
    %c0_118 = arith.constant 0 : index
    %c0_119 = arith.constant 0 : index
    %c0_120 = arith.constant 0 : index
    %89 = vector.load %arg2[%c0_118, %c0_119, %c0_120] : memref<5x28x512xf32, #tpu.memory_space<vmem>>, vector<1x28x512xf32>
    %90 = vector.shape_cast %89 : vector<1x28x512xf32> to vector<28x512xf32>
    %cst_121 = arith.constant dense<0.000000e+00> : vector<6x512xf32>
    %91 = tpu.matmul %88, %90, %cst_121 {dimension_numbers = #tpu.dot_dimension_numbers<[1], [0], [0], [1], [0, 0, 1, 1], [], []>} : vector<6x28xf32>, vector<28x512xf32>, vector<6x512xf32> -> vector<6x512xf32>
    %c0_122 = arith.constant 0 : index
    %c1_123 = arith.constant 1 : index
    %c0_124 = arith.constant 0 : index
    %c0_125 = arith.constant 0 : index
    %92 = vector.load %arg1[%c0_122, %c1_123, %c0_124, %c0_125] : memref<1x7x4x28xf32, #tpu.memory_space<vmem>>, vector<1x6x1x28xf32>
    %93 = vector.shape_cast %92 : vector<1x6x1x28xf32> to vector<6x28xf32>
    %c1_126 = arith.constant 1 : index
    %c0_127 = arith.constant 0 : index
    %c0_128 = arith.constant 0 : index
    %94 = vector.load %arg2[%c1_126, %c0_127, %c0_128] : memref<5x28x512xf32, #tpu.memory_space<vmem>>, vector<1x28x512xf32>
    %95 = vector.shape_cast %94 : vector<1x28x512xf32> to vector<28x512xf32>
    %cst_129 = arith.constant dense<0.000000e+00> : vector<6x512xf32>
    %96 = tpu.matmul %93, %95, %cst_129 {dimension_numbers = #tpu.dot_dimension_numbers<[1], [0], [0], [1], [0, 0, 1, 1], [], []>} : vector<6x28xf32>, vector<28x512xf32>, vector<6x512xf32> -> vector<6x512xf32>
    %97 = arith.addf %91, %96 : vector<6x512xf32>
    %c0_130 = arith.constant 0 : index
    %c1_131 = arith.constant 1 : index
    %c1_132 = arith.constant 1 : index
    %c0_133 = arith.constant 0 : index
    %98 = vector.load %arg1[%c0_130, %c1_131, %c1_132, %c0_133] : memref<1x7x4x28xf32, #tpu.memory_space<vmem>>, vector<1x6x1x28xf32>
    %99 = vector.shape_cast %98 : vector<1x6x1x28xf32> to vector<6x28xf32>
    %c2_134 = arith.constant 2 : index
    %c0_135 = arith.constant 0 : index
    %c0_136 = arith.constant 0 : index
    %100 = vector.load %arg2[%c2_134, %c0_135, %c0_136] : memref<5x28x512xf32, #tpu.memory_space<vmem>>, vector<1x28x512xf32>
    %101 = vector.shape_cast %100 : vector<1x28x512xf32> to vector<28x512xf32>
    %cst_137 = arith.constant dense<0.000000e+00> : vector<6x512xf32>
    %102 = tpu.matmul %99, %101, %cst_137 {dimension_numbers = #tpu.dot_dimension_numbers<[1], [0], [0], [1], [0, 0, 1, 1], [], []>} : vector<6x28xf32>, vector<28x512xf32>, vector<6x512xf32> -> vector<6x512xf32>
    %103 = arith.addf %97, %102 : vector<6x512xf32>
    %c0_138 = arith.constant 0 : index
    %c1_139 = arith.constant 1 : index
    %c2_140 = arith.constant 2 : index
    %c0_141 = arith.constant 0 : index
    %104 = vector.load %arg1[%c0_138, %c1_139, %c2_140, %c0_141] : memref<1x7x4x28xf32, #tpu.memory_space<vmem>>, vector<1x6x1x28xf32>
    %105 = vector.shape_cast %104 : vector<1x6x1x28xf32> to vector<6x28xf32>
    %c3_142 = arith.constant 3 : index
    %c0_143 = arith.constant 0 : index
    %c0_144 = arith.constant 0 : index
    %106 = vector.load %arg2[%c3_142, %c0_143, %c0_144] : memref<5x28x512xf32, #tpu.memory_space<vmem>>, vector<1x28x512xf32>
    %107 = vector.shape_cast %106 : vector<1x28x512xf32> to vector<28x512xf32>
    %cst_145 = arith.constant dense<0.000000e+00> : vector<6x512xf32>
    %108 = tpu.matmul %105, %107, %cst_145 {dimension_numbers = #tpu.dot_dimension_numbers<[1], [0], [0], [1], [0, 0, 1, 1], [], []>} : vector<6x28xf32>, vector<28x512xf32>, vector<6x512xf32> -> vector<6x512xf32>
    %109 = arith.addf %103, %108 : vector<6x512xf32>
    %c0_146 = arith.constant 0 : index
    %c1_147 = arith.constant 1 : index
    %c3_148 = arith.constant 3 : index
    %c0_149 = arith.constant 0 : index
    %110 = vector.load %arg1[%c0_146, %c1_147, %c3_148, %c0_149] : memref<1x7x4x28xf32, #tpu.memory_space<vmem>>, vector<1x6x1x28xf32>
    %111 = vector.shape_cast %110 : vector<1x6x1x28xf32> to vector<6x28xf32>
    %c4_150 = arith.constant 4 : index
    %c0_151 = arith.constant 0 : index
    %c0_152 = arith.constant 0 : index
    %112 = vector.load %arg2[%c4_150, %c0_151, %c0_152] : memref<5x28x512xf32, #tpu.memory_space<vmem>>, vector<1x28x512xf32>
    %113 = vector.shape_cast %112 : vector<1x28x512xf32> to vector<28x512xf32>
    %cst_153 = arith.constant dense<0.000000e+00> : vector<6x512xf32>
    %114 = tpu.matmul %111, %113, %cst_153 {dimension_numbers = #tpu.dot_dimension_numbers<[1], [0], [0], [1], [0, 0, 1, 1], [], []>} : vector<6x28xf32>, vector<28x512xf32>, vector<6x512xf32> -> vector<6x512xf32>
    %115 = arith.addf %109, %114 : vector<6x512xf32>
    %c0_154 = arith.constant 0 : index
    %c0_155 = arith.constant 0 : index
    %116 = vector.load %arg3[%c0_154, %c0_155] : memref<1x256xf32, #tpu.memory_space<vmem>>, vector<1x256xf32>
    %117 = arith.maximumf %28, %57 : vector<6x512xf32>
    %118 = vector.extract_strided_slice %117 {offsets = [0, 0], sizes = [6, 256], strides = [1, 1]} : vector<6x512xf32> to vector<6x256xf32>
    %119 = vector.extract_strided_slice %117 {offsets = [0, 256], sizes = [6, 256], strides = [1, 1]} : vector<6x512xf32> to vector<6x256xf32>
    %120 = arith.maximumf %118, %119 : vector<6x256xf32>
    %121 = vector.broadcast %116 : vector<1x256xf32> to vector<6x256xf32>
    %122 = arith.addf %120, %121 : vector<6x256xf32>
    %cst_156 = arith.constant 0.000000e+00 : f32
    %123 = vector.broadcast %cst_156 : f32 to vector<6x256xf32>
    %124 = arith.maximumf %122, %123 : vector<6x256xf32>
    %125 = arith.maximumf %86, %115 : vector<6x512xf32>
    %126 = vector.extract_strided_slice %125 {offsets = [0, 0], sizes = [6, 256], strides = [1, 1]} : vector<6x512xf32> to vector<6x256xf32>
    %127 = vector.extract_strided_slice %125 {offsets = [0, 256], sizes = [6, 256], strides = [1, 1]} : vector<6x512xf32> to vector<6x256xf32>
    %128 = arith.maximumf %126, %127 : vector<6x256xf32>
    %129 = vector.broadcast %116 : vector<1x256xf32> to vector<6x256xf32>
    %130 = arith.addf %128, %129 : vector<6x256xf32>
    %cst_157 = arith.constant 0.000000e+00 : f32
    %131 = vector.broadcast %cst_157 : f32 to vector<6x256xf32>
    %132 = arith.maximumf %130, %131 : vector<6x256xf32>
    %133 = vector.extract_strided_slice %124 {offsets = [0, 0], sizes = [4, 256], strides = [1, 1]} : vector<6x256xf32> to vector<4x256xf32>
    %c0_158 = arith.constant 0 : index
    %c0_159 = arith.constant 0 : index
    %c0_160 = arith.constant 0 : index
    %134 = vector.load %arg4[%c0_158, %c0_159, %c0_160] : memref<5x256x256xf32, #tpu.memory_space<vmem>>, vector<1x256x256xf32>
    %135 = vector.shape_cast %134 : vector<1x256x256xf32> to vector<256x256xf32>
    %cst_161 = arith.constant dense<0.000000e+00> : vector<4x256xf32>
    %136 = tpu.matmul %133, %135, %cst_161 {dimension_numbers = #tpu.dot_dimension_numbers<[1], [0], [0], [1], [0, 0, 1, 1], [], []>} : vector<4x256xf32>, vector<256x256xf32>, vector<4x256xf32> -> vector<4x256xf32>
    %137 = vector.extract_strided_slice %132 {offsets = [0, 0], sizes = [4, 256], strides = [1, 1]} : vector<6x256xf32> to vector<4x256xf32>
    %c1_162 = arith.constant 1 : index
    %c0_163 = arith.constant 0 : index
    %c0_164 = arith.constant 0 : index
    %138 = vector.load %arg4[%c1_162, %c0_163, %c0_164] : memref<5x256x256xf32, #tpu.memory_space<vmem>>, vector<1x256x256xf32>
    %139 = vector.shape_cast %138 : vector<1x256x256xf32> to vector<256x256xf32>
    %cst_165 = arith.constant dense<0.000000e+00> : vector<4x256xf32>
    %140 = tpu.matmul %137, %139, %cst_165 {dimension_numbers = #tpu.dot_dimension_numbers<[1], [0], [0], [1], [0, 0, 1, 1], [], []>} : vector<4x256xf32>, vector<256x256xf32>, vector<4x256xf32> -> vector<4x256xf32>
    %141 = arith.addf %136, %140 : vector<4x256xf32>
    %142 = vector.extract_strided_slice %124 {offsets = [1, 0], sizes = [4, 256], strides = [1, 1]} : vector<6x256xf32> to vector<4x256xf32>
    %c2_166 = arith.constant 2 : index
    %c0_167 = arith.constant 0 : index
    %c0_168 = arith.constant 0 : index
    %143 = vector.load %arg4[%c2_166, %c0_167, %c0_168] : memref<5x256x256xf32, #tpu.memory_space<vmem>>, vector<1x256x256xf32>
    %144 = vector.shape_cast %143 : vector<1x256x256xf32> to vector<256x256xf32>
    %cst_169 = arith.constant dense<0.000000e+00> : vector<4x256xf32>
    %145 = tpu.matmul %142, %144, %cst_169 {dimension_numbers = #tpu.dot_dimension_numbers<[1], [0], [0], [1], [0, 0, 1, 1], [], []>} : vector<4x256xf32>, vector<256x256xf32>, vector<4x256xf32> -> vector<4x256xf32>
    %146 = arith.addf %141, %145 : vector<4x256xf32>
    %147 = vector.extract_strided_slice %132 {offsets = [1, 0], sizes = [4, 256], strides = [1, 1]} : vector<6x256xf32> to vector<4x256xf32>
    %c3_170 = arith.constant 3 : index
    %c0_171 = arith.constant 0 : index
    %c0_172 = arith.constant 0 : index
    %148 = vector.load %arg4[%c3_170, %c0_171, %c0_172] : memref<5x256x256xf32, #tpu.memory_space<vmem>>, vector<1x256x256xf32>
    %149 = vector.shape_cast %148 : vector<1x256x256xf32> to vector<256x256xf32>
    %cst_173 = arith.constant dense<0.000000e+00> : vector<4x256xf32>
    %150 = tpu.matmul %147, %149, %cst_173 {dimension_numbers = #tpu.dot_dimension_numbers<[1], [0], [0], [1], [0, 0, 1, 1], [], []>} : vector<4x256xf32>, vector<256x256xf32>, vector<4x256xf32> -> vector<4x256xf32>
    %151 = arith.addf %146, %150 : vector<4x256xf32>
    %152 = vector.extract_strided_slice %124 {offsets = [2, 0], sizes = [4, 256], strides = [1, 1]} : vector<6x256xf32> to vector<4x256xf32>
    %c4_174 = arith.constant 4 : index
    %c0_175 = arith.constant 0 : index
    %c0_176 = arith.constant 0 : index
    %153 = vector.load %arg4[%c4_174, %c0_175, %c0_176] : memref<5x256x256xf32, #tpu.memory_space<vmem>>, vector<1x256x256xf32>
    %154 = vector.shape_cast %153 : vector<1x256x256xf32> to vector<256x256xf32>
    %cst_177 = arith.constant dense<0.000000e+00> : vector<4x256xf32>
    %155 = tpu.matmul %152, %154, %cst_177 {dimension_numbers = #tpu.dot_dimension_numbers<[1], [0], [0], [1], [0, 0, 1, 1], [], []>} : vector<4x256xf32>, vector<256x256xf32>, vector<4x256xf32> -> vector<4x256xf32>
    %156 = arith.addf %151, %155 : vector<4x256xf32>
    %157 = vector.extract_strided_slice %132 {offsets = [0, 0], sizes = [4, 256], strides = [1, 1]} : vector<6x256xf32> to vector<4x256xf32>
    %c0_178 = arith.constant 0 : index
    %c0_179 = arith.constant 0 : index
    %c0_180 = arith.constant 0 : index
    %158 = vector.load %arg4[%c0_178, %c0_179, %c0_180] : memref<5x256x256xf32, #tpu.memory_space<vmem>>, vector<1x256x256xf32>
    %159 = vector.shape_cast %158 : vector<1x256x256xf32> to vector<256x256xf32>
    %cst_181 = arith.constant dense<0.000000e+00> : vector<4x256xf32>
    %160 = tpu.matmul %157, %159, %cst_181 {dimension_numbers = #tpu.dot_dimension_numbers<[1], [0], [0], [1], [0, 0, 1, 1], [], []>} : vector<4x256xf32>, vector<256x256xf32>, vector<4x256xf32> -> vector<4x256xf32>
    %161 = vector.extract_strided_slice %124 {offsets = [1, 0], sizes = [4, 256], strides = [1, 1]} : vector<6x256xf32> to vector<4x256xf32>
    %c1_182 = arith.constant 1 : index
    %c0_183 = arith.constant 0 : index
    %c0_184 = arith.constant 0 : index
    %162 = vector.load %arg4[%c1_182, %c0_183, %c0_184] : memref<5x256x256xf32, #tpu.memory_space<vmem>>, vector<1x256x256xf32>
    %163 = vector.shape_cast %162 : vector<1x256x256xf32> to vector<256x256xf32>
    %cst_185 = arith.constant dense<0.000000e+00> : vector<4x256xf32>
    %164 = tpu.matmul %161, %163, %cst_185 {dimension_numbers = #tpu.dot_dimension_numbers<[1], [0], [0], [1], [0, 0, 1, 1], [], []>} : vector<4x256xf32>, vector<256x256xf32>, vector<4x256xf32> -> vector<4x256xf32>
    %165 = arith.addf %160, %164 : vector<4x256xf32>
    %166 = vector.extract_strided_slice %132 {offsets = [1, 0], sizes = [4, 256], strides = [1, 1]} : vector<6x256xf32> to vector<4x256xf32>
    %c2_186 = arith.constant 2 : index
    %c0_187 = arith.constant 0 : index
    %c0_188 = arith.constant 0 : index
    %167 = vector.load %arg4[%c2_186, %c0_187, %c0_188] : memref<5x256x256xf32, #tpu.memory_space<vmem>>, vector<1x256x256xf32>
    %168 = vector.shape_cast %167 : vector<1x256x256xf32> to vector<256x256xf32>
    %cst_189 = arith.constant dense<0.000000e+00> : vector<4x256xf32>
    %169 = tpu.matmul %166, %168, %cst_189 {dimension_numbers = #tpu.dot_dimension_numbers<[1], [0], [0], [1], [0, 0, 1, 1], [], []>} : vector<4x256xf32>, vector<256x256xf32>, vector<4x256xf32> -> vector<4x256xf32>
    %170 = arith.addf %165, %169 : vector<4x256xf32>
    %171 = vector.extract_strided_slice %124 {offsets = [2, 0], sizes = [4, 256], strides = [1, 1]} : vector<6x256xf32> to vector<4x256xf32>
    %c3_190 = arith.constant 3 : index
    %c0_191 = arith.constant 0 : index
    %c0_192 = arith.constant 0 : index
    %172 = vector.load %arg4[%c3_190, %c0_191, %c0_192] : memref<5x256x256xf32, #tpu.memory_space<vmem>>, vector<1x256x256xf32>
    %173 = vector.shape_cast %172 : vector<1x256x256xf32> to vector<256x256xf32>
    %cst_193 = arith.constant dense<0.000000e+00> : vector<4x256xf32>
    %174 = tpu.matmul %171, %173, %cst_193 {dimension_numbers = #tpu.dot_dimension_numbers<[1], [0], [0], [1], [0, 0, 1, 1], [], []>} : vector<4x256xf32>, vector<256x256xf32>, vector<4x256xf32> -> vector<4x256xf32>
    %175 = arith.addf %170, %174 : vector<4x256xf32>
    %176 = vector.extract_strided_slice %132 {offsets = [2, 0], sizes = [4, 256], strides = [1, 1]} : vector<6x256xf32> to vector<4x256xf32>
    %c4_194 = arith.constant 4 : index
    %c0_195 = arith.constant 0 : index
    %c0_196 = arith.constant 0 : index
    %177 = vector.load %arg4[%c4_194, %c0_195, %c0_196] : memref<5x256x256xf32, #tpu.memory_space<vmem>>, vector<1x256x256xf32>
    %178 = vector.shape_cast %177 : vector<1x256x256xf32> to vector<256x256xf32>
    %cst_197 = arith.constant dense<0.000000e+00> : vector<4x256xf32>
    %179 = tpu.matmul %176, %178, %cst_197 {dimension_numbers = #tpu.dot_dimension_numbers<[1], [0], [0], [1], [0, 0, 1, 1], [], []>} : vector<4x256xf32>, vector<256x256xf32>, vector<4x256xf32> -> vector<4x256xf32>
    %180 = arith.addf %175, %179 : vector<4x256xf32>
    %181 = arith.maximumf %156, %180 : vector<4x256xf32>
    %182 = vector.extract_strided_slice %181 {offsets = [0, 0], sizes = [4, 128], strides = [1, 1]} : vector<4x256xf32> to vector<4x128xf32>
    %183 = vector.extract_strided_slice %181 {offsets = [0, 128], sizes = [4, 128], strides = [1, 1]} : vector<4x256xf32> to vector<4x128xf32>
    %184 = arith.maximumf %182, %183 : vector<4x128xf32>
    %c0_198 = arith.constant 0 : index
    %c0_199 = arith.constant 0 : index
    %185 = vector.load %arg5[%c0_198, %c0_199] : memref<1x128xf32, #tpu.memory_space<vmem>>, vector<1x128xf32>
    %186 = vector.broadcast %185 : vector<1x128xf32> to vector<4x128xf32>
    %187 = arith.addf %184, %186 : vector<4x128xf32>
    %cst_200 = arith.constant 0.000000e+00 : f32
    %188 = vector.broadcast %cst_200 : f32 to vector<4x128xf32>
    %189 = arith.maximumf %187, %188 : vector<4x128xf32>
    %c0_201 = arith.constant 0 : index
    %c0_202 = arith.constant 0 : index
    %190 = vector.load %arg7[%c0_201, %c0_202] : memref<1x512xf32, #tpu.memory_space<vmem>>, vector<1x512xf32>
    %191 = vector.extract_strided_slice %189 {offsets = [0, 0], sizes = [1, 128], strides = [1, 1]} : vector<4x128xf32> to vector<1x128xf32>
    %c0_203 = arith.constant 0 : index
    %c0_204 = arith.constant 0 : index
    %c0_205 = arith.constant 0 : index
    %192 = vector.load %arg6[%c0_203, %c0_204, %c0_205] : memref<4x128x512xf32, #tpu.memory_space<vmem>>, vector<1x128x512xf32>
    %193 = vector.shape_cast %192 : vector<1x128x512xf32> to vector<128x512xf32>
    %cst_206 = arith.constant dense<0.000000e+00> : vector<1x512xf32>
    %194 = tpu.matmul %191, %193, %cst_206 {dimension_numbers = #tpu.dot_dimension_numbers<[1], [0], [0], [1], [0, 0, 1, 1], [], []>} : vector<1x128xf32>, vector<128x512xf32>, vector<1x512xf32> -> vector<1x512xf32>
    %195 = arith.addf %190, %194 : vector<1x512xf32>
    %196 = vector.extract_strided_slice %189 {offsets = [1, 0], sizes = [1, 128], strides = [1, 1]} : vector<4x128xf32> to vector<1x128xf32>
    %c1_207 = arith.constant 1 : index
    %c0_208 = arith.constant 0 : index
    %c0_209 = arith.constant 0 : index
    %197 = vector.load %arg6[%c1_207, %c0_208, %c0_209] : memref<4x128x512xf32, #tpu.memory_space<vmem>>, vector<1x128x512xf32>
    %198 = vector.shape_cast %197 : vector<1x128x512xf32> to vector<128x512xf32>
    %cst_210 = arith.constant dense<0.000000e+00> : vector<1x512xf32>
    %199 = tpu.matmul %196, %198, %cst_210 {dimension_numbers = #tpu.dot_dimension_numbers<[1], [0], [0], [1], [0, 0, 1, 1], [], []>} : vector<1x128xf32>, vector<128x512xf32>, vector<1x512xf32> -> vector<1x512xf32>
    %200 = arith.addf %195, %199 : vector<1x512xf32>
    %201 = vector.extract_strided_slice %189 {offsets = [2, 0], sizes = [1, 128], strides = [1, 1]} : vector<4x128xf32> to vector<1x128xf32>
    %c2_211 = arith.constant 2 : index
    %c0_212 = arith.constant 0 : index
    %c0_213 = arith.constant 0 : index
    %202 = vector.load %arg6[%c2_211, %c0_212, %c0_213] : memref<4x128x512xf32, #tpu.memory_space<vmem>>, vector<1x128x512xf32>
    %203 = vector.shape_cast %202 : vector<1x128x512xf32> to vector<128x512xf32>
    %cst_214 = arith.constant dense<0.000000e+00> : vector<1x512xf32>
    %204 = tpu.matmul %201, %203, %cst_214 {dimension_numbers = #tpu.dot_dimension_numbers<[1], [0], [0], [1], [0, 0, 1, 1], [], []>} : vector<1x128xf32>, vector<128x512xf32>, vector<1x512xf32> -> vector<1x512xf32>
    %205 = arith.addf %200, %204 : vector<1x512xf32>
    %206 = vector.extract_strided_slice %189 {offsets = [3, 0], sizes = [1, 128], strides = [1, 1]} : vector<4x128xf32> to vector<1x128xf32>
    %c3_215 = arith.constant 3 : index
    %c0_216 = arith.constant 0 : index
    %c0_217 = arith.constant 0 : index
    %207 = vector.load %arg6[%c3_215, %c0_216, %c0_217] : memref<4x128x512xf32, #tpu.memory_space<vmem>>, vector<1x128x512xf32>
    %208 = vector.shape_cast %207 : vector<1x128x512xf32> to vector<128x512xf32>
    %cst_218 = arith.constant dense<0.000000e+00> : vector<1x512xf32>
    %209 = tpu.matmul %206, %208, %cst_218 {dimension_numbers = #tpu.dot_dimension_numbers<[1], [0], [0], [1], [0, 0, 1, 1], [], []>} : vector<1x128xf32>, vector<128x512xf32>, vector<1x512xf32> -> vector<1x512xf32>
    %210 = arith.addf %205, %209 : vector<1x512xf32>
    %cst_219 = arith.constant 0.000000e+00 : f32
    %211 = vector.broadcast %cst_219 : f32 to vector<1x512xf32>
    %212 = arith.maximumf %210, %211 : vector<1x512xf32>
    %c0_220 = arith.constant 0 : index
    %c0_221 = arith.constant 0 : index
    %213 = vector.load %arg8[%c0_220, %c0_221] : memref<512x128xf32, #tpu.memory_space<vmem>>, vector<512x128xf32>
    %cst_222 = arith.constant dense<0.000000e+00> : vector<1x128xf32>
    %214 = tpu.matmul %212, %213, %cst_222 {dimension_numbers = #tpu.dot_dimension_numbers<[1], [0], [0], [1], [0, 0, 1, 1], [], []>} : vector<1x512xf32>, vector<512x128xf32>, vector<1x128xf32> -> vector<1x128xf32>
    %c0_223 = arith.constant 0 : index
    %c0_224 = arith.constant 0 : index
    %215 = vector.load %arg9[%c0_223, %c0_224] : memref<1x128xf32, #tpu.memory_space<vmem>>, vector<1x128xf32>
    %216 = arith.addf %214, %215 : vector<1x128xf32>
    %c0_225 = arith.constant 0 : index
    %c0_226 = arith.constant 0 : index
    %c0_227 = arith.constant 0 : index
    %217 = vector.load %arg10[%c0_225, %c0_226, %c0_227] : memref<1x1x128xf32, #tpu.memory_space<vmem>>, vector<1x1x128xf32>
    %218 = vector.shape_cast %217 : vector<1x1x128xf32> to vector<1x128xf32>
    %219 = vector.shape_cast %216 : vector<1x128xf32> to vector<1x1x128xf32>
    tpu.vector_store %arg10[%c0_225, %c0_226, %c0_227], %219 {strides = array<i32>} : memref<1x1x128xf32, #tpu.memory_space<vmem>>, vector<1x1x128xf32>,
    return
  }
  func.func @transform_0(%arg0: i32) -> (i32, i32, i32, i32) {
    %c0_i32 = arith.constant 0 : i32
    %c0_i32_0 = arith.constant 0 : i32
    %c0_i32_1 = arith.constant 0 : i32
    %c0_i32_2 = arith.constant 0 : i32
    return %arg0, %c0_i32, %c0_i32_0, %c0_i32_1 : i32, i32, i32, i32
  }
  func.func @transform_1(%arg0: i32) -> (i32, i32, i32) {
    %c0_i32 = arith.constant 0 : i32
    %c0_i32_0 = arith.constant 0 : i32
    %c0_i32_1 = arith.constant 0 : i32
    %c0_i32_2 = arith.constant 0 : i32
    return %c0_i32, %c0_i32_0, %c0_i32_1 : i32, i32, i32
  }
  func.func @transform_2(%arg0: i32) -> (i32, i32) {
    %c0_i32 = arith.constant 0 : i32
    %c0_i32_0 = arith.constant 0 : i32
    %c0_i32_1 = arith.constant 0 : i32
    return %c0_i32, %c0_i32_0 : i32, i32
  }
  func.func @transform_3(%arg0: i32) -> (i32, i32, i32) {
    %c0_i32 = arith.constant 0 : i32
    %c0_i32_0 = arith.constant 0 : i32
    %c0_i32_1 = arith.constant 0 : i32
    %c0_i32_2 = arith.constant 0 : i32
    return %c0_i32, %c0_i32_0, %c0_i32_1 : i32, i32, i32
  }
  func.func @transform_4(%arg0: i32) -> (i32, i32) {
    %c0_i32 = arith.constant 0 : i32
    %c0_i32_0 = arith.constant 0 : i32
    %c0_i32_1 = arith.constant 0 : i32
    return %c0_i32, %c0_i32_0 : i32, i32
  }
  func.func @transform_5(%arg0: i32) -> (i32, i32, i32) {
    %c0_i32 = arith.constant 0 : i32
    %c0_i32_0 = arith.constant 0 : i32
    %c0_i32_1 = arith.constant 0 : i32
    %c0_i32_2 = arith.constant 0 : i32
    return %c0_i32, %c0_i32_0, %c0_i32_1 : i32, i32, i32
  }
  func.func @transform_6(%arg0: i32) -> (i32, i32) {
    %c0_i32 = arith.constant 0 : i32
    %c0_i32_0 = arith.constant 0 : i32
    %c0_i32_1 = arith.constant 0 : i32
    return %c0_i32, %c0_i32_0 : i32, i32
  }
  func.func @transform_7(%arg0: i32) -> (i32, i32) {
    %c0_i32 = arith.constant 0 : i32
    %c0_i32_0 = arith.constant 0 : i32
    %c0_i32_1 = arith.constant 0 : i32
    return %c0_i32, %c0_i32_0 : i32, i32
  }
  func.func @transform_8(%arg0: i32) -> (i32, i32) {
    %c0_i32 = arith.constant 0 : i32
    %c0_i32_0 = arith.constant 0 : i32
    %c0_i32_1 = arith.constant 0 : i32
    return %c0_i32, %c0_i32_0 : i32, i32
  }
  func.func @transform_9(%arg0: i32) -> (i32, i32, i32) {
    %c0_i32 = arith.constant 0 : i32
    %c0_i32_0 = arith.constant 0 : i32
    %c0_i32_1 = arith.constant 0 : i32
    return %arg0, %c0_i32, %c0_i32_0 : i32, i32, i32
  }
}

</mosaic_0001>

<llo_original>
// kernel: mnist_cnn_forward.1
$region0: #{mnist_cnn_forward.1}
  #allocation0 [shape = 'u32[]', space=smem, size = 0x4, offset = 0x4, fixed_abs, tag = 'smem constant byte address 0x4 - core index']
  #allocation1 [shape = 'u32[72,128]{1,0:T(1,128)}', space=vmem, size = 0x9000, scoped, tag = 'internal scratch']
  %s0 = inlined_call_operand.hbm [shape: f32[2,7,4,28], index: 0, kind: input, shape index: {}]
  %s1 = inlined_call_operand.hbm [shape: f32[5,28,512], index: 1, kind: input, shape index: {}]
  %s2 = inlined_call_operand.hbm [shape: f32[1,256], index: 2, kind: input, shape index: {}]
  %s3 = inlined_call_operand.hbm [shape: f32[5,256,256], index: 3, kind: input, shape index: {}]
  %s4 = inlined_call_operand.hbm [shape: f32[1,128], index: 4, kind: input, shape index: {}]
  %s5 = inlined_call_operand.hbm [shape: f32[4,128,512], index: 5, kind: input, shape index: {}]
  %s6 = inlined_call_operand.hbm [shape: f32[1,512], index: 6, kind: input, shape index: {}]
  %s7 = inlined_call_operand.hbm [shape: f32[512,128], index: 7, kind: input, shape index: {}]
  %s8 = inlined_call_operand.hbm [shape: f32[1,128], index: 8, kind: input, shape index: {}]
  %s9 = inlined_call_operand.hbm [shape: f32[2,1,128], index: 9, kind: output, shape index: {}]
  %s10 = sld [smem:[#allocation0]]
  $region105: #{mnist_cnn_forward.1} parent=0
    _
  %s12 = ssub.s32 1, %s10
  %s13 = scalar_select 0, %s12, %s10
  $region1: #{mnist_cnn_forward.1} parent=0
    #allocation2 [shape = 'u8[28672]{0}', space=vmem, size = 0x7000, scoped, tag = 'input window, operand 0']
    #allocation3 [shape = 's32[2]{0}', space=sflag, size = 0x8, scoped, tag = 'scoped memory for mnist_cnn_forward.1']
    #allocation4 [shape = 's32[2]{0}', space=sflag, size = 0x8, scoped, tag = 'scoped memory for mnist_cnn_forward.1']
    #allocation5 [shape = 'u8[327680]{0}', space=vmem, size = 0x50000, scoped, tag = 'input window, operand 1, single buffered']
    #allocation6 [shape = 's32[1]{0}', space=sflag, size = 0x4, scoped, tag = 'scoped memory for mnist_cnn_forward.1']
    #allocation7 [shape = 'u8[1024]{0}', space=vmem, size = 0x400, scoped, tag = 'input window, operand 2, single buffered']
    #allocation8 [shape = 'u8[1310720]{0}', space=vmem, size = 0x140000, scoped, tag = 'input window, operand 3, single buffered']
    #allocation9 [shape = 's32[1]{0}', space=sflag, size = 0x4, scoped, tag = 'scoped memory for mnist_cnn_forward.1']
    #allocation10 [shape = 'u8[512]{0}', space=vmem, size = 0x400, scoped, tag = 'input window, operand 4, single buffered']
    #allocation11 [shape = 'u8[1048576]{0}', space=vmem, size = 0x100000, scoped, tag = 'input window, operand 5, single buffered']
    #allocation12 [shape = 's32[1]{0}', space=sflag, size = 0x4, scoped, tag = 'scoped memory for mnist_cnn_forward.1']
    #allocation13 [shape = 'u8[2048]{0}', space=vmem, size = 0x800, scoped, tag = 'input window, operand 6, single buffered']
    #allocation14 [shape = 'u8[262144]{0}', space=vmem, size = 0x40000, scoped, tag = 'input window, operand 7, single buffered']
    #allocation15 [shape = 's32[1]{0}', space=sflag, size = 0x4, scoped, tag = 'scoped memory for mnist_cnn_forward.1']
    #allocation16 [shape = 'u8[512]{0}', space=vmem, size = 0x400, scoped, tag = 'input window, operand 8, single buffered']
    #allocation17 [shape = 'u8[1024]{0}', space=vmem, size = 0x400, scoped, tag = 'output window, operand 0']
    %14 = vsyncpa [#allocation3], 0
    %s15 = scalar_lea.sflag [#allocation3], 1
    %16 = vsyncpa %s15, 0
    %17 = vsyncpa [#allocation6], 0
    %18 = vsyncpa [#allocation9], 0
    %19 = vsyncpa [#allocation12], 0
    %20 = vsyncpa [#allocation15], 0
    %21 = vsyncpa [#allocation4], 0
    %s22 = scalar_lea.sflag [#allocation4], 1
    %23 = vsyncpa %s22, 0
    loop: start=0, step=1, limit=4
    $region2: #{mnist_cnn_forward.1} parent=1 // loop_pre_header
      _
    $region3: #{mnist_cnn_forward.1} parent=1 // loop_header
      %s25 = sphi 0, %s29
      %p26 = scmp.ge.s32.totalorder %s25, 4
      %s35 = sphi 0, %s37
      %s38 = sphi 0, %s35
      %s39 = sphi 0, %s38
      %s55 = sphi 0, %s39
      %s59 = sphi 0, %s59
      %s61 = sphi 0, %s59
      %s62 = sphi 0, %s61
      %s76 = sphi 0, %s62
      %s80 = sphi 0, %s80
      %s82 = sphi 0, %s80
      %s83 = sphi 0, %s82
      %s97 = sphi 0, %s83
      %s101 = sphi 0, %s101
      %s103 = sphi 0, %s101
      %s104 = sphi 0, %s103
      %s118 = sphi 0, %s104
      %s122 = sphi 0, %s122
      %s124 = sphi 0, %s122
      %s125 = sphi 0, %s124
      %s139 = sphi 0, %s125
      %s143 = sphi 0, %s143
      %s145 = sphi 0, %s143
      %s146 = sphi 0, %s145
      %s160 = sphi 0, %s146
      %s164 = sphi 0, %s164
      %s166 = sphi 0, %s164
      %s167 = sphi 0, %s166
      %s181 = sphi 0, %s167
      %s185 = sphi 0, %s185
      %s187 = sphi 0, %s185
      %s188 = sphi 0, %s187
      %s202 = sphi 0, %s188
      %s206 = sphi 0, %s206
      %s208 = sphi 0, %s206
      %s209 = sphi 0, %s208
      %s223 = sphi 0, %s209
      %s229 = sphi 0, %s231
      %s232 = sphi 0, %s229
      %s233 = sphi 0, %s232
      %s249 = sphi 0, %s233
    $region4: #{mnist_cnn_forward.1} parent=1 // loop_header_branch
      %28 = sbr.rel (%p26) target = $region8
    $region5: #{mnist_cnn_forward.1} parent=1 // loop_body
      %s30 = ssub.s32 %s25, 1
      %s31 = ssub.s32 %s25, 2
      %s32 = sadd.s32 %s25, 1
      %s33 = ssub.s32 %s25, %s32
      %p34 = scmp.eq.s32.totalorder %s33, 0
      %s36 = sadd.s32 %s35, 1
      %s37 = scalar_select %p34, %s35, %s36
      %p40 = pneg %p34
      %p41 = scmp.eq.s32.totalorder %s25, 1
      %p42 = por %p40, %p41
      %p43 = scmp.ne.s32.totalorder %s35, %s38
      %p44 = scmp.eq.s32.totalorder %s25, 0
      %p45 = por %p43, %p44
      %p46 = scmp.ne.s32.totalorder %s35, %s38
      %p47 = scmp.eq.s32.totalorder %s30, 1
      %p48 = por %p46, %p47
      %p49 = scmp.ne.s32.totalorder %s38, %s39
      %p50 = scmp.eq.s32.totalorder %s30, 0
      %p51 = por %p49, %p50
      %p52 = scmp.ne.s32.totalorder %s38, %s39
      %p53 = scmp.eq.s32.totalorder %s31, 1
      %p54 = por %p52, %p53
      %p56 = scmp.ne.s32.totalorder %s39, %s55
      %p57 = scmp.eq.s32.totalorder %s31, 0
      %p58 = por %p56, %p57
      %s60 = sadd.s32 %s59, 1
      %p63 = scmp.eq.s32.totalorder %s25, 1
      %p64 = scmp.ne.s32.totalorder %s59, %s61
      %p65 = scmp.eq.s32.totalorder %s25, 0
      %p66 = por %p64, %p65
      %p67 = scmp.ne.s32.totalorder %s59, %s61
      %p68 = scmp.eq.s32.totalorder %s30, 1
      %p69 = por %p67, %p68
      %p70 = scmp.ne.s32.totalorder %s61, %s62
      %p71 = scmp.eq.s32.totalorder %s30, 0
      %p72 = por %p70, %p71
      %p73 = scmp.ne.s32.totalorder %s61, %s62
      %p74 = scmp.eq.s32.totalorder %s31, 1
      %p75 = por %p73, %p74
      %p77 = scmp.ne.s32.totalorder %s62, %s76
      %p78 = scmp.eq.s32.totalorder %s31, 0
      %p79 = por %p77, %p78
      %s81 = sadd.s32 %s80, 1
      %p84 = scmp.eq.s32.totalorder %s25, 1
      %p85 = scmp.ne.s32.totalorder %s80, %s82
      %p86 = scmp.eq.s32.totalorder %s25, 0
      %p87 = por %p85, %p86
      %p88 = scmp.ne.s32.totalorder %s80, %s82
      %p89 = scmp.eq.s32.totalorder %s30, 1
      %p90 = por %p88, %p89
      %p91 = scmp.ne.s32.totalorder %s82, %s83
      %p92 = scmp.eq.s32.totalorder %s30, 0
      %p93 = por %p91, %p92
      %p94 = scmp.ne.s32.totalorder %s82, %s83
      %p95 = scmp.eq.s32.totalorder %s31, 1
      %p96 = por %p94, %p95
      %p98 = scmp.ne.s32.totalorder %s83, %s97
      %p99 = scmp.eq.s32.totalorder %s31, 0
      %p100 = por %p98, %p99
      %s102 = sadd.s32 %s101, 1
      %p105 = scmp.eq.s32.totalorder %s25, 1
      %p106 = scmp.ne.s32.totalorder %s101, %s103
      %p107 = scmp.eq.s32.totalorder %s25, 0
      %p108 = por %p106, %p107
      %p109 = scmp.ne.s32.totalorder %s101, %s103
      %p110 = scmp.eq.s32.totalorder %s30, 1
      %p111 = por %p109, %p110
      %p112 = scmp.ne.s32.totalorder %s103, %s104
      %p113 = scmp.eq.s32.totalorder %s30, 0
      %p114 = por %p112, %p113
      %p115 = scmp.ne.s32.totalorder %s103, %s104
      %p116 = scmp.eq.s32.totalorder %s31, 1
      %p117 = por %p115, %p116
      %p119 = scmp.ne.s32.totalorder %s104, %s118
      %p120 = scmp.eq.s32.totalorder %s31, 0
      %p121 = por %p119, %p120
      %s123 = sadd.s32 %s122, 1
      %p126 = scmp.eq.s32.totalorder %s25, 1
      %p127 = scmp.ne.s32.totalorder %s122, %s124
      %p128 = scmp.eq.s32.totalorder %s25, 0
      %p129 = por %p127, %p128
      %p130 = scmp.ne.s32.totalorder %s122, %s124
      %p131 = scmp.eq.s32.totalorder %s30, 1
      %p132 = por %p130, %p131
      %p133 = scmp.ne.s32.totalorder %s124, %s125
      %p134 = scmp.eq.s32.totalorder %s30, 0
      %p135 = por %p133, %p134
      %p136 = scmp.ne.s32.totalorder %s124, %s125
      %p137 = scmp.eq.s32.totalorder %s31, 1
      %p138 = por %p136, %p137
      %p140 = scmp.ne.s32.totalorder %s125, %s139
      %p141 = scmp.eq.s32.totalorder %s31, 0
      %p142 = por %p140, %p141
      %s144 = sadd.s32 %s143, 1
      %p147 = scmp.eq.s32.totalorder %s25, 1
      %p148 = scmp.ne.s32.totalorder %s143, %s145
      %p149 = scmp.eq.s32.totalorder %s25, 0
      %p150 = por %p148, %p149
      %p151 = scmp.ne.s32.totalorder %s143, %s145
      %p152 = scmp.eq.s32.totalorder %s30, 1
      %p153 = por %p151, %p152
      %p154 = scmp.ne.s32.totalorder %s145, %s146
      %p155 = scmp.eq.s32.totalorder %s30, 0
      %p156 = por %p154, %p155
      %p157 = scmp.ne.s32.totalorder %s145, %s146
      %p158 = scmp.eq.s32.totalorder %s31, 1
      %p159 = por %p157, %p158
      %p161 = scmp.ne.s32.totalorder %s146, %s160
      %p162 = scmp.eq.s32.totalorder %s31, 0
      %p163 = por %p161, %p162
      %s165 = sadd.s32 %s164, 1
      %p168 = scmp.eq.s32.totalorder %s25, 1
      %p169 = scmp.ne.s32.totalorder %s164, %s166
      %p170 = scmp.eq.s32.totalorder %s25, 0
      %p171 = por %p169, %p170
      %p172 = scmp.ne.s32.totalorder %s164, %s166
      %p173 = scmp.eq.s32.totalorder %s30, 1
      %p174 = por %p172, %p173
      %p175 = scmp.ne.s32.totalorder %s166, %s167
      %p176 = scmp.eq.s32.totalorder %s30, 0
      %p177 = por %p175, %p176
      %p178 = scmp.ne.s32.totalorder %s166, %s167
      %p179 = scmp.eq.s32.totalorder %s31, 1
      %p180 = por %p178, %p179
      %p182 = scmp.ne.s32.totalorder %s167, %s181
      %p183 = scmp.eq.s32.totalorder %s31, 0
      %p184 = por %p182, %p183
      %s186 = sadd.s32 %s185, 1
      %p189 = scmp.eq.s32.totalorder %s25, 1
      %p190 = scmp.ne.s32.totalorder %s185, %s187
      %p191 = scmp.eq.s32.totalorder %s25, 0
      %p192 = por %p190, %p191
      %p193 = scmp.ne.s32.totalorder %s185, %s187
      %p194 = scmp.eq.s32.totalorder %s30, 1
      %p195 = por %p193, %p194
      %p196 = scmp.ne.s32.totalorder %s187, %s188
      %p197 = scmp.eq.s32.totalorder %s30, 0
      %p198 = por %p196, %p197
      %p199 = scmp.ne.s32.totalorder %s187, %s188
      %p200 = scmp.eq.s32.totalorder %s31, 1
      %p201 = por %p199, %p200
      %p203 = scmp.ne.s32.totalorder %s188, %s202
      %p204 = scmp.eq.s32.totalorder %s31, 0
      %p205 = por %p203, %p204
      %s207 = sadd.s32 %s206, 1
      %p210 = scmp.eq.s32.totalorder %s25, 1
      %p211 = scmp.ne.s32.totalorder %s206, %s208
      %p212 = scmp.eq.s32.totalorder %s25, 0
      %p213 = por %p211, %p212
      %p214 = scmp.ne.s32.totalorder %s206, %s208
      %p215 = scmp.eq.s32.totalorder %s30, 1
      %p216 = por %p214, %p215
      %p217 = scmp.ne.s32.totalorder %s208, %s209
      %p218 = scmp.eq.s32.totalorder %s30, 0
      %p219 = por %p217, %p218
      %p220 = scmp.ne.s32.totalorder %s208, %s209
      %p221 = scmp.eq.s32.totalorder %s31, 1
      %p222 = por %p220, %p221
      %p224 = scmp.ne.s32.totalorder %s209, %s223
      %p225 = scmp.eq.s32.totalorder %s31, 0
      %p226 = por %p224, %p225
      %s227 = ssub.s32 %s25, %s32
      %p228 = scmp.eq.s32.totalorder %s227, 0
      %s230 = sadd.s32 %s229, 1
      %s231 = scalar_select %p228, %s229, %s230
      %p234 = pneg %p228
      %p235 = scmp.eq.s32.totalorder %s25, 1
      %p236 = por %p234, %p235
      %p237 = scmp.ne.s32.totalorder %s229, %s232
      %p238 = scmp.eq.s32.totalorder %s25, 0
      %p239 = por %p237, %p238
      %p240 = scmp.ne.s32.totalorder %s229, %s232
      %p241 = scmp.eq.s32.totalorder %s30, 1
      %p242 = por %p240, %p241
      %p243 = scmp.ne.s32.totalorder %s232, %s233
      %p244 = scmp.eq.s32.totalorder %s30, 0
      %p245 = por %p243, %p244
      %p246 = scmp.ne.s32.totalorder %s232, %s233
      %p247 = scmp.eq.s32.totalorder %s31, 1
      %p248 = por %p246, %p247
      %p250 = scmp.ne.s32.totalorder %s233, %s249
      %p251 = scmp.eq.s32.totalorder %s31, 0
      %p252 = por %p250, %p251
      %p253 = scmp.le.s32.totalorder 1, %s25
      %p254 = scmp.lt.s32.totalorder %s25, 3
      %p255 = pnand %p253, %p254
      %p256 = pneg %p255
      // Predicated region
      $region9: #{mnist_cnn_forward.1} parent=5 // pred_check
        _
      $region10: #{mnist_cnn_forward.1} parent=5 // pred_check_branch
        %258 = sbr.rel (%p255) target = $region12
      $region11: #{mnist_cnn_forward.1} parent=5 // pred_region
        %s259 = ssub.s32 %s25, 1
        // Predicated region
        $region13: #{mnist_cnn_forward.1} parent=11 // pred_check
          %p260 = pneg %p72
        $region14: #{mnist_cnn_forward.1} parent=11 // pred_check_branch
          %262 = sbr.rel (%p260) target = $region16
        $region15: #{mnist_cnn_forward.1} parent=11 // pred_region
          %264 = vsyncadd [#allocation6], 0
          %s265 = sshll.u32 %s1, 4
          %s266 = int_to_ptr.hbm [resolvable:$true] %s265
          %s267 = sshll.u32 [#allocation5], 4
          %s268 = int_to_ptr.vmem [resolvable:$true] %s267
          %273 = dma.hbm_to_vmem [thread:$0]  %s266, 10240, %s268, [#allocation6], 512, 512, 32
        $region16: #{mnist_cnn_forward.1} parent=11 // pred_fallthru
          _
        // Predicated region
        $region17: #{mnist_cnn_forward.1} parent=11 // pred_check
          %p274 = pneg %p93
        $region18: #{mnist_cnn_forward.1} parent=11 // pred_check_branch
          %276 = sbr.rel (%p274) target = $region20
        $region19: #{mnist_cnn_forward.1} parent=11 // pred_region
          %278 = vsyncadd [#allocation6], 0
          %s280 = sshll.u32 %s2, 4
          %s281 = int_to_ptr.hbm [resolvable:$true] %s280
          %s282 = sshll.u32 [#allocation7], 4
          %s283 = int_to_ptr.vmem [resolvable:$true] %s282
          %285 = dma.hbm_to_vmem [thread:$0]  %s281, 32, %s283, [#allocation6]
        $region20: #{mnist_cnn_forward.1} parent=11 // pred_fallthru
          _
        // Predicated region
        $region21: #{mnist_cnn_forward.1} parent=11 // pred_check
          %p286 = pneg %p114
        $region22: #{mnist_cnn_forward.1} parent=11 // pred_check_branch
          %288 = sbr.rel (%p286) target = $region24
        $region23: #{mnist_cnn_forward.1} parent=11 // pred_region
          %290 = vsyncadd [#allocation9], 0
          %s291 = sshll.u32 %s3, 4
          %s292 = int_to_ptr.hbm [resolvable:$true] %s291
          %s293 = sshll.u32 [#allocation8], 4
          %s294 = int_to_ptr.vmem [resolvable:$true] %s293
          %299 = dma.hbm_to_vmem [thread:$0]  %s292, 40960, %s294, [#allocation9], 256, 256, 16
        $region24: #{mnist_cnn_forward.1} parent=11 // pred_fallthru
          _
        // Predicated region
        $region25: #{mnist_cnn_forward.1} parent=11 // pred_check
          %p300 = pneg %p135
        $region26: #{mnist_cnn_forward.1} parent=11 // pred_check_branch
          %302 = sbr.rel (%p300) target = $region28
        $region27: #{mnist_cnn_forward.1} parent=11 // pred_region
          %304 = vsyncadd [#allocation9], 0
          %s306 = sshll.u32 %s4, 4
          %s307 = int_to_ptr.hbm [resolvable:$true] %s306
          %s308 = sshll.u32 [#allocation10], 4
          %s309 = int_to_ptr.vmem [resolvable:$true] %s308
          %311 = dma.hbm_to_vmem [thread:$0]  %s307, 16, %s309, [#allocation9]
        $region28: #{mnist_cnn_forward.1} parent=11 // pred_fallthru
          _
        // Predicated region
        $region29: #{mnist_cnn_forward.1} parent=11 // pred_check
          %p312 = pneg %p156
        $region30: #{mnist_cnn_forward.1} parent=11 // pred_check_branch
          %314 = sbr.rel (%p312) target = $region32
        $region31: #{mnist_cnn_forward.1} parent=11 // pred_region
          %316 = vsyncadd [#allocation12], 0
          %s317 = sshll.u32 %s5, 4
          %s318 = int_to_ptr.hbm [resolvable:$true] %s317
          %s319 = sshll.u32 [#allocation11], 4
          %s320 = int_to_ptr.vmem [resolvable:$true] %s319
          %325 = dma.hbm_to_vmem [thread:$0]  %s318, 32768, %s320, [#allocation12], 512, 512, 32
        $region32: #{mnist_cnn_forward.1} parent=11 // pred_fallthru
          _
        // Predicated region
        $region33: #{mnist_cnn_forward.1} parent=11 // pred_check
          %p326 = pneg %p177
        $region34: #{mnist_cnn_forward.1} parent=11 // pred_check_branch
          %328 = sbr.rel (%p326) target = $region36
        $region35: #{mnist_cnn_forward.1} parent=11 // pred_region
          %330 = vsyncadd [#allocation12], 0
          %s332 = sshll.u32 %s6, 4
          %s333 = int_to_ptr.hbm [resolvable:$true] %s332
          %s334 = sshll.u32 [#allocation13], 4
          %s335 = int_to_ptr.vmem [resolvable:$true] %s334
          %337 = dma.hbm_to_vmem [thread:$0]  %s333, 64, %s335, [#allocation12]
        $region36: #{mnist_cnn_forward.1} parent=11 // pred_fallthru
          _
        // Predicated region
        $region37: #{mnist_cnn_forward.1} parent=11 // pred_check
          %p338 = pneg %p198
        $region38: #{mnist_cnn_forward.1} parent=11 // pred_check_branch
          %340 = sbr.rel (%p338) target = $region40
        $region39: #{mnist_cnn_forward.1} parent=11 // pred_region
          %342 = vsyncadd [#allocation15], 0
          %s343 = sshll.u32 %s7, 4
          %s344 = int_to_ptr.hbm [resolvable:$true] %s343
          %s345 = sshll.u32 [#allocation14], 4
          %s346 = int_to_ptr.vmem [resolvable:$true] %s345
          %351 = dma.hbm_to_vmem [thread:$0]  %s344, 8192, %s346, [#allocation15], 128, 128, 8
        $region40: #{mnist_cnn_forward.1} parent=11 // pred_fallthru
          _
        // Predicated region
        $region41: #{mnist_cnn_forward.1} parent=11 // pred_check
          %p352 = pneg %p219
        $region42: #{mnist_cnn_forward.1} parent=11 // pred_check_branch
          %354 = sbr.rel (%p352) target = $region44
        $region43: #{mnist_cnn_forward.1} parent=11 // pred_region
          %356 = vsyncadd [#allocation15], 0
          %s358 = sshll.u32 %s8, 4
          %s359 = int_to_ptr.hbm [resolvable:$true] %s358
          %s360 = sshll.u32 [#allocation16], 4
          %s361 = int_to_ptr.vmem [resolvable:$true] %s360
          %363 = dma.hbm_to_vmem [thread:$0]  %s359, 16, %s361, [#allocation15]
        $region44: #{mnist_cnn_forward.1} parent=11 // pred_fallthru
          _
      $region12: #{mnist_cnn_forward.1} parent=5 // pred_fallthru
        _
      %p364 = scmp.lt.s32.totalorder %s25, 2
      // Predicated region
      $region45: #{mnist_cnn_forward.1} parent=5 // pred_check
        %p365 = pneg %p364
      $region46: #{mnist_cnn_forward.1} parent=5 // pred_check_branch
        %367 = sbr.rel (%p365) target = $region48
      $region47: #{mnist_cnn_forward.1} parent=5 // pred_region
        // Predicated region
        $region49: #{mnist_cnn_forward.1} parent=47 // pred_check
          %p368 = pneg %p45
        $region50: #{mnist_cnn_forward.1} parent=47 // pred_check_branch
          %370 = sbr.rel (%p368) target = $region52
        $region51: #{mnist_cnn_forward.1} parent=47 // pred_region
          %s371 = sand.u32 %s35, 1
          %s372 = scalar_lea.sflag [#allocation3], %s371
          %s373 = sand.u32 %s35, 1
          %s374 = smul.addr %s373, 28
          %s375 = scalar_lea.vmem [#allocation2], %s374
          %377 = vsyncadd %s372, 0
          %s378 = smul.addr %s25, 7
          %s379 = smul.addr %s378, 4
          %s380 = scalar_lea.hbm %s0, %s379
          %s381 = sshll.u32 %s380, 4
          %s382 = int_to_ptr.hbm [resolvable:$true] %s381
          %s383 = sshll.u32 %s375, 4
          %s384 = int_to_ptr.vmem [resolvable:$true] %s383
          %389 = dma.hbm_to_vmem [thread:$0]  %s382, 448, %s384, %s372, 64, 64, 4
        $region52: #{mnist_cnn_forward.1} parent=47 // pred_fallthru
          _
      $region48: #{mnist_cnn_forward.1} parent=5 // pred_fallthru
        _
      %p390 = scmp.le.s32.totalorder 1, %s25
      %p391 = scmp.lt.s32.totalorder %s25, 3
      %p392 = pnand %p390, %p391
      %p393 = pneg %p392
      // Predicated region
      $region53: #{mnist_cnn_forward.1} parent=5 // pred_check
        _
      $region54: #{mnist_cnn_forward.1} parent=5 // pred_check_branch
        %395 = sbr.rel (%p392) target = $region56
      $region55: #{mnist_cnn_forward.1} parent=5 // pred_region
        %s396 = ssub.s32 %s25, 1
        %s397 = sand.u32 %s38, 1
        %s398 = scalar_lea.sflag [#allocation3], %s397
        %s399 = sand.u32 %s38, 1
        %s400 = smul.addr %s399, 28
        %s401 = scalar_lea.vmem [#allocation2], %s400
        // Predicated region
        $region57: #{mnist_cnn_forward.1} parent=55 // pred_check
          %p402 = pneg %p51
        $region58: #{mnist_cnn_forward.1} parent=55 // pred_check_branch
          %404 = sbr.rel (%p402) target = $region60
        $region59: #{mnist_cnn_forward.1} parent=55 // pred_region
          %406 = dma.done %s398, 448
        $region60: #{mnist_cnn_forward.1} parent=55 // pred_fallthru
          _
        // Predicated region
        $region61: #{mnist_cnn_forward.1} parent=55 // pred_check
          %p407 = pneg %p72
        $region62: #{mnist_cnn_forward.1} parent=55 // pred_check_branch
          %409 = sbr.rel (%p407) target = $region64
        $region63: #{mnist_cnn_forward.1} parent=55 // pred_region
          %411 = dma.done [#allocation6], 10240
        $region64: #{mnist_cnn_forward.1} parent=55 // pred_fallthru
          _
        // Predicated region
        $region65: #{mnist_cnn_forward.1} parent=55 // pred_check
          %p412 = pneg %p93
        $region66: #{mnist_cnn_forward.1} parent=55 // pred_check_branch
          %414 = sbr.rel (%p412) target = $region68
        $region67: #{mnist_cnn_forward.1} parent=55 // pred_region
          %416 = dma.done [#allocation6], 32
        $region68: #{mnist_cnn_forward.1} parent=55 // pred_fallthru
          _
        // Predicated region
        $region69: #{mnist_cnn_forward.1} parent=55 // pred_check
          %p417 = pneg %p114
        $region70: #{mnist_cnn_forward.1} parent=55 // pred_check_branch
          %419 = sbr.rel (%p417) target = $region72
        $region71: #{mnist_cnn_forward.1} parent=55 // pred_region
          %421 = dma.done [#allocation9], 40960
        $region72: #{mnist_cnn_forward.1} parent=55 // pred_fallthru
          _
        // Predicated region
        $region73: #{mnist_cnn_forward.1} parent=55 // pred_check
          %p422 = pneg %p135
        $region74: #{mnist_cnn_forward.1} parent=55 // pred_check_branch
          %424 = sbr.rel (%p422) target = $region76
        $region75: #{mnist_cnn_forward.1} parent=55 // pred_region
          %426 = dma.done [#allocation9], 16
        $region76: #{mnist_cnn_forward.1} parent=55 // pred_fallthru
          _
        // Predicated region
        $region77: #{mnist_cnn_forward.1} parent=55 // pred_check
          %p427 = pneg %p156
        $region78: #{mnist_cnn_forward.1} parent=55 // pred_check_branch
          %429 = sbr.rel (%p427) target = $region80
        $region79: #{mnist_cnn_forward.1} parent=55 // pred_region
          %431 = dma.done [#allocation12], 32768
        $region80: #{mnist_cnn_forward.1} parent=55 // pred_fallthru
          _
        // Predicated region
        $region81: #{mnist_cnn_forward.1} parent=55 // pred_check
          %p432 = pneg %p177
        $region82: #{mnist_cnn_forward.1} parent=55 // pred_check_branch
          %434 = sbr.rel (%p432) target = $region84
        $region83: #{mnist_cnn_forward.1} parent=55 // pred_region
          %436 = dma.done [#allocation12], 64
        $region84: #{mnist_cnn_forward.1} parent=55 // pred_fallthru
          _
        // Predicated region
        $region85: #{mnist_cnn_forward.1} parent=55 // pred_check
          %p437 = pneg %p198
        $region86: #{mnist_cnn_forward.1} parent=55 // pred_check_branch
          %439 = sbr.rel (%p437) target = $region88
        $region87: #{mnist_cnn_forward.1} parent=55 // pred_region
          %441 = dma.done [#allocation15], 8192
        $region88: #{mnist_cnn_forward.1} parent=55 // pred_fallthru
          _
        // Predicated region
        $region89: #{mnist_cnn_forward.1} parent=55 // pred_check
          %p442 = pneg %p219
        $region90: #{mnist_cnn_forward.1} parent=55 // pred_check_branch
          %444 = sbr.rel (%p442) target = $region92
        $region91: #{mnist_cnn_forward.1} parent=55 // pred_region
          %446 = dma.done [#allocation15], 16
        $region92: #{mnist_cnn_forward.1} parent=55 // pred_fallthru
          _
        %s447 = sand.u32 %s38, 1
        %s448 = scalar_lea.sflag [#allocation3], %s447
        %s449 = sand.u32 %s38, 1
        %s450 = smul.addr %s449, 28
        %s451 = scalar_lea.vmem [#allocation2], %s450
        %p452 = pneg %p51
        %p453 = pneg %p48
        %p454 = pneg %p72
        %p455 = pneg %p69
        %p456 = pneg %p93
        %p457 = pneg %p90
        %p458 = pneg %p114
        %p459 = pneg %p111
        %p460 = pneg %p135
        %p461 = pneg %p132
        %p462 = pneg %p156
        %p463 = pneg %p153
        %p464 = pneg %p177
        %p465 = pneg %p174
        %p466 = pneg %p198
        %p467 = pneg %p195
        %p468 = pneg %p219
        %p469 = pneg %p216
        %p470 = pneg %p245
        %p471 = pneg %p242
        %s472 = sand.u32 %s232, 1
        %s473 = scalar_lea.sflag [#allocation4], %s472
        %s474 = sand.u32 %s232, 1
        %s475 = scalar_lea.vmem [#allocation17], %s474
        %v476 = vld [vmem:[%s401] sm:$0x1]
        %v477 = vld [vmem:[%s401 + $0x4] sm:$0x1]
        %v478 = vld [vmem:[%s401 + $0x8] sm:$0x1]
        %v479 = vld [vmem:[%s401 + $0xc] sm:$0x1]
        %v480 = vld [vmem:[%s401 + $0x10] sm:$0x1]
        %v481 = vld [vmem:[%s401 + $0x14] sm:$0x1]
        %v482 = vld [vmem:[#allocation5] sm:$0xff]
        %v483 = vld [vmem:[#allocation5 + $0x8] sm:$0xff]
        %v484 = vld [vmem:[#allocation5 + $0x10] sm:$0xff]
        %v485 = vld [vmem:[#allocation5 + $0x18] sm:$0xff]
        %v486 = vld [vmem:[#allocation5 + $0x20] sm:$0xff]
        %v487 = vld [vmem:[#allocation5 + $0x28] sm:$0xff]
        %v488 = vld [vmem:[#allocation5 + $0x30] sm:$0xff]
        %v489 = vld [vmem:[#allocation5 + $0x38] sm:$0xff]
        %v490 = vld [vmem:[#allocation5 + $0x40] sm:$0xff]
        %v491 = vld [vmem:[#allocation5 + $0x48] sm:$0xff]
        %v492 = vld [vmem:[#allocation5 + $0x50] sm:$0xff]
        %v493 = vld [vmem:[#allocation5 + $0x58] sm:$0xff]
        %v494 = vld [vmem:[#allocation5 + $0x60] sm:$0xf]
        %v495 = vld [vmem:[#allocation5 + $0x68] sm:$0xf]
        %v496 = vld [vmem:[#allocation5 + $0x70] sm:$0xf]
        %v497 = vld [vmem:[#allocation5 + $0x78] sm:$0xf]
        %v498 = vld [vmem:[%s401 + $0x1] sm:$0x1]
        %v499 = vld [vmem:[%s401 + $0x5] sm:$0x1]
        %v500 = vld [vmem:[%s401 + $0x9] sm:$0x1]
        %v501 = vld [vmem:[%s401 + $0xd] sm:$0x1]
        %v502 = vld [vmem:[%s401 + $0x11] sm:$0x1]
        %v503 = vld [vmem:[%s401 + $0x15] sm:$0x1]
        %s504 = scalar_lea.vmem [#allocation5], 128
        %v505 = vld [vmem:[%s504] sm:$0xff]
        %v506 = vld [vmem:[%s504 + $0x8] sm:$0xff]
        %v507 = vld [vmem:[%s504 + $0x10] sm:$0xff]
        %v508 = vld [vmem:[%s504 + $0x18] sm:$0xff]
        %v509 = vld [vmem:[%s504 + $0x20] sm:$0xff]
        %v510 = vld [vmem:[%s504 + $0x28] sm:$0xff]
        %v511 = vld [vmem:[%s504 + $0x30] sm:$0xff]
        %v512 = vld [vmem:[%s504 + $0x38] sm:$0xff]
        %v513 = vld [vmem:[%s504 + $0x40] sm:$0xff]
        %v514 = vld [vmem:[%s504 + $0x48] sm:$0xff]
        %v515 = vld [vmem:[%s504 + $0x50] sm:$0xff]
        %v516 = vld [vmem:[%s504 + $0x58] sm:$0xff]
        %v517 = vld [vmem:[%s504 + $0x60] sm:$0xf]
        %v518 = vld [vmem:[%s504 + $0x68] sm:$0xf]
        %v519 = vld [vmem:[%s504 + $0x70] sm:$0xf]
        %v520 = vld [vmem:[%s504 + $0x78] sm:$0xf]
        %v527 = vrot.slane %v499, 7
        %vm528 = vcmask 1041409
        %v529 = vsel %vm528, %v527, %v498
        %v530 = vrot.slane %v500, 6
        %vm531 = vcmask 1042434
        %v532 = vsel %vm531, %v530, %v529
        %v533 = vrot.slane %v501, 5
        %vm534 = vcmask 1043459
        %v535 = vsel %vm534, %v533, %v532
        %v536 = vrot.slane %v502, 4
        %vm537 = vcmask 1044484
        %v538 = vsel %vm537, %v536, %v535
        %v539 = vrot.slane %v503, 3
        %vm540 = vcmask 1045509
        %v541 = vsel %vm540, %v539, %v538
        %vm542 = vcmask 228352
        %v543 = vsel %vm542, %v541, 0
        %vm545 = vcmask 1043456
        %v547 = vsel %vm545, %v517, 0
        %v550 = vsel %vm545, %v518, 0
        %v553 = vsel %vm545, %v519, 0
        %v556 = vsel %vm545, %v520, 0
        %558 = vmatpush.msra.mxu0 0.0
        %559 = vmatpush.msra.mxu0 0.0
        %560 = vmatpush.msra.mxu0 0.0
        %561 = vmatpush.msra.mxu0 0.0
        %562 = vmatpush.msra.mxu0 0.0
        %563 = vmatpush.msra.mxu0 0.0
        %564 = vmatpush.msra.mxu0 0.0
        %565 = vmatpush.msra.mxu0 0.0
        %566 = vmatpush.msra.mxu0 0.0
        %567 = vmatpush.msra.mxu0 0.0
        %568 = vmatpush.msra.mxu0 0.0
        %569 = vmatpush.msra.mxu0 0.0
        %570 = vmatpush.msra.mxu0 %v547
        %571 = vmatpush.msra.mxu0 %v513
        %572 = vmatpush.msra.mxu0 %v509
        %573 = vmatpush.msra.mxu0 %v505
        %574 = vmatmul.f32.gmra.mxu0 %v543
        %v575 = vpop.f32.mrf.mxu0
        %v576 = vadd.f32 0.0, %v575
        %577 = vdwg.mxu0
        %578 = vmatpush.msra.mxu0 0.0
        %579 = vmatpush.msra.mxu0 0.0
        %580 = vmatpush.msra.mxu0 0.0
        %581 = vmatpush.msra.mxu0 0.0
        %582 = vmatpush.msra.mxu0 0.0
        %583 = vmatpush.msra.mxu0 0.0
        %584 = vmatpush.msra.mxu0 0.0
        %585 = vmatpush.msra.mxu0 0.0
        %586 = vmatpush.msra.mxu0 0.0
        %587 = vmatpush.msra.mxu0 0.0
        %588 = vmatpush.msra.mxu0 0.0
        %589 = vmatpush.msra.mxu0 0.0
        %590 = vmatpush.msra.mxu0 %v550
        %591 = vmatpush.msra.mxu0 %v514
        %592 = vmatpush.msra.mxu0 %v510
        %593 = vmatpush.msra.mxu0 %v506
        %594 = vmatmul.f32.gmra.mxu0 %v543
        %v595 = vpop.f32.mrf.mxu0
        %v596 = vadd.f32 0.0, %v595
        %597 = vdwg.mxu0
        %598 = vmatpush.msra.mxu0 0.0
        %599 = vmatpush.msra.mxu0 0.0
        %600 = vmatpush.msra.mxu0 0.0
        %601 = vmatpush.msra.mxu0 0.0
        %602 = vmatpush.msra.mxu0 0.0
        %603 = vmatpush.msra.mxu0 0.0
        %604 = vmatpush.msra.mxu0 0.0
        %605 = vmatpush.msra.mxu0 0.0
        %606 = vmatpush.msra.mxu0 0.0
        %607 = vmatpush.msra.mxu0 0.0
        %608 = vmatpush.msra.mxu0 0.0
        %609 = vmatpush.msra.mxu0 0.0
        %610 = vmatpush.msra.mxu0 %v553
        %611 = vmatpush.msra.mxu0 %v515
        %612 = vmatpush.msra.mxu0 %v511
        %613 = vmatpush.msra.mxu0 %v507
        %614 = vmatmul.f32.gmra.mxu0 %v543
        %v615 = vpop.f32.mrf.mxu0
        %v616 = vadd.f32 0.0, %v615
        %617 = vdwg.mxu0
        %618 = vmatpush.msra.mxu0 0.0
        %619 = vmatpush.msra.mxu0 0.0
        %620 = vmatpush.msra.mxu0 0.0
        %621 = vmatpush.msra.mxu0 0.0
        %622 = vmatpush.msra.mxu0 0.0
        %623 = vmatpush.msra.mxu0 0.0
        %624 = vmatpush.msra.mxu0 0.0
        %625 = vmatpush.msra.mxu0 0.0
        %626 = vmatpush.msra.mxu0 0.0
        %627 = vmatpush.msra.mxu0 0.0
        %628 = vmatpush.msra.mxu0 0.0
        %629 = vmatpush.msra.mxu0 0.0
        %630 = vmatpush.msra.mxu0 %v556
        %631 = vmatpush.msra.mxu0 %v516
        %632 = vmatpush.msra.mxu0 %v512
        %633 = vmatpush.msra.mxu0 %v508
        %634 = vmatmul.f32.gmra.mxu0 %v543
        %v635 = vpop.f32.mrf.mxu0
        %v636 = vadd.f32 0.0, %v635
        %637 = vdwg.mxu0
        %v644 = vrot.slane %v477, 7
        %v645 = vsel %vm528, %v644, %v476
        %v646 = vrot.slane %v478, 6
        %v647 = vsel %vm531, %v646, %v645
        %v648 = vrot.slane %v479, 5
        %v649 = vsel %vm534, %v648, %v647
        %v650 = vrot.slane %v480, 4
        %v651 = vsel %vm537, %v650, %v649
        %v652 = vrot.slane %v481, 3
        %v653 = vsel %vm540, %v652, %v651
        %v654 = vsel %vm542, %v653, 0
        %v657 = vsel %vm545, %v494, 0
        %v660 = vsel %vm545, %v495, 0
        %v663 = vsel %vm545, %v496, 0
        %v666 = vsel %vm545, %v497, 0
        %668 = vmatpush.msra.mxu0 0.0
        %669 = vmatpush.msra.mxu0 0.0
        %670 = vmatpush.msra.mxu0 0.0
        %671 = vmatpush.msra.mxu0 0.0
        %672 = vmatpush.msra.mxu0 0.0
        %673 = vmatpush.msra.mxu0 0.0
        %674 = vmatpush.msra.mxu0 0.0
        %675 = vmatpush.msra.mxu0 0.0
        %676 = vmatpush.msra.mxu0 0.0
        %677 = vmatpush.msra.mxu0 0.0
        %678 = vmatpush.msra.mxu0 0.0
        %679 = vmatpush.msra.mxu0 0.0
        %680 = vmatpush.msra.mxu0 %v657
        %681 = vmatpush.msra.mxu0 %v490
        %682 = vmatpush.msra.mxu0 %v486
        %683 = vmatpush.msra.mxu0 %v482
        %684 = vmatmul.f32.gmra.mxu0 %v654
        %v685 = vpop.f32.mrf.mxu0
        %v686 = vadd.f32 %v576, %v685
        %687 = vdwg.mxu0
        %688 = vmatpush.msra.mxu0 0.0
        %689 = vmatpush.msra.mxu0 0.0
        %690 = vmatpush.msra.mxu0 0.0
        %691 = vmatpush.msra.mxu0 0.0
        %692 = vmatpush.msra.mxu0 0.0
        %693 = vmatpush.msra.mxu0 0.0
        %694 = vmatpush.msra.mxu0 0.0
        %695 = vmatpush.msra.mxu0 0.0
        %696 = vmatpush.msra.mxu0 0.0
        %697 = vmatpush.msra.mxu0 0.0
        %698 = vmatpush.msra.mxu0 0.0
        %699 = vmatpush.msra.mxu0 0.0
        %700 = vmatpush.msra.mxu0 %v660
        %701 = vmatpush.msra.mxu0 %v491
        %702 = vmatpush.msra.mxu0 %v487
        %703 = vmatpush.msra.mxu0 %v483
        %704 = vmatmul.f32.gmra.mxu0 %v654
        %v705 = vpop.f32.mrf.mxu0
        %v706 = vadd.f32 %v596, %v705
        %707 = vdwg.mxu0
        %708 = vmatpush.msra.mxu0 0.0
        %709 = vmatpush.msra.mxu0 0.0
        %710 = vmatpush.msra.mxu0 0.0
        %711 = vmatpush.msra.mxu0 0.0
        %712 = vmatpush.msra.mxu0 0.0
        %713 = vmatpush.msra.mxu0 0.0
        %714 = vmatpush.msra.mxu0 0.0
        %715 = vmatpush.msra.mxu0 0.0
        %716 = vmatpush.msra.mxu0 0.0
        %717 = vmatpush.msra.mxu0 0.0
        %718 = vmatpush.msra.mxu0 0.0
        %719 = vmatpush.msra.mxu0 0.0
        %720 = vmatpush.msra.mxu0 %v663
        %721 = vmatpush.msra.mxu0 %v492
        %722 = vmatpush.msra.mxu0 %v488
        %723 = vmatpush.msra.mxu0 %v484
        %724 = vmatmul.f32.gmra.mxu0 %v654
        %v725 = vpop.f32.mrf.mxu0
        %v726 = vadd.f32 %v616, %v725
        %727 = vdwg.mxu0
        %728 = vmatpush.msra.mxu0 0.0
        %729 = vmatpush.msra.mxu0 0.0
        %730 = vmatpush.msra.mxu0 0.0
        %731 = vmatpush.msra.mxu0 0.0
        %732 = vmatpush.msra.mxu0 0.0
        %733 = vmatpush.msra.mxu0 0.0
        %734 = vmatpush.msra.mxu0 0.0
        %735 = vmatpush.msra.mxu0 0.0
        %736 = vmatpush.msra.mxu0 0.0
        %737 = vmatpush.msra.mxu0 0.0
        %738 = vmatpush.msra.mxu0 0.0
        %739 = vmatpush.msra.mxu0 0.0
        %740 = vmatpush.msra.mxu0 %v666
        %741 = vmatpush.msra.mxu0 %v493
        %742 = vmatpush.msra.mxu0 %v489
        %743 = vmatpush.msra.mxu0 %v485
        %744 = vmatmul.f32.gmra.mxu0 %v654
        %v745 = vpop.f32.mrf.mxu0
        %v746 = vadd.f32 %v636, %v745
        %747 = vdwg.mxu0
        %v748 = vld [vmem:[%s401 + $0x2] sm:$0x1]
        %v749 = vld [vmem:[%s401 + $0x6] sm:$0x1]
        %v750 = vld [vmem:[%s401 + $0xa] sm:$0x1]
        %v751 = vld [vmem:[%s401 + $0xe] sm:$0x1]
        %v752 = vld [vmem:[%s401 + $0x12] sm:$0x1]
        %v753 = vld [vmem:[%s401 + $0x16] sm:$0x1]
        %s754 = scalar_lea.vmem [#allocation5], 256
        %v755 = vld [vmem:[%s754] sm:$0xff]
        %v756 = vld [vmem:[%s754 + $0x8] sm:$0xff]
        %v757 = vld [vmem:[%s754 + $0x10] sm:$0xff]
        %v758 = vld [vmem:[%s754 + $0x18] sm:$0xff]
        %v759 = vld [vmem:[%s754 + $0x20] sm:$0xff]
        %v760 = vld [vmem:[%s754 + $0x28] sm:$0xff]
        %v761 = vld [vmem:[%s754 + $0x30] sm:$0xff]
        %v762 = vld [vmem:[%s754 + $0x38] sm:$0xff]
        %v763 = vld [vmem:[%s754 + $0x40] sm:$0xff]
        %v764 = vld [vmem:[%s754 + $0x48] sm:$0xff]
        %v765 = vld [vmem:[%s754 + $0x50] sm:$0xff]
        %v766 = vld [vmem:[%s754 + $0x58] sm:$0xff]
        %v767 = vld [vmem:[%s754 + $0x60] sm:$0xf]
        %v768 = vld [vmem:[%s754 + $0x68] sm:$0xf]
        %v769 = vld [vmem:[%s754 + $0x70] sm:$0xf]
        %v770 = vld [vmem:[%s754 + $0x78] sm:$0xf]
        %v777 = vrot.slane %v749, 7
        %v778 = vsel %vm528, %v777, %v748
        %v779 = vrot.slane %v750, 6
        %v780 = vsel %vm531, %v779, %v778
        %v781 = vrot.slane %v751, 5
        %v782 = vsel %vm534, %v781, %v780
        %v783 = vrot.slane %v752, 4
        %v784 = vsel %vm537, %v783, %v782
        %v785 = vrot.slane %v753, 3
        %v786 = vsel %vm540, %v785, %v784
        %v787 = vsel %vm542, %v786, 0
        %v790 = vsel %vm545, %v767, 0
        %v793 = vsel %vm545, %v768, 0
        %v796 = vsel %vm545, %v769, 0
        %v799 = vsel %vm545, %v770, 0
        %801 = vmatpush.msra.mxu0 0.0
        %802 = vmatpush.msra.mxu0 0.0
        %803 = vmatpush.msra.mxu0 0.0
        %804 = vmatpush.msra.mxu0 0.0
        %805 = vmatpush.msra.mxu0 0.0
        %806 = vmatpush.msra.mxu0 0.0
        %807 = vmatpush.msra.mxu0 0.0
        %808 = vmatpush.msra.mxu0 0.0
        %809 = vmatpush.msra.mxu0 0.0
        %810 = vmatpush.msra.mxu0 0.0
        %811 = vmatpush.msra.mxu0 0.0
        %812 = vmatpush.msra.mxu0 0.0
        %813 = vmatpush.msra.mxu0 %v790
        %814 = vmatpush.msra.mxu0 %v763
        %815 = vmatpush.msra.mxu0 %v759
        %816 = vmatpush.msra.mxu0 %v755
        %817 = vmatmul.f32.gmra.mxu0 %v787
        %v818 = vpop.f32.mrf.mxu0
        %v819 = vadd.f32 0.0, %v818
        %820 = vdwg.mxu0
        %821 = vmatpush.msra.mxu0 0.0
        %822 = vmatpush.msra.mxu0 0.0
        %823 = vmatpush.msra.mxu0 0.0
        %824 = vmatpush.msra.mxu0 0.0
        %825 = vmatpush.msra.mxu0 0.0
        %826 = vmatpush.msra.mxu0 0.0
        %827 = vmatpush.msra.mxu0 0.0
        %828 = vmatpush.msra.mxu0 0.0
        %829 = vmatpush.msra.mxu0 0.0
        %830 = vmatpush.msra.mxu0 0.0
        %831 = vmatpush.msra.mxu0 0.0
        %832 = vmatpush.msra.mxu0 0.0
        %833 = vmatpush.msra.mxu0 %v793
        %834 = vmatpush.msra.mxu0 %v764
        %835 = vmatpush.msra.mxu0 %v760
        %836 = vmatpush.msra.mxu0 %v756
        %837 = vmatmul.f32.gmra.mxu0 %v787
        %v838 = vpop.f32.mrf.mxu0
        %v839 = vadd.f32 0.0, %v838
        %840 = vdwg.mxu0
        %841 = vmatpush.msra.mxu0 0.0
        %842 = vmatpush.msra.mxu0 0.0
        %843 = vmatpush.msra.mxu0 0.0
        %844 = vmatpush.msra.mxu0 0.0
        %845 = vmatpush.msra.mxu0 0.0
        %846 = vmatpush.msra.mxu0 0.0
        %847 = vmatpush.msra.mxu0 0.0
        %848 = vmatpush.msra.mxu0 0.0
        %849 = vmatpush.msra.mxu0 0.0
        %850 = vmatpush.msra.mxu0 0.0
        %851 = vmatpush.msra.mxu0 0.0
        %852 = vmatpush.msra.mxu0 0.0
        %853 = vmatpush.msra.mxu0 %v796
        %854 = vmatpush.msra.mxu0 %v765
        %855 = vmatpush.msra.mxu0 %v761
        %856 = vmatpush.msra.mxu0 %v757
        %857 = vmatmul.f32.gmra.mxu0 %v787
        %v858 = vpop.f32.mrf.mxu0
        %v859 = vadd.f32 0.0, %v858
        %860 = vdwg.mxu0
        %861 = vmatpush.msra.mxu0 0.0
        %862 = vmatpush.msra.mxu0 0.0
        %863 = vmatpush.msra.mxu0 0.0
        %864 = vmatpush.msra.mxu0 0.0
        %865 = vmatpush.msra.mxu0 0.0
        %866 = vmatpush.msra.mxu0 0.0
        %867 = vmatpush.msra.mxu0 0.0
        %868 = vmatpush.msra.mxu0 0.0
        %869 = vmatpush.msra.mxu0 0.0
        %870 = vmatpush.msra.mxu0 0.0
        %871 = vmatpush.msra.mxu0 0.0
        %872 = vmatpush.msra.mxu0 0.0
        %873 = vmatpush.msra.mxu0 %v799
        %874 = vmatpush.msra.mxu0 %v766
        %875 = vmatpush.msra.mxu0 %v762
        %876 = vmatpush.msra.mxu0 %v758
        %877 = vmatmul.f32.gmra.mxu0 %v787
        %v878 = vpop.f32.mrf.mxu0
        %v879 = vadd.f32 0.0, %v878
        %880 = vdwg.mxu0
        %v881 = vadd.f32 %v686, %v819
        %v882 = vadd.f32 %v706, %v839
        %v883 = vadd.f32 %v726, %v859
        %v884 = vadd.f32 %v746, %v879
        %v885 = vld [vmem:[%s401 + $0x3] sm:$0x1]
        %v886 = vld [vmem:[%s401 + $0x7] sm:$0x1]
        %v887 = vld [vmem:[%s401 + $0xb] sm:$0x1]
        %v888 = vld [vmem:[%s401 + $0xf] sm:$0x1]
        %v889 = vld [vmem:[%s401 + $0x13] sm:$0x1]
        %v890 = vld [vmem:[%s401 + $0x17] sm:$0x1]
        %s891 = scalar_lea.vmem [#allocation5], 384
        %v892 = vld [vmem:[%s891] sm:$0xff]
        %v893 = vld [vmem:[%s891 + $0x8] sm:$0xff]
        %v894 = vld [vmem:[%s891 + $0x10] sm:$0xff]
        %v895 = vld [vmem:[%s891 + $0x18] sm:$0xff]
        %v896 = vld [vmem:[%s891 + $0x20] sm:$0xff]
        %v897 = vld [vmem:[%s891 + $0x28] sm:$0xff]
        %v898 = vld [vmem:[%s891 + $0x30] sm:$0xff]
        %v899 = vld [vmem:[%s891 + $0x38] sm:$0xff]
        %v900 = vld [vmem:[%s891 + $0x40] sm:$0xff]
        %v901 = vld [vmem:[%s891 + $0x48] sm:$0xff]
        %v902 = vld [vmem:[%s891 + $0x50] sm:$0xff]
        %v903 = vld [vmem:[%s891 + $0x58] sm:$0xff]
        %v904 = vld [vmem:[%s891 + $0x60] sm:$0xf]
        %v905 = vld [vmem:[%s891 + $0x68] sm:$0xf]
        %v906 = vld [vmem:[%s891 + $0x70] sm:$0xf]
        %v907 = vld [vmem:[%s891 + $0x78] sm:$0xf]
        %v914 = vrot.slane %v886, 7
        %v915 = vsel %vm528, %v914, %v885
        %v916 = vrot.slane %v887, 6
        %v917 = vsel %vm531, %v916, %v915
        %v918 = vrot.slane %v888, 5
        %v919 = vsel %vm534, %v918, %v917
        %v920 = vrot.slane %v889, 4
        %v921 = vsel %vm537, %v920, %v919
        %v922 = vrot.slane %v890, 3
        %v923 = vsel %vm540, %v922, %v921
        %v924 = vsel %vm542, %v923, 0
        %v927 = vsel %vm545, %v904, 0
        %v930 = vsel %vm545, %v905, 0
        %v933 = vsel %vm545, %v906, 0
        %v936 = vsel %vm545, %v907, 0
        %938 = vmatpush.msra.mxu0 0.0
        %939 = vmatpush.msra.mxu0 0.0
        %940 = vmatpush.msra.mxu0 0.0
        %941 = vmatpush.msra.mxu0 0.0
        %942 = vmatpush.msra.mxu0 0.0
        %943 = vmatpush.msra.mxu0 0.0
        %944 = vmatpush.msra.mxu0 0.0
        %945 = vmatpush.msra.mxu0 0.0
        %946 = vmatpush.msra.mxu0 0.0
        %947 = vmatpush.msra.mxu0 0.0
        %948 = vmatpush.msra.mxu0 0.0
        %949 = vmatpush.msra.mxu0 0.0
        %950 = vmatpush.msra.mxu0 %v927
        %951 = vmatpush.msra.mxu0 %v900
        %952 = vmatpush.msra.mxu0 %v896
        %953 = vmatpush.msra.mxu0 %v892
        %954 = vmatmul.f32.gmra.mxu0 %v924
        %v955 = vpop.f32.mrf.mxu0
        %v956 = vadd.f32 0.0, %v955
        %957 = vdwg.mxu0
        %958 = vmatpush.msra.mxu0 0.0
        %959 = vmatpush.msra.mxu0 0.0
        %960 = vmatpush.msra.mxu0 0.0
        %961 = vmatpush.msra.mxu0 0.0
        %962 = vmatpush.msra.mxu0 0.0
        %963 = vmatpush.msra.mxu0 0.0
        %964 = vmatpush.msra.mxu0 0.0
        %965 = vmatpush.msra.mxu0 0.0
        %966 = vmatpush.msra.mxu0 0.0
        %967 = vmatpush.msra.mxu0 0.0
        %968 = vmatpush.msra.mxu0 0.0
        %969 = vmatpush.msra.mxu0 0.0
        %970 = vmatpush.msra.mxu0 %v930
        %971 = vmatpush.msra.mxu0 %v901
        %972 = vmatpush.msra.mxu0 %v897
        %973 = vmatpush.msra.mxu0 %v893
        %974 = vmatmul.f32.gmra.mxu0 %v924
        %v975 = vpop.f32.mrf.mxu0
        %v976 = vadd.f32 0.0, %v975
        %977 = vdwg.mxu0
        %978 = vmatpush.msra.mxu0 0.0
        %979 = vmatpush.msra.mxu0 0.0
        %980 = vmatpush.msra.mxu0 0.0
        %981 = vmatpush.msra.mxu0 0.0
        %982 = vmatpush.msra.mxu0 0.0
        %983 = vmatpush.msra.mxu0 0.0
        %984 = vmatpush.msra.mxu0 0.0
        %985 = vmatpush.msra.mxu0 0.0
        %986 = vmatpush.msra.mxu0 0.0
        %987 = vmatpush.msra.mxu0 0.0
        %988 = vmatpush.msra.mxu0 0.0
        %989 = vmatpush.msra.mxu0 0.0
        %990 = vmatpush.msra.mxu0 %v933
        %991 = vmatpush.msra.mxu0 %v902
        %992 = vmatpush.msra.mxu0 %v898
        %993 = vmatpush.msra.mxu0 %v894
        %994 = vmatmul.f32.gmra.mxu0 %v924
        %v995 = vpop.f32.mrf.mxu0
        %v996 = vadd.f32 0.0, %v995
        %997 = vdwg.mxu0
        %998 = vmatpush.msra.mxu0 0.0
        %999 = vmatpush.msra.mxu0 0.0
        %1000 = vmatpush.msra.mxu0 0.0
        %1001 = vmatpush.msra.mxu0 0.0
        %1002 = vmatpush.msra.mxu0 0.0
        %1003 = vmatpush.msra.mxu0 0.0
        %1004 = vmatpush.msra.mxu0 0.0
        %1005 = vmatpush.msra.mxu0 0.0
        %1006 = vmatpush.msra.mxu0 0.0
        %1007 = vmatpush.msra.mxu0 0.0
        %1008 = vmatpush.msra.mxu0 0.0
        %1009 = vmatpush.msra.mxu0 0.0
        %1010 = vmatpush.msra.mxu0 %v936
        %1011 = vmatpush.msra.mxu0 %v903
        %1012 = vmatpush.msra.mxu0 %v899
        %1013 = vmatpush.msra.mxu0 %v895
        %1014 = vmatmul.f32.gmra.mxu0 %v924
        %v1015 = vpop.f32.mrf.mxu0
        %v1016 = vadd.f32 0.0, %v1015
        %1017 = vdwg.mxu0
        %v1018 = vadd.f32 %v881, %v956
        %v1019 = vadd.f32 %v882, %v976
        %v1020 = vadd.f32 %v883, %v996
        %v1021 = vadd.f32 %v884, %v1016
        %s1022 = scalar_lea.vmem %s401, 4 [#allocation2]
        %v1023 = vld [vmem:[%s1022] sm:$0x1]
        %v1024 = vld [vmem:[%s1022 + $0x4] sm:$0x1]
        %v1025 = vld [vmem:[%s1022 + $0x8] sm:$0x1]
        %v1026 = vld [vmem:[%s1022 + $0xc] sm:$0x1]
        %v1027 = vld [vmem:[%s1022 + $0x10] sm:$0x1]
        %v1028 = vld [vmem:[%s1022 + $0x14] sm:$0x1]
        %s1029 = scalar_lea.vmem [#allocation5], 512
        %v1030 = vld [vmem:[%s1029] sm:$0xff]
        %v1031 = vld [vmem:[%s1029 + $0x8] sm:$0xff]
        %v1032 = vld [vmem:[%s1029 + $0x10] sm:$0xff]
        %v1033 = vld [vmem:[%s1029 + $0x18] sm:$0xff]
        %v1034 = vld [vmem:[%s1029 + $0x20] sm:$0xff]
        %v1035 = vld [vmem:[%s1029 + $0x28] sm:$0xff]
        %v1036 = vld [vmem:[%s1029 + $0x30] sm:$0xff]
        %v1037 = vld [vmem:[%s1029 + $0x38] sm:$0xff]
        %v1038 = vld [vmem:[%s1029 + $0x40] sm:$0xff]
        %v1039 = vld [vmem:[%s1029 + $0x48] sm:$0xff]
        %v1040 = vld [vmem:[%s1029 + $0x50] sm:$0xff]
        %v1041 = vld [vmem:[%s1029 + $0x58] sm:$0xff]
        %v1042 = vld [vmem:[%s1029 + $0x60] sm:$0xf]
        %v1043 = vld [vmem:[%s1029 + $0x68] sm:$0xf]
        %v1044 = vld [vmem:[%s1029 + $0x70] sm:$0xf]
        %v1045 = vld [vmem:[%s1029 + $0x78] sm:$0xf]
        %v1052 = vrot.slane %v1024, 7
        %v1053 = vsel %vm528, %v1052, %v1023
        %v1054 = vrot.slane %v1025, 6
        %v1055 = vsel %vm531, %v1054, %v1053
        %v1056 = vrot.slane %v1026, 5
        %v1057 = vsel %vm534, %v1056, %v1055
        %v1058 = vrot.slane %v1027, 4
        %v1059 = vsel %vm537, %v1058, %v1057
        %v1060 = vrot.slane %v1028, 3
        %v1061 = vsel %vm540, %v1060, %v1059
        %v1062 = vsel %vm542, %v1061, 0
        %v1065 = vsel %vm545, %v1042, 0
        %v1068 = vsel %vm545, %v1043, 0
        %v1071 = vsel %vm545, %v1044, 0
        %v1074 = vsel %vm545, %v1045, 0
        %1076 = vmatpush.msra.mxu0 0.0
        %1077 = vmatpush.msra.mxu0 0.0
        %1078 = vmatpush.msra.mxu0 0.0
        %1079 = vmatpush.msra.mxu0 0.0
        %1080 = vmatpush.msra.mxu0 0.0
        %1081 = vmatpush.msra.mxu0 0.0
        %1082 = vmatpush.msra.mxu0 0.0
        %1083 = vmatpush.msra.mxu0 0.0
        %1084 = vmatpush.msra.mxu0 0.0
        %1085 = vmatpush.msra.mxu0 0.0
        %1086 = vmatpush.msra.mxu0 0.0
        %1087 = vmatpush.msra.mxu0 0.0
        %1088 = vmatpush.msra.mxu0 %v1065
        %1089 = vmatpush.msra.mxu0 %v1038
        %1090 = vmatpush.msra.mxu0 %v1034
        %1091 = vmatpush.msra.mxu0 %v1030
        %1092 = vmatmul.f32.gmra.mxu0 %v1062
        %v1093 = vpop.f32.mrf.mxu0
        %v1094 = vadd.f32 0.0, %v1093
        %1095 = vdwg.mxu0
        %1096 = vmatpush.msra.mxu0 0.0
        %1097 = vmatpush.msra.mxu0 0.0
        %1098 = vmatpush.msra.mxu0 0.0
        %1099 = vmatpush.msra.mxu0 0.0
        %1100 = vmatpush.msra.mxu0 0.0
        %1101 = vmatpush.msra.mxu0 0.0
        %1102 = vmatpush.msra.mxu0 0.0
        %1103 = vmatpush.msra.mxu0 0.0
        %1104 = vmatpush.msra.mxu0 0.0
        %1105 = vmatpush.msra.mxu0 0.0
        %1106 = vmatpush.msra.mxu0 0.0
        %1107 = vmatpush.msra.mxu0 0.0
        %1108 = vmatpush.msra.mxu0 %v1068
        %1109 = vmatpush.msra.mxu0 %v1039
        %1110 = vmatpush.msra.mxu0 %v1035
        %1111 = vmatpush.msra.mxu0 %v1031
        %1112 = vmatmul.f32.gmra.mxu0 %v1062
        %v1113 = vpop.f32.mrf.mxu0
        %v1114 = vadd.f32 0.0, %v1113
        %1115 = vdwg.mxu0
        %1116 = vmatpush.msra.mxu0 0.0
        %1117 = vmatpush.msra.mxu0 0.0
        %1118 = vmatpush.msra.mxu0 0.0
        %1119 = vmatpush.msra.mxu0 0.0
        %1120 = vmatpush.msra.mxu0 0.0
        %1121 = vmatpush.msra.mxu0 0.0
        %1122 = vmatpush.msra.mxu0 0.0
        %1123 = vmatpush.msra.mxu0 0.0
        %1124 = vmatpush.msra.mxu0 0.0
        %1125 = vmatpush.msra.mxu0 0.0
        %1126 = vmatpush.msra.mxu0 0.0
        %1127 = vmatpush.msra.mxu0 0.0
        %1128 = vmatpush.msra.mxu0 %v1071
        %1129 = vmatpush.msra.mxu0 %v1040
        %1130 = vmatpush.msra.mxu0 %v1036
        %1131 = vmatpush.msra.mxu0 %v1032
        %1132 = vmatmul.f32.gmra.mxu0 %v1062
        %v1133 = vpop.f32.mrf.mxu0
        %v1134 = vadd.f32 0.0, %v1133
        %1135 = vdwg.mxu0
        %1136 = vmatpush.msra.mxu0 0.0
        %1137 = vmatpush.msra.mxu0 0.0
        %1138 = vmatpush.msra.mxu0 0.0
        %1139 = vmatpush.msra.mxu0 0.0
        %1140 = vmatpush.msra.mxu0 0.0
        %1141 = vmatpush.msra.mxu0 0.0
        %1142 = vmatpush.msra.mxu0 0.0
        %1143 = vmatpush.msra.mxu0 0.0
        %1144 = vmatpush.msra.mxu0 0.0
        %1145 = vmatpush.msra.mxu0 0.0
        %1146 = vmatpush.msra.mxu0 0.0
        %1147 = vmatpush.msra.mxu0 0.0
        %1148 = vmatpush.msra.mxu0 %v1074
        %1149 = vmatpush.msra.mxu0 %v1041
        %1150 = vmatpush.msra.mxu0 %v1037
        %1151 = vmatpush.msra.mxu0 %v1033
        %1152 = vmatmul.f32.gmra.mxu0 %v1062
        %v1153 = vpop.f32.mrf.mxu0
        %v1154 = vadd.f32 0.0, %v1153
        %1155 = vdwg.mxu0
        %v1156 = vadd.f32 %v1018, %v1094
        %v1157 = vadd.f32 %v1019, %v1114
        %v1158 = vadd.f32 %v1020, %v1134
        %v1159 = vadd.f32 %v1021, %v1154
        %1160 = vmatpush.msra.mxu0 0.0
        %1161 = vmatpush.msra.mxu0 0.0
        %1162 = vmatpush.msra.mxu0 0.0
        %1163 = vmatpush.msra.mxu0 0.0
        %1164 = vmatpush.msra.mxu0 0.0
        %1165 = vmatpush.msra.mxu0 0.0
        %1166 = vmatpush.msra.mxu0 0.0
        %1167 = vmatpush.msra.mxu0 0.0
        %1168 = vmatpush.msra.mxu0 0.0
        %1169 = vmatpush.msra.mxu0 0.0
        %1170 = vmatpush.msra.mxu0 0.0
        %1171 = vmatpush.msra.mxu0 0.0
        %1172 = vmatpush.msra.mxu0 %v547
        %1173 = vmatpush.msra.mxu0 %v513
        %1174 = vmatpush.msra.mxu0 %v509
        %1175 = vmatpush.msra.mxu0 %v505
        %1176 = vmatmul.f32.gmra.mxu0 %v787
        %v1177 = vpop.f32.mrf.mxu0
        %v1178 = vadd.f32 0.0, %v1177
        %1179 = vdwg.mxu0
        %1180 = vmatpush.msra.mxu0 0.0
        %1181 = vmatpush.msra.mxu0 0.0
        %1182 = vmatpush.msra.mxu0 0.0
        %1183 = vmatpush.msra.mxu0 0.0
        %1184 = vmatpush.msra.mxu0 0.0
        %1185 = vmatpush.msra.mxu0 0.0
        %1186 = vmatpush.msra.mxu0 0.0
        %1187 = vmatpush.msra.mxu0 0.0
        %1188 = vmatpush.msra.mxu0 0.0
        %1189 = vmatpush.msra.mxu0 0.0
        %1190 = vmatpush.msra.mxu0 0.0
        %1191 = vmatpush.msra.mxu0 0.0
        %1192 = vmatpush.msra.mxu0 %v550
        %1193 = vmatpush.msra.mxu0 %v514
        %1194 = vmatpush.msra.mxu0 %v510
        %1195 = vmatpush.msra.mxu0 %v506
        %1196 = vmatmul.f32.gmra.mxu0 %v787
        %v1197 = vpop.f32.mrf.mxu0
        %v1198 = vadd.f32 0.0, %v1197
        %1199 = vdwg.mxu0
        %1200 = vmatpush.msra.mxu0 0.0
        %1201 = vmatpush.msra.mxu0 0.0
        %1202 = vmatpush.msra.mxu0 0.0
        %1203 = vmatpush.msra.mxu0 0.0
        %1204 = vmatpush.msra.mxu0 0.0
        %1205 = vmatpush.msra.mxu0 0.0
        %1206 = vmatpush.msra.mxu0 0.0
        %1207 = vmatpush.msra.mxu0 0.0
        %1208 = vmatpush.msra.mxu0 0.0
        %1209 = vmatpush.msra.mxu0 0.0
        %1210 = vmatpush.msra.mxu0 0.0
        %1211 = vmatpush.msra.mxu0 0.0
        %1212 = vmatpush.msra.mxu0 %v553
        %1213 = vmatpush.msra.mxu0 %v515
        %1214 = vmatpush.msra.mxu0 %v511
        %1215 = vmatpush.msra.mxu0 %v507
        %1216 = vmatmul.f32.gmra.mxu0 %v787
        %v1217 = vpop.f32.mrf.mxu0
        %v1218 = vadd.f32 0.0, %v1217
        %1219 = vdwg.mxu0
        %1220 = vmatpush.msra.mxu0 0.0
        %1221 = vmatpush.msra.mxu0 0.0
        %1222 = vmatpush.msra.mxu0 0.0
        %1223 = vmatpush.msra.mxu0 0.0
        %1224 = vmatpush.msra.mxu0 0.0
        %1225 = vmatpush.msra.mxu0 0.0
        %1226 = vmatpush.msra.mxu0 0.0
        %1227 = vmatpush.msra.mxu0 0.0
        %1228 = vmatpush.msra.mxu0 0.0
        %1229 = vmatpush.msra.mxu0 0.0
        %1230 = vmatpush.msra.mxu0 0.0
        %1231 = vmatpush.msra.mxu0 0.0
        %1232 = vmatpush.msra.mxu0 %v556
        %1233 = vmatpush.msra.mxu0 %v516
        %1234 = vmatpush.msra.mxu0 %v512
        %1235 = vmatpush.msra.mxu0 %v508
        %1236 = vmatmul.f32.gmra.mxu0 %v787
        %v1237 = vpop.f32.mrf.mxu0
        %v1238 = vadd.f32 0.0, %v1237
        %1239 = vdwg.mxu0
        %1240 = vmatpush.msra.mxu0 0.0
        %1241 = vmatpush.msra.mxu0 0.0
        %1242 = vmatpush.msra.mxu0 0.0
        %1243 = vmatpush.msra.mxu0 0.0
        %1244 = vmatpush.msra.mxu0 0.0
        %1245 = vmatpush.msra.mxu0 0.0
        %1246 = vmatpush.msra.mxu0 0.0
        %1247 = vmatpush.msra.mxu0 0.0
        %1248 = vmatpush.msra.mxu0 0.0
        %1249 = vmatpush.msra.mxu0 0.0
        %1250 = vmatpush.msra.mxu0 0.0
        %1251 = vmatpush.msra.mxu0 0.0
        %1252 = vmatpush.msra.mxu0 %v657
        %1253 = vmatpush.msra.mxu0 %v490
        %1254 = vmatpush.msra.mxu0 %v486
        %1255 = vmatpush.msra.mxu0 %v482
        %1256 = vmatmul.f32.gmra.mxu0 %v543
        %v1257 = vpop.f32.mrf.mxu0
        %v1258 = vadd.f32 %v1178, %v1257
        %1259 = vdwg.mxu0
        %1260 = vmatpush.msra.mxu0 0.0
        %1261 = vmatpush.msra.mxu0 0.0
        %1262 = vmatpush.msra.mxu0 0.0
        %1263 = vmatpush.msra.mxu0 0.0
        %1264 = vmatpush.msra.mxu0 0.0
        %1265 = vmatpush.msra.mxu0 0.0
        %1266 = vmatpush.msra.mxu0 0.0
        %1267 = vmatpush.msra.mxu0 0.0
        %1268 = vmatpush.msra.mxu0 0.0
        %1269 = vmatpush.msra.mxu0 0.0
        %1270 = vmatpush.msra.mxu0 0.0
        %1271 = vmatpush.msra.mxu0 0.0
        %1272 = vmatpush.msra.mxu0 %v660
        %1273 = vmatpush.msra.mxu0 %v491
        %1274 = vmatpush.msra.mxu0 %v487
        %1275 = vmatpush.msra.mxu0 %v483
        %1276 = vmatmul.f32.gmra.mxu0 %v543
        %v1277 = vpop.f32.mrf.mxu0
        %v1278 = vadd.f32 %v1198, %v1277
        %1279 = vdwg.mxu0
        %1280 = vmatpush.msra.mxu0 0.0
        %1281 = vmatpush.msra.mxu0 0.0
        %1282 = vmatpush.msra.mxu0 0.0
        %1283 = vmatpush.msra.mxu0 0.0
        %1284 = vmatpush.msra.mxu0 0.0
        %1285 = vmatpush.msra.mxu0 0.0
        %1286 = vmatpush.msra.mxu0 0.0
        %1287 = vmatpush.msra.mxu0 0.0
        %1288 = vmatpush.msra.mxu0 0.0
        %1289 = vmatpush.msra.mxu0 0.0
        %1290 = vmatpush.msra.mxu0 0.0
        %1291 = vmatpush.msra.mxu0 0.0
        %1292 = vmatpush.msra.mxu0 %v663
        %1293 = vmatpush.msra.mxu0 %v492
        %1294 = vmatpush.msra.mxu0 %v488
        %1295 = vmatpush.msra.mxu0 %v484
        %1296 = vmatmul.f32.gmra.mxu0 %v543
        %v1297 = vpop.f32.mrf.mxu0
        %v1298 = vadd.f32 %v1218, %v1297
        %1299 = vdwg.mxu0
        %1300 = vmatpush.msra.mxu0 0.0
        %1301 = vmatpush.msra.mxu0 0.0
        %1302 = vmatpush.msra.mxu0 0.0
        %1303 = vmatpush.msra.mxu0 0.0
        %1304 = vmatpush.msra.mxu0 0.0
        %1305 = vmatpush.msra.mxu0 0.0
        %1306 = vmatpush.msra.mxu0 0.0
        %1307 = vmatpush.msra.mxu0 0.0
        %1308 = vmatpush.msra.mxu0 0.0
        %1309 = vmatpush.msra.mxu0 0.0
        %1310 = vmatpush.msra.mxu0 0.0
        %1311 = vmatpush.msra.mxu0 0.0
        %1312 = vmatpush.msra.mxu0 %v666
        %1313 = vmatpush.msra.mxu0 %v493
        %1314 = vmatpush.msra.mxu0 %v489
        %1315 = vmatpush.msra.mxu0 %v485
        %1316 = vmatmul.f32.gmra.mxu0 %v543
        %v1317 = vpop.f32.mrf.mxu0
        %v1318 = vadd.f32 %v1238, %v1317
        %1319 = vdwg.mxu0
        %1320 = vmatpush.msra.mxu0 0.0
        %1321 = vmatpush.msra.mxu0 0.0
        %1322 = vmatpush.msra.mxu0 0.0
        %1323 = vmatpush.msra.mxu0 0.0
        %1324 = vmatpush.msra.mxu0 0.0
        %1325 = vmatpush.msra.mxu0 0.0
        %1326 = vmatpush.msra.mxu0 0.0
        %1327 = vmatpush.msra.mxu0 0.0
        %1328 = vmatpush.msra.mxu0 0.0
        %1329 = vmatpush.msra.mxu0 0.0
        %1330 = vmatpush.msra.mxu0 0.0
        %1331 = vmatpush.msra.mxu0 0.0
        %1332 = vmatpush.msra.mxu0 %v790
        %1333 = vmatpush.msra.mxu0 %v763
        %1334 = vmatpush.msra.mxu0 %v759
        %1335 = vmatpush.msra.mxu0 %v755
        %1336 = vmatmul.f32.gmra.mxu0 %v924
        %v1337 = vpop.f32.mrf.mxu0
        %v1338 = vadd.f32 0.0, %v1337
        %1339 = vdwg.mxu0
        %1340 = vmatpush.msra.mxu0 0.0
        %1341 = vmatpush.msra.mxu0 0.0
        %1342 = vmatpush.msra.mxu0 0.0
        %1343 = vmatpush.msra.mxu0 0.0
        %1344 = vmatpush.msra.mxu0 0.0
        %1345 = vmatpush.msra.mxu0 0.0
        %1346 = vmatpush.msra.mxu0 0.0
        %1347 = vmatpush.msra.mxu0 0.0
        %1348 = vmatpush.msra.mxu0 0.0
        %1349 = vmatpush.msra.mxu0 0.0
        %1350 = vmatpush.msra.mxu0 0.0
        %1351 = vmatpush.msra.mxu0 0.0
        %1352 = vmatpush.msra.mxu0 %v793
        %1353 = vmatpush.msra.mxu0 %v764
        %1354 = vmatpush.msra.mxu0 %v760
        %1355 = vmatpush.msra.mxu0 %v756
        %1356 = vmatmul.f32.gmra.mxu0 %v924
        %v1357 = vpop.f32.mrf.mxu0
        %v1358 = vadd.f32 0.0, %v1357
        %1359 = vdwg.mxu0
        %1360 = vmatpush.msra.mxu0 0.0
        %1361 = vmatpush.msra.mxu0 0.0
        %1362 = vmatpush.msra.mxu0 0.0
        %1363 = vmatpush.msra.mxu0 0.0
        %1364 = vmatpush.msra.mxu0 0.0
        %1365 = vmatpush.msra.mxu0 0.0
        %1366 = vmatpush.msra.mxu0 0.0
        %1367 = vmatpush.msra.mxu0 0.0
        %1368 = vmatpush.msra.mxu0 0.0
        %1369 = vmatpush.msra.mxu0 0.0
        %1370 = vmatpush.msra.mxu0 0.0
        %1371 = vmatpush.msra.mxu0 0.0
        %1372 = vmatpush.msra.mxu0 %v796
        %1373 = vmatpush.msra.mxu0 %v765
        %1374 = vmatpush.msra.mxu0 %v761
        %1375 = vmatpush.msra.mxu0 %v757
        %1376 = vmatmul.f32.gmra.mxu0 %v924
        %v1377 = vpop.f32.mrf.mxu0
        %v1378 = vadd.f32 0.0, %v1377
        %1379 = vdwg.mxu0
        %1380 = vmatpush.msra.mxu0 0.0
        %1381 = vmatpush.msra.mxu0 0.0
        %1382 = vmatpush.msra.mxu0 0.0
        %1383 = vmatpush.msra.mxu0 0.0
        %1384 = vmatpush.msra.mxu0 0.0
        %1385 = vmatpush.msra.mxu0 0.0
        %1386 = vmatpush.msra.mxu0 0.0
        %1387 = vmatpush.msra.mxu0 0.0
        %1388 = vmatpush.msra.mxu0 0.0
        %1389 = vmatpush.msra.mxu0 0.0
        %1390 = vmatpush.msra.mxu0 0.0
        %1391 = vmatpush.msra.mxu0 0.0
        %1392 = vmatpush.msra.mxu0 %v799
        %1393 = vmatpush.msra.mxu0 %v766
        %1394 = vmatpush.msra.mxu0 %v762
        %1395 = vmatpush.msra.mxu0 %v758
        %1396 = vmatmul.f32.gmra.mxu0 %v924
        %v1397 = vpop.f32.mrf.mxu0
        %v1398 = vadd.f32 0.0, %v1397
        %1399 = vdwg.mxu0
        %v1400 = vadd.f32 %v1258, %v1338
        %v1401 = vadd.f32 %v1278, %v1358
        %v1402 = vadd.f32 %v1298, %v1378
        %v1403 = vadd.f32 %v1318, %v1398
        %1404 = vmatpush.msra.mxu0 0.0
        %1405 = vmatpush.msra.mxu0 0.0
        %1406 = vmatpush.msra.mxu0 0.0
        %1407 = vmatpush.msra.mxu0 0.0
        %1408 = vmatpush.msra.mxu0 0.0
        %1409 = vmatpush.msra.mxu0 0.0
        %1410 = vmatpush.msra.mxu0 0.0
        %1411 = vmatpush.msra.mxu0 0.0
        %1412 = vmatpush.msra.mxu0 0.0
        %1413 = vmatpush.msra.mxu0 0.0
        %1414 = vmatpush.msra.mxu0 0.0
        %1415 = vmatpush.msra.mxu0 0.0
        %1416 = vmatpush.msra.mxu0 %v927
        %1417 = vmatpush.msra.mxu0 %v900
        %1418 = vmatpush.msra.mxu0 %v896
        %1419 = vmatpush.msra.mxu0 %v892
        %1420 = vmatmul.f32.gmra.mxu0 %v1062
        %v1421 = vpop.f32.mrf.mxu0
        %v1422 = vadd.f32 0.0, %v1421
        %1423 = vdwg.mxu0
        %1424 = vmatpush.msra.mxu0 0.0
        %1425 = vmatpush.msra.mxu0 0.0
        %1426 = vmatpush.msra.mxu0 0.0
        %1427 = vmatpush.msra.mxu0 0.0
        %1428 = vmatpush.msra.mxu0 0.0
        %1429 = vmatpush.msra.mxu0 0.0
        %1430 = vmatpush.msra.mxu0 0.0
        %1431 = vmatpush.msra.mxu0 0.0
        %1432 = vmatpush.msra.mxu0 0.0
        %1433 = vmatpush.msra.mxu0 0.0
        %1434 = vmatpush.msra.mxu0 0.0
        %1435 = vmatpush.msra.mxu0 0.0
        %1436 = vmatpush.msra.mxu0 %v930
        %1437 = vmatpush.msra.mxu0 %v901
        %1438 = vmatpush.msra.mxu0 %v897
        %1439 = vmatpush.msra.mxu0 %v893
        %1440 = vmatmul.f32.gmra.mxu0 %v1062
        %v1441 = vpop.f32.mrf.mxu0
        %v1442 = vadd.f32 0.0, %v1441
        %1443 = vdwg.mxu0
        %1444 = vmatpush.msra.mxu0 0.0
        %1445 = vmatpush.msra.mxu0 0.0
        %1446 = vmatpush.msra.mxu0 0.0
        %1447 = vmatpush.msra.mxu0 0.0
        %1448 = vmatpush.msra.mxu0 0.0
        %1449 = vmatpush.msra.mxu0 0.0
        %1450 = vmatpush.msra.mxu0 0.0
        %1451 = vmatpush.msra.mxu0 0.0
        %1452 = vmatpush.msra.mxu0 0.0
        %1453 = vmatpush.msra.mxu0 0.0
        %1454 = vmatpush.msra.mxu0 0.0
        %1455 = vmatpush.msra.mxu0 0.0
        %1456 = vmatpush.msra.mxu0 %v933
        %1457 = vmatpush.msra.mxu0 %v902
        %1458 = vmatpush.msra.mxu0 %v898
        %1459 = vmatpush.msra.mxu0 %v894
        %1460 = vmatmul.f32.gmra.mxu0 %v1062
        %v1461 = vpop.f32.mrf.mxu0
        %v1462 = vadd.f32 0.0, %v1461
        %1463 = vdwg.mxu0
        %1464 = vmatpush.msra.mxu0 0.0
        %1465 = vmatpush.msra.mxu0 0.0
        %1466 = vmatpush.msra.mxu0 0.0
        %1467 = vmatpush.msra.mxu0 0.0
        %1468 = vmatpush.msra.mxu0 0.0
        %1469 = vmatpush.msra.mxu0 0.0
        %1470 = vmatpush.msra.mxu0 0.0
        %1471 = vmatpush.msra.mxu0 0.0
        %1472 = vmatpush.msra.mxu0 0.0
        %1473 = vmatpush.msra.mxu0 0.0
        %1474 = vmatpush.msra.mxu0 0.0
        %1475 = vmatpush.msra.mxu0 0.0
        %1476 = vmatpush.msra.mxu0 %v936
        %1477 = vmatpush.msra.mxu0 %v903
        %1478 = vmatpush.msra.mxu0 %v899
        %1479 = vmatpush.msra.mxu0 %v895
        %1480 = vmatmul.f32.gmra.mxu0 %v1062
        %v1481 = vpop.f32.mrf.mxu0
        %v1482 = vadd.f32 0.0, %v1481
        %1483 = vdwg.mxu0
        %v1484 = vadd.f32 %v1400, %v1422
        %v1485 = vadd.f32 %v1401, %v1442
        %v1486 = vadd.f32 %v1402, %v1462
        %v1487 = vadd.f32 %v1403, %v1482
        %v1488 = vld [vmem:[%s1022 + $0x1] sm:$0x1]
        %v1489 = vld [vmem:[%s1022 + $0x5] sm:$0x1]
        %v1490 = vld [vmem:[%s1022 + $0x9] sm:$0x1]
        %v1491 = vld [vmem:[%s1022 + $0xd] sm:$0x1]
        %v1492 = vld [vmem:[%s1022 + $0x11] sm:$0x1]
        %v1493 = vld [vmem:[%s1022 + $0x15] sm:$0x1]
        %v1500 = vrot.slane %v1489, 7
        %v1501 = vsel %vm528, %v1500, %v1488
        %v1502 = vrot.slane %v1490, 6
        %v1503 = vsel %vm531, %v1502, %v1501
        %v1504 = vrot.slane %v1491, 5
        %v1505 = vsel %vm534, %v1504, %v1503
        %v1506 = vrot.slane %v1492, 4
        %v1507 = vsel %vm537, %v1506, %v1505
        %v1508 = vrot.slane %v1493, 3
        %v1509 = vsel %vm540, %v1508, %v1507
        %v1510 = vsel %vm542, %v1509, 0
        %1512 = vmatpush.msra.mxu0 0.0
        %1513 = vmatpush.msra.mxu0 0.0
        %1514 = vmatpush.msra.mxu0 0.0
        %1515 = vmatpush.msra.mxu0 0.0
        %1516 = vmatpush.msra.mxu0 0.0
        %1517 = vmatpush.msra.mxu0 0.0
        %1518 = vmatpush.msra.mxu0 0.0
        %1519 = vmatpush.msra.mxu0 0.0
        %1520 = vmatpush.msra.mxu0 0.0
        %1521 = vmatpush.msra.mxu0 0.0
        %1522 = vmatpush.msra.mxu0 0.0
        %1523 = vmatpush.msra.mxu0 0.0
        %1524 = vmatpush.msra.mxu0 %v1065
        %1525 = vmatpush.msra.mxu0 %v1038
        %1526 = vmatpush.msra.mxu0 %v1034
        %1527 = vmatpush.msra.mxu0 %v1030
        %1528 = vmatmul.f32.gmra.mxu0 %v1510
        %v1529 = vpop.f32.mrf.mxu0
        %v1530 = vadd.f32 0.0, %v1529
        %1531 = vdwg.mxu0
        %1532 = vmatpush.msra.mxu0 0.0
        %1533 = vmatpush.msra.mxu0 0.0
        %1534 = vmatpush.msra.mxu0 0.0
        %1535 = vmatpush.msra.mxu0 0.0
        %1536 = vmatpush.msra.mxu0 0.0
        %1537 = vmatpush.msra.mxu0 0.0
        %1538 = vmatpush.msra.mxu0 0.0
        %1539 = vmatpush.msra.mxu0 0.0
        %1540 = vmatpush.msra.mxu0 0.0
        %1541 = vmatpush.msra.mxu0 0.0
        %1542 = vmatpush.msra.mxu0 0.0
        %1543 = vmatpush.msra.mxu0 0.0
        %1544 = vmatpush.msra.mxu0 %v1068
        %1545 = vmatpush.msra.mxu0 %v1039
        %1546 = vmatpush.msra.mxu0 %v1035
        %1547 = vmatpush.msra.mxu0 %v1031
        %1548 = vmatmul.f32.gmra.mxu0 %v1510
        %v1549 = vpop.f32.mrf.mxu0
        %v1550 = vadd.f32 0.0, %v1549
        %1551 = vdwg.mxu0
        %1552 = vmatpush.msra.mxu0 0.0
        %1553 = vmatpush.msra.mxu0 0.0
        %1554 = vmatpush.msra.mxu0 0.0
        %1555 = vmatpush.msra.mxu0 0.0
        %1556 = vmatpush.msra.mxu0 0.0
        %1557 = vmatpush.msra.mxu0 0.0
        %1558 = vmatpush.msra.mxu0 0.0
        %1559 = vmatpush.msra.mxu0 0.0
        %1560 = vmatpush.msra.mxu0 0.0
        %1561 = vmatpush.msra.mxu0 0.0
        %1562 = vmatpush.msra.mxu0 0.0
        %1563 = vmatpush.msra.mxu0 0.0
        %1564 = vmatpush.msra.mxu0 %v1071
        %1565 = vmatpush.msra.mxu0 %v1040
        %1566 = vmatpush.msra.mxu0 %v1036
        %1567 = vmatpush.msra.mxu0 %v1032
        %1568 = vmatmul.f32.gmra.mxu0 %v1510
        %v1569 = vpop.f32.mrf.mxu0
        %v1570 = vadd.f32 0.0, %v1569
        %1571 = vdwg.mxu0
        %1572 = vmatpush.msra.mxu0 0.0
        %1573 = vmatpush.msra.mxu0 0.0
        %1574 = vmatpush.msra.mxu0 0.0
        %1575 = vmatpush.msra.mxu0 0.0
        %1576 = vmatpush.msra.mxu0 0.0
        %1577 = vmatpush.msra.mxu0 0.0
        %1578 = vmatpush.msra.mxu0 0.0
        %1579 = vmatpush.msra.mxu0 0.0
        %1580 = vmatpush.msra.mxu0 0.0
        %1581 = vmatpush.msra.mxu0 0.0
        %1582 = vmatpush.msra.mxu0 0.0
        %1583 = vmatpush.msra.mxu0 0.0
        %1584 = vmatpush.msra.mxu0 %v1074
        %1585 = vmatpush.msra.mxu0 %v1041
        %1586 = vmatpush.msra.mxu0 %v1037
        %1587 = vmatpush.msra.mxu0 %v1033
        %1588 = vmatmul.f32.gmra.mxu0 %v1510
        %v1589 = vpop.f32.mrf.mxu0
        %v1590 = vadd.f32 0.0, %v1589
        %1591 = vdwg.mxu0
        %v1592 = vadd.f32 %v1484, %v1530
        %v1593 = vadd.f32 %v1485, %v1550
        %v1594 = vadd.f32 %v1486, %v1570
        %v1595 = vadd.f32 %v1487, %v1590
        %1596 = vmatpush.msra.mxu0 0.0
        %1597 = vmatpush.msra.mxu0 0.0
        %1598 = vmatpush.msra.mxu0 0.0
        %1599 = vmatpush.msra.mxu0 0.0
        %1600 = vmatpush.msra.mxu0 0.0
        %1601 = vmatpush.msra.mxu0 0.0
        %1602 = vmatpush.msra.mxu0 0.0
        %1603 = vmatpush.msra.mxu0 0.0
        %1604 = vmatpush.msra.mxu0 0.0
        %1605 = vmatpush.msra.mxu0 0.0
        %1606 = vmatpush.msra.mxu0 0.0
        %1607 = vmatpush.msra.mxu0 0.0
        %1608 = vmatpush.msra.mxu0 %v547
        %1609 = vmatpush.msra.mxu0 %v513
        %1610 = vmatpush.msra.mxu0 %v509
        %1611 = vmatpush.msra.mxu0 %v505
        %1612 = vmatmul.f32.gmra.mxu0 %v924
        %v1613 = vpop.f32.mrf.mxu0
        %v1614 = vadd.f32 0.0, %v1613
        %1615 = vdwg.mxu0
        %1616 = vmatpush.msra.mxu0 0.0
        %1617 = vmatpush.msra.mxu0 0.0
        %1618 = vmatpush.msra.mxu0 0.0
        %1619 = vmatpush.msra.mxu0 0.0
        %1620 = vmatpush.msra.mxu0 0.0
        %1621 = vmatpush.msra.mxu0 0.0
        %1622 = vmatpush.msra.mxu0 0.0
        %1623 = vmatpush.msra.mxu0 0.0
        %1624 = vmatpush.msra.mxu0 0.0
        %1625 = vmatpush.msra.mxu0 0.0
        %1626 = vmatpush.msra.mxu0 0.0
        %1627 = vmatpush.msra.mxu0 0.0
        %1628 = vmatpush.msra.mxu0 %v550
        %1629 = vmatpush.msra.mxu0 %v514
        %1630 = vmatpush.msra.mxu0 %v510
        %1631 = vmatpush.msra.mxu0 %v506
        %1632 = vmatmul.f32.gmra.mxu0 %v924
        %v1633 = vpop.f32.mrf.mxu0
        %v1634 = vadd.f32 0.0, %v1633
        %1635 = vdwg.mxu0
        %1636 = vmatpush.msra.mxu0 0.0
        %1637 = vmatpush.msra.mxu0 0.0
        %1638 = vmatpush.msra.mxu0 0.0
        %1639 = vmatpush.msra.mxu0 0.0
        %1640 = vmatpush.msra.mxu0 0.0
        %1641 = vmatpush.msra.mxu0 0.0
        %1642 = vmatpush.msra.mxu0 0.0
        %1643 = vmatpush.msra.mxu0 0.0
        %1644 = vmatpush.msra.mxu0 0.0
        %1645 = vmatpush.msra.mxu0 0.0
        %1646 = vmatpush.msra.mxu0 0.0
        %1647 = vmatpush.msra.mxu0 0.0
        %1648 = vmatpush.msra.mxu0 %v553
        %1649 = vmatpush.msra.mxu0 %v515
        %1650 = vmatpush.msra.mxu0 %v511
        %1651 = vmatpush.msra.mxu0 %v507
        %1652 = vmatmul.f32.gmra.mxu0 %v924
        %v1653 = vpop.f32.mrf.mxu0
        %v1654 = vadd.f32 0.0, %v1653
        %1655 = vdwg.mxu0
        %1656 = vmatpush.msra.mxu0 0.0
        %1657 = vmatpush.msra.mxu0 0.0
        %1658 = vmatpush.msra.mxu0 0.0
        %1659 = vmatpush.msra.mxu0 0.0
        %1660 = vmatpush.msra.mxu0 0.0
        %1661 = vmatpush.msra.mxu0 0.0
        %1662 = vmatpush.msra.mxu0 0.0
        %1663 = vmatpush.msra.mxu0 0.0
        %1664 = vmatpush.msra.mxu0 0.0
        %1665 = vmatpush.msra.mxu0 0.0
        %1666 = vmatpush.msra.mxu0 0.0
        %1667 = vmatpush.msra.mxu0 0.0
        %1668 = vmatpush.msra.mxu0 %v556
        %1669 = vmatpush.msra.mxu0 %v516
        %1670 = vmatpush.msra.mxu0 %v512
        %1671 = vmatpush.msra.mxu0 %v508
        %1672 = vmatmul.f32.gmra.mxu0 %v924
        %v1673 = vpop.f32.mrf.mxu0
        %v1674 = vadd.f32 0.0, %v1673
        %1675 = vdwg.mxu0
        %1676 = vmatpush.msra.mxu0 0.0
        %1677 = vmatpush.msra.mxu0 0.0
        %1678 = vmatpush.msra.mxu0 0.0
        %1679 = vmatpush.msra.mxu0 0.0
        %1680 = vmatpush.msra.mxu0 0.0
        %1681 = vmatpush.msra.mxu0 0.0
        %1682 = vmatpush.msra.mxu0 0.0
        %1683 = vmatpush.msra.mxu0 0.0
        %1684 = vmatpush.msra.mxu0 0.0
        %1685 = vmatpush.msra.mxu0 0.0
        %1686 = vmatpush.msra.mxu0 0.0
        %1687 = vmatpush.msra.mxu0 0.0
        %1688 = vmatpush.msra.mxu0 %v657
        %1689 = vmatpush.msra.mxu0 %v490
        %1690 = vmatpush.msra.mxu0 %v486
        %1691 = vmatpush.msra.mxu0 %v482
        %1692 = vmatmul.f32.gmra.mxu0 %v787
        %v1693 = vpop.f32.mrf.mxu0
        %v1694 = vadd.f32 %v1614, %v1693
        %1695 = vdwg.mxu0
        %1696 = vmatpush.msra.mxu0 0.0
        %1697 = vmatpush.msra.mxu0 0.0
        %1698 = vmatpush.msra.mxu0 0.0
        %1699 = vmatpush.msra.mxu0 0.0
        %1700 = vmatpush.msra.mxu0 0.0
        %1701 = vmatpush.msra.mxu0 0.0
        %1702 = vmatpush.msra.mxu0 0.0
        %1703 = vmatpush.msra.mxu0 0.0
        %1704 = vmatpush.msra.mxu0 0.0
        %1705 = vmatpush.msra.mxu0 0.0
        %1706 = vmatpush.msra.mxu0 0.0
        %1707 = vmatpush.msra.mxu0 0.0
        %1708 = vmatpush.msra.mxu0 %v660
        %1709 = vmatpush.msra.mxu0 %v491
        %1710 = vmatpush.msra.mxu0 %v487
        %1711 = vmatpush.msra.mxu0 %v483
        %1712 = vmatmul.f32.gmra.mxu0 %v787
        %v1713 = vpop.f32.mrf.mxu0
        %v1714 = vadd.f32 %v1634, %v1713
        %1715 = vdwg.mxu0
        %1716 = vmatpush.msra.mxu0 0.0
        %1717 = vmatpush.msra.mxu0 0.0
        %1718 = vmatpush.msra.mxu0 0.0
        %1719 = vmatpush.msra.mxu0 0.0
        %1720 = vmatpush.msra.mxu0 0.0
        %1721 = vmatpush.msra.mxu0 0.0
        %1722 = vmatpush.msra.mxu0 0.0
        %1723 = vmatpush.msra.mxu0 0.0
        %1724 = vmatpush.msra.mxu0 0.0
        %1725 = vmatpush.msra.mxu0 0.0
        %1726 = vmatpush.msra.mxu0 0.0
        %1727 = vmatpush.msra.mxu0 0.0
        %1728 = vmatpush.msra.mxu0 %v663
        %1729 = vmatpush.msra.mxu0 %v492
        %1730 = vmatpush.msra.mxu0 %v488
        %1731 = vmatpush.msra.mxu0 %v484
        %1732 = vmatmul.f32.gmra.mxu0 %v787
        %v1733 = vpop.f32.mrf.mxu0
        %v1734 = vadd.f32 %v1654, %v1733
        %1735 = vdwg.mxu0
        %1736 = vmatpush.msra.mxu0 0.0
        %1737 = vmatpush.msra.mxu0 0.0
        %1738 = vmatpush.msra.mxu0 0.0
        %1739 = vmatpush.msra.mxu0 0.0
        %1740 = vmatpush.msra.mxu0 0.0
        %1741 = vmatpush.msra.mxu0 0.0
        %1742 = vmatpush.msra.mxu0 0.0
        %1743 = vmatpush.msra.mxu0 0.0
        %1744 = vmatpush.msra.mxu0 0.0
        %1745 = vmatpush.msra.mxu0 0.0
        %1746 = vmatpush.msra.mxu0 0.0
        %1747 = vmatpush.msra.mxu0 0.0
        %1748 = vmatpush.msra.mxu0 %v666
        %1749 = vmatpush.msra.mxu0 %v493
        %1750 = vmatpush.msra.mxu0 %v489
        %1751 = vmatpush.msra.mxu0 %v485
        %1752 = vmatmul.f32.gmra.mxu0 %v787
        %v1753 = vpop.f32.mrf.mxu0
        %v1754 = vadd.f32 %v1674, %v1753
        %1755 = vdwg.mxu0
        %1756 = vmatpush.msra.mxu0 0.0
        %1757 = vmatpush.msra.mxu0 0.0
        %1758 = vmatpush.msra.mxu0 0.0
        %1759 = vmatpush.msra.mxu0 0.0
        %1760 = vmatpush.msra.mxu0 0.0
        %1761 = vmatpush.msra.mxu0 0.0
        %1762 = vmatpush.msra.mxu0 0.0
        %1763 = vmatpush.msra.mxu0 0.0
        %1764 = vmatpush.msra.mxu0 0.0
        %1765 = vmatpush.msra.mxu0 0.0
        %1766 = vmatpush.msra.mxu0 0.0
        %1767 = vmatpush.msra.mxu0 0.0
        %1768 = vmatpush.msra.mxu0 %v790
        %1769 = vmatpush.msra.mxu0 %v763
        %1770 = vmatpush.msra.mxu0 %v759
        %1771 = vmatpush.msra.mxu0 %v755
        %1772 = vmatmul.f32.gmra.mxu0 %v1062
        %v1773 = vpop.f32.mrf.mxu0
        %v1774 = vadd.f32 0.0, %v1773
        %1775 = vdwg.mxu0
        %1776 = vmatpush.msra.mxu0 0.0
        %1777 = vmatpush.msra.mxu0 0.0
        %1778 = vmatpush.msra.mxu0 0.0
        %1779 = vmatpush.msra.mxu0 0.0
        %1780 = vmatpush.msra.mxu0 0.0
        %1781 = vmatpush.msra.mxu0 0.0
        %1782 = vmatpush.msra.mxu0 0.0
        %1783 = vmatpush.msra.mxu0 0.0
        %1784 = vmatpush.msra.mxu0 0.0
        %1785 = vmatpush.msra.mxu0 0.0
        %1786 = vmatpush.msra.mxu0 0.0
        %1787 = vmatpush.msra.mxu0 0.0
        %1788 = vmatpush.msra.mxu0 %v793
        %1789 = vmatpush.msra.mxu0 %v764
        %1790 = vmatpush.msra.mxu0 %v760
        %1791 = vmatpush.msra.mxu0 %v756
        %1792 = vmatmul.f32.gmra.mxu0 %v1062
        %v1793 = vpop.f32.mrf.mxu0
        %v1794 = vadd.f32 0.0, %v1793
        %1795 = vdwg.mxu0
        %1796 = vmatpush.msra.mxu0 0.0
        %1797 = vmatpush.msra.mxu0 0.0
        %1798 = vmatpush.msra.mxu0 0.0
        %1799 = vmatpush.msra.mxu0 0.0
        %1800 = vmatpush.msra.mxu0 0.0
        %1801 = vmatpush.msra.mxu0 0.0
        %1802 = vmatpush.msra.mxu0 0.0
        %1803 = vmatpush.msra.mxu0 0.0
        %1804 = vmatpush.msra.mxu0 0.0
        %1805 = vmatpush.msra.mxu0 0.0
        %1806 = vmatpush.msra.mxu0 0.0
        %1807 = vmatpush.msra.mxu0 0.0
        %1808 = vmatpush.msra.mxu0 %v796
        %1809 = vmatpush.msra.mxu0 %v765
        %1810 = vmatpush.msra.mxu0 %v761
        %1811 = vmatpush.msra.mxu0 %v757
        %1812 = vmatmul.f32.gmra.mxu0 %v1062
        %v1813 = vpop.f32.mrf.mxu0
        %v1814 = vadd.f32 0.0, %v1813
        %1815 = vdwg.mxu0
        %1816 = vmatpush.msra.mxu0 0.0
        %1817 = vmatpush.msra.mxu0 0.0
        %1818 = vmatpush.msra.mxu0 0.0
        %1819 = vmatpush.msra.mxu0 0.0
        %1820 = vmatpush.msra.mxu0 0.0
        %1821 = vmatpush.msra.mxu0 0.0
        %1822 = vmatpush.msra.mxu0 0.0
        %1823 = vmatpush.msra.mxu0 0.0
        %1824 = vmatpush.msra.mxu0 0.0
        %1825 = vmatpush.msra.mxu0 0.0
        %1826 = vmatpush.msra.mxu0 0.0
        %1827 = vmatpush.msra.mxu0 0.0
        %1828 = vmatpush.msra.mxu0 %v799
        %1829 = vmatpush.msra.mxu0 %v766
        %1830 = vmatpush.msra.mxu0 %v762
        %1831 = vmatpush.msra.mxu0 %v758
        %1832 = vmatmul.f32.gmra.mxu0 %v1062
        %v1833 = vpop.f32.mrf.mxu0
        %v1834 = vadd.f32 0.0, %v1833
        %1835 = vdwg.mxu0
        %v1836 = vadd.f32 %v1694, %v1774
        %v1837 = vadd.f32 %v1714, %v1794
        %v1838 = vadd.f32 %v1734, %v1814
        %v1839 = vadd.f32 %v1754, %v1834
        %1840 = vmatpush.msra.mxu0 0.0
        %1841 = vmatpush.msra.mxu0 0.0
        %1842 = vmatpush.msra.mxu0 0.0
        %1843 = vmatpush.msra.mxu0 0.0
        %1844 = vmatpush.msra.mxu0 0.0
        %1845 = vmatpush.msra.mxu0 0.0
        %1846 = vmatpush.msra.mxu0 0.0
        %1847 = vmatpush.msra.mxu0 0.0
        %1848 = vmatpush.msra.mxu0 0.0
        %1849 = vmatpush.msra.mxu0 0.0
        %1850 = vmatpush.msra.mxu0 0.0
        %1851 = vmatpush.msra.mxu0 0.0
        %1852 = vmatpush.msra.mxu0 %v927
        %1853 = vmatpush.msra.mxu0 %v900
        %1854 = vmatpush.msra.mxu0 %v896
        %1855 = vmatpush.msra.mxu0 %v892
        %1856 = vmatmul.f32.gmra.mxu0 %v1510
        %v1857 = vpop.f32.mrf.mxu0
        %v1858 = vadd.f32 0.0, %v1857
        %1859 = vdwg.mxu0
        %1860 = vmatpush.msra.mxu0 0.0
        %1861 = vmatpush.msra.mxu0 0.0
        %1862 = vmatpush.msra.mxu0 0.0
        %1863 = vmatpush.msra.mxu0 0.0
        %1864 = vmatpush.msra.mxu0 0.0
        %1865 = vmatpush.msra.mxu0 0.0
        %1866 = vmatpush.msra.mxu0 0.0
        %1867 = vmatpush.msra.mxu0 0.0
        %1868 = vmatpush.msra.mxu0 0.0
        %1869 = vmatpush.msra.mxu0 0.0
        %1870 = vmatpush.msra.mxu0 0.0
        %1871 = vmatpush.msra.mxu0 0.0
        %1872 = vmatpush.msra.mxu0 %v930
        %1873 = vmatpush.msra.mxu0 %v901
        %1874 = vmatpush.msra.mxu0 %v897
        %1875 = vmatpush.msra.mxu0 %v893
        %1876 = vmatmul.f32.gmra.mxu0 %v1510
        %v1877 = vpop.f32.mrf.mxu0
        %v1878 = vadd.f32 0.0, %v1877
        %1879 = vdwg.mxu0
        %1880 = vmatpush.msra.mxu0 0.0
        %1881 = vmatpush.msra.mxu0 0.0
        %1882 = vmatpush.msra.mxu0 0.0
        %1883 = vmatpush.msra.mxu0 0.0
        %1884 = vmatpush.msra.mxu0 0.0
        %1885 = vmatpush.msra.mxu0 0.0
        %1886 = vmatpush.msra.mxu0 0.0
        %1887 = vmatpush.msra.mxu0 0.0
        %1888 = vmatpush.msra.mxu0 0.0
        %1889 = vmatpush.msra.mxu0 0.0
        %1890 = vmatpush.msra.mxu0 0.0
        %1891 = vmatpush.msra.mxu0 0.0
        %1892 = vmatpush.msra.mxu0 %v933
        %1893 = vmatpush.msra.mxu0 %v902
        %1894 = vmatpush.msra.mxu0 %v898
        %1895 = vmatpush.msra.mxu0 %v894
        %1896 = vmatmul.f32.gmra.mxu0 %v1510
        %v1897 = vpop.f32.mrf.mxu0
        %v1898 = vadd.f32 0.0, %v1897
        %1899 = vdwg.mxu0
        %1900 = vmatpush.msra.mxu0 0.0
        %1901 = vmatpush.msra.mxu0 0.0
        %1902 = vmatpush.msra.mxu0 0.0
        %1903 = vmatpush.msra.mxu0 0.0
        %1904 = vmatpush.msra.mxu0 0.0
        %1905 = vmatpush.msra.mxu0 0.0
        %1906 = vmatpush.msra.mxu0 0.0
        %1907 = vmatpush.msra.mxu0 0.0
        %1908 = vmatpush.msra.mxu0 0.0
        %1909 = vmatpush.msra.mxu0 0.0
        %1910 = vmatpush.msra.mxu0 0.0
        %1911 = vmatpush.msra.mxu0 0.0
        %1912 = vmatpush.msra.mxu0 %v936
        %1913 = vmatpush.msra.mxu0 %v903
        %1914 = vmatpush.msra.mxu0 %v899
        %1915 = vmatpush.msra.mxu0 %v895
        %1916 = vmatmul.f32.gmra.mxu0 %v1510
        %v1917 = vpop.f32.mrf.mxu0
        %v1918 = vadd.f32 0.0, %v1917
        %1919 = vdwg.mxu0
        %v1920 = vadd.f32 %v1836, %v1858
        %v1921 = vadd.f32 %v1837, %v1878
        %v1922 = vadd.f32 %v1838, %v1898
        %v1923 = vadd.f32 %v1839, %v1918
        %v1924 = vld [vmem:[%s1022 + $0x2] sm:$0x1]
        %v1925 = vld [vmem:[%s1022 + $0x6] sm:$0x1]
        %v1926 = vld [vmem:[%s1022 + $0xa] sm:$0x1]
        %v1927 = vld [vmem:[%s1022 + $0xe] sm:$0x1]
        %v1928 = vld [vmem:[%s1022 + $0x12] sm:$0x1]
        %v1929 = vld [vmem:[%s1022 + $0x16] sm:$0x1]
        %v1936 = vrot.slane %v1925, 7
        %v1937 = vsel %vm528, %v1936, %v1924
        %v1938 = vrot.slane %v1926, 6
        %v1939 = vsel %vm531, %v1938, %v1937
        %v1940 = vrot.slane %v1927, 5
        %v1941 = vsel %vm534, %v1940, %v1939
        %v1942 = vrot.slane %v1928, 4
        %v1943 = vsel %vm537, %v1942, %v1941
        %v1944 = vrot.slane %v1929, 3
        %v1945 = vsel %vm540, %v1944, %v1943
        %v1946 = vsel %vm542, %v1945, 0
        %1948 = vmatpush.msra.mxu0 0.0
        %1949 = vmatpush.msra.mxu0 0.0
        %1950 = vmatpush.msra.mxu0 0.0
        %1951 = vmatpush.msra.mxu0 0.0
        %1952 = vmatpush.msra.mxu0 0.0
        %1953 = vmatpush.msra.mxu0 0.0
        %1954 = vmatpush.msra.mxu0 0.0
        %1955 = vmatpush.msra.mxu0 0.0
        %1956 = vmatpush.msra.mxu0 0.0
        %1957 = vmatpush.msra.mxu0 0.0
        %1958 = vmatpush.msra.mxu0 0.0
        %1959 = vmatpush.msra.mxu0 0.0
        %1960 = vmatpush.msra.mxu0 %v1065
        %1961 = vmatpush.msra.mxu0 %v1038
        %1962 = vmatpush.msra.mxu0 %v1034
        %1963 = vmatpush.msra.mxu0 %v1030
        %1964 = vmatmul.f32.gmra.mxu0 %v1946
        %v1965 = vpop.f32.mrf.mxu0
        %v1966 = vadd.f32 0.0, %v1965
        %1967 = vdwg.mxu0
        %1968 = vmatpush.msra.mxu0 0.0
        %1969 = vmatpush.msra.mxu0 0.0
        %1970 = vmatpush.msra.mxu0 0.0
        %1971 = vmatpush.msra.mxu0 0.0
        %1972 = vmatpush.msra.mxu0 0.0
        %1973 = vmatpush.msra.mxu0 0.0
        %1974 = vmatpush.msra.mxu0 0.0
        %1975 = vmatpush.msra.mxu0 0.0
        %1976 = vmatpush.msra.mxu0 0.0
        %1977 = vmatpush.msra.mxu0 0.0
        %1978 = vmatpush.msra.mxu0 0.0
        %1979 = vmatpush.msra.mxu0 0.0
        %1980 = vmatpush.msra.mxu0 %v1068
        %1981 = vmatpush.msra.mxu0 %v1039
        %1982 = vmatpush.msra.mxu0 %v1035
        %1983 = vmatpush.msra.mxu0 %v1031
        %1984 = vmatmul.f32.gmra.mxu0 %v1946
        %v1985 = vpop.f32.mrf.mxu0
        %v1986 = vadd.f32 0.0, %v1985
        %1987 = vdwg.mxu0
        %1988 = vmatpush.msra.mxu0 0.0
        %1989 = vmatpush.msra.mxu0 0.0
        %1990 = vmatpush.msra.mxu0 0.0
        %1991 = vmatpush.msra.mxu0 0.0
        %1992 = vmatpush.msra.mxu0 0.0
        %1993 = vmatpush.msra.mxu0 0.0
        %1994 = vmatpush.msra.mxu0 0.0
        %1995 = vmatpush.msra.mxu0 0.0
        %1996 = vmatpush.msra.mxu0 0.0
        %1997 = vmatpush.msra.mxu0 0.0
        %1998 = vmatpush.msra.mxu0 0.0
        %1999 = vmatpush.msra.mxu0 0.0
        %2000 = vmatpush.msra.mxu0 %v1071
        %2001 = vmatpush.msra.mxu0 %v1040
        %2002 = vmatpush.msra.mxu0 %v1036
        %2003 = vmatpush.msra.mxu0 %v1032
        %2004 = vmatmul.f32.gmra.mxu0 %v1946
        %v2005 = vpop.f32.mrf.mxu0
        %v2006 = vadd.f32 0.0, %v2005
        %2007 = vdwg.mxu0
        %2008 = vmatpush.msra.mxu0 0.0
        %2009 = vmatpush.msra.mxu0 0.0
        %2010 = vmatpush.msra.mxu0 0.0
        %2011 = vmatpush.msra.mxu0 0.0
        %2012 = vmatpush.msra.mxu0 0.0
        %2013 = vmatpush.msra.mxu0 0.0
        %2014 = vmatpush.msra.mxu0 0.0
        %2015 = vmatpush.msra.mxu0 0.0
        %2016 = vmatpush.msra.mxu0 0.0
        %2017 = vmatpush.msra.mxu0 0.0
        %2018 = vmatpush.msra.mxu0 0.0
        %2019 = vmatpush.msra.mxu0 0.0
        %2020 = vmatpush.msra.mxu0 %v1074
        %2021 = vmatpush.msra.mxu0 %v1041
        %2022 = vmatpush.msra.mxu0 %v1037
        %2023 = vmatpush.msra.mxu0 %v1033
        %2024 = vmatmul.f32.gmra.mxu0 %v1946
        %v2025 = vpop.f32.mrf.mxu0
        %v2026 = vadd.f32 0.0, %v2025
        %2027 = vdwg.mxu0
        %v2028 = vadd.f32 %v1920, %v1966
        %v2029 = vadd.f32 %v1921, %v1986
        %v2030 = vadd.f32 %v1922, %v2006
        %v2031 = vadd.f32 %v1923, %v2026
        %2032 = vmatpush.msra.mxu0 0.0
        %2033 = vmatpush.msra.mxu0 0.0
        %2034 = vmatpush.msra.mxu0 0.0
        %2035 = vmatpush.msra.mxu0 0.0
        %2036 = vmatpush.msra.mxu0 0.0
        %2037 = vmatpush.msra.mxu0 0.0
        %2038 = vmatpush.msra.mxu0 0.0
        %2039 = vmatpush.msra.mxu0 0.0
        %2040 = vmatpush.msra.mxu0 0.0
        %2041 = vmatpush.msra.mxu0 0.0
        %2042 = vmatpush.msra.mxu0 0.0
        %2043 = vmatpush.msra.mxu0 0.0
        %2044 = vmatpush.msra.mxu0 %v547
        %2045 = vmatpush.msra.mxu0 %v513
        %2046 = vmatpush.msra.mxu0 %v509
        %2047 = vmatpush.msra.mxu0 %v505
        %2048 = vmatmul.f32.gmra.mxu0 %v1062
        %v2049 = vpop.f32.mrf.mxu0
        %v2050 = vadd.f32 0.0, %v2049
        %2051 = vdwg.mxu0
        %2052 = vmatpush.msra.mxu0 0.0
        %2053 = vmatpush.msra.mxu0 0.0
        %2054 = vmatpush.msra.mxu0 0.0
        %2055 = vmatpush.msra.mxu0 0.0
        %2056 = vmatpush.msra.mxu0 0.0
        %2057 = vmatpush.msra.mxu0 0.0
        %2058 = vmatpush.msra.mxu0 0.0
        %2059 = vmatpush.msra.mxu0 0.0
        %2060 = vmatpush.msra.mxu0 0.0
        %2061 = vmatpush.msra.mxu0 0.0
        %2062 = vmatpush.msra.mxu0 0.0
        %2063 = vmatpush.msra.mxu0 0.0
        %2064 = vmatpush.msra.mxu0 %v550
        %2065 = vmatpush.msra.mxu0 %v514
        %2066 = vmatpush.msra.mxu0 %v510
        %2067 = vmatpush.msra.mxu0 %v506
        %2068 = vmatmul.f32.gmra.mxu0 %v1062
        %v2069 = vpop.f32.mrf.mxu0
        %v2070 = vadd.f32 0.0, %v2069
        %2071 = vdwg.mxu0
        %2072 = vmatpush.msra.mxu0 0.0
        %2073 = vmatpush.msra.mxu0 0.0
        %2074 = vmatpush.msra.mxu0 0.0
        %2075 = vmatpush.msra.mxu0 0.0
        %2076 = vmatpush.msra.mxu0 0.0
        %2077 = vmatpush.msra.mxu0 0.0
        %2078 = vmatpush.msra.mxu0 0.0
        %2079 = vmatpush.msra.mxu0 0.0
        %2080 = vmatpush.msra.mxu0 0.0
        %2081 = vmatpush.msra.mxu0 0.0
        %2082 = vmatpush.msra.mxu0 0.0
        %2083 = vmatpush.msra.mxu0 0.0
        %2084 = vmatpush.msra.mxu0 %v553
        %2085 = vmatpush.msra.mxu0 %v515
        %2086 = vmatpush.msra.mxu0 %v511
        %2087 = vmatpush.msra.mxu0 %v507
        %2088 = vmatmul.f32.gmra.mxu0 %v1062
        %v2089 = vpop.f32.mrf.mxu0
        %v2090 = vadd.f32 0.0, %v2089
        %2091 = vdwg.mxu0
        %2092 = vmatpush.msra.mxu0 0.0
        %2093 = vmatpush.msra.mxu0 0.0
        %2094 = vmatpush.msra.mxu0 0.0
        %2095 = vmatpush.msra.mxu0 0.0
        %2096 = vmatpush.msra.mxu0 0.0
        %2097 = vmatpush.msra.mxu0 0.0
        %2098 = vmatpush.msra.mxu0 0.0
        %2099 = vmatpush.msra.mxu0 0.0
        %2100 = vmatpush.msra.mxu0 0.0
        %2101 = vmatpush.msra.mxu0 0.0
        %2102 = vmatpush.msra.mxu0 0.0
        %2103 = vmatpush.msra.mxu0 0.0
        %2104 = vmatpush.msra.mxu0 %v556
        %2105 = vmatpush.msra.mxu0 %v516
        %2106 = vmatpush.msra.mxu0 %v512
        %2107 = vmatpush.msra.mxu0 %v508
        %2108 = vmatmul.f32.gmra.mxu0 %v1062
        %v2109 = vpop.f32.mrf.mxu0
        %v2110 = vadd.f32 0.0, %v2109
        %2111 = vdwg.mxu0
        %2112 = vmatpush.msra.mxu0 0.0
        %2113 = vmatpush.msra.mxu0 0.0
        %2114 = vmatpush.msra.mxu0 0.0
        %2115 = vmatpush.msra.mxu0 0.0
        %2116 = vmatpush.msra.mxu0 0.0
        %2117 = vmatpush.msra.mxu0 0.0
        %2118 = vmatpush.msra.mxu0 0.0
        %2119 = vmatpush.msra.mxu0 0.0
        %2120 = vmatpush.msra.mxu0 0.0
        %2121 = vmatpush.msra.mxu0 0.0
        %2122 = vmatpush.msra.mxu0 0.0
        %2123 = vmatpush.msra.mxu0 0.0
        %2124 = vmatpush.msra.mxu0 %v657
        %2125 = vmatpush.msra.mxu0 %v490
        %2126 = vmatpush.msra.mxu0 %v486
        %2127 = vmatpush.msra.mxu0 %v482
        %2128 = vmatmul.f32.gmra.mxu0 %v924
        %v2129 = vpop.f32.mrf.mxu0
        %v2130 = vadd.f32 %v2050, %v2129
        %2131 = vdwg.mxu0
        %2132 = vmatpush.msra.mxu0 0.0
        %2133 = vmatpush.msra.mxu0 0.0
        %2134 = vmatpush.msra.mxu0 0.0
        %2135 = vmatpush.msra.mxu0 0.0
        %2136 = vmatpush.msra.mxu0 0.0
        %2137 = vmatpush.msra.mxu0 0.0
        %2138 = vmatpush.msra.mxu0 0.0
        %2139 = vmatpush.msra.mxu0 0.0
        %2140 = vmatpush.msra.mxu0 0.0
        %2141 = vmatpush.msra.mxu0 0.0
        %2142 = vmatpush.msra.mxu0 0.0
        %2143 = vmatpush.msra.mxu0 0.0
        %2144 = vmatpush.msra.mxu0 %v660
        %2145 = vmatpush.msra.mxu0 %v491
        %2146 = vmatpush.msra.mxu0 %v487
        %2147 = vmatpush.msra.mxu0 %v483
        %2148 = vmatmul.f32.gmra.mxu0 %v924
        %v2149 = vpop.f32.mrf.mxu0
        %v2150 = vadd.f32 %v2070, %v2149
        %2151 = vdwg.mxu0
        %2152 = vmatpush.msra.mxu0 0.0
        %2153 = vmatpush.msra.mxu0 0.0
        %2154 = vmatpush.msra.mxu0 0.0
        %2155 = vmatpush.msra.mxu0 0.0
        %2156 = vmatpush.msra.mxu0 0.0
        %2157 = vmatpush.msra.mxu0 0.0
        %2158 = vmatpush.msra.mxu0 0.0
        %2159 = vmatpush.msra.mxu0 0.0
        %2160 = vmatpush.msra.mxu0 0.0
        %2161 = vmatpush.msra.mxu0 0.0
        %2162 = vmatpush.msra.mxu0 0.0
        %2163 = vmatpush.msra.mxu0 0.0
        %2164 = vmatpush.msra.mxu0 %v663
        %2165 = vmatpush.msra.mxu0 %v492
        %2166 = vmatpush.msra.mxu0 %v488
        %2167 = vmatpush.msra.mxu0 %v484
        %2168 = vmatmul.f32.gmra.mxu0 %v924
        %v2169 = vpop.f32.mrf.mxu0
        %v2170 = vadd.f32 %v2090, %v2169
        %2171 = vdwg.mxu0
        %2172 = vmatpush.msra.mxu0 0.0
        %2173 = vmatpush.msra.mxu0 0.0
        %2174 = vmatpush.msra.mxu0 0.0
        %2175 = vmatpush.msra.mxu0 0.0
        %2176 = vmatpush.msra.mxu0 0.0
        %2177 = vmatpush.msra.mxu0 0.0
        %2178 = vmatpush.msra.mxu0 0.0
        %2179 = vmatpush.msra.mxu0 0.0
        %2180 = vmatpush.msra.mxu0 0.0
        %2181 = vmatpush.msra.mxu0 0.0
        %2182 = vmatpush.msra.mxu0 0.0
        %2183 = vmatpush.msra.mxu0 0.0
        %2184 = vmatpush.msra.mxu0 %v666
        %2185 = vmatpush.msra.mxu0 %v493
        %2186 = vmatpush.msra.mxu0 %v489
        %2187 = vmatpush.msra.mxu0 %v485
        %2188 = vmatmul.f32.gmra.mxu0 %v924
        %v2189 = vpop.f32.mrf.mxu0
        %v2190 = vadd.f32 %v2110, %v2189
        %2191 = vdwg.mxu0
        %2192 = vmatpush.msra.mxu0 0.0
        %2193 = vmatpush.msra.mxu0 0.0
        %2194 = vmatpush.msra.mxu0 0.0
        %2195 = vmatpush.msra.mxu0 0.0
        %2196 = vmatpush.msra.mxu0 0.0
        %2197 = vmatpush.msra.mxu0 0.0
        %2198 = vmatpush.msra.mxu0 0.0
        %2199 = vmatpush.msra.mxu0 0.0
        %2200 = vmatpush.msra.mxu0 0.0
        %2201 = vmatpush.msra.mxu0 0.0
        %2202 = vmatpush.msra.mxu0 0.0
        %2203 = vmatpush.msra.mxu0 0.0
        %2204 = vmatpush.msra.mxu0 %v790
        %2205 = vmatpush.msra.mxu0 %v763
        %2206 = vmatpush.msra.mxu0 %v759
        %2207 = vmatpush.msra.mxu0 %v755
        %2208 = vmatmul.f32.gmra.mxu0 %v1510
        %v2209 = vpop.f32.mrf.mxu0
        %v2210 = vadd.f32 0.0, %v2209
        %2211 = vdwg.mxu0
        %2212 = vmatpush.msra.mxu0 0.0
        %2213 = vmatpush.msra.mxu0 0.0
        %2214 = vmatpush.msra.mxu0 0.0
        %2215 = vmatpush.msra.mxu0 0.0
        %2216 = vmatpush.msra.mxu0 0.0
        %2217 = vmatpush.msra.mxu0 0.0
        %2218 = vmatpush.msra.mxu0 0.0
        %2219 = vmatpush.msra.mxu0 0.0
        %2220 = vmatpush.msra.mxu0 0.0
        %2221 = vmatpush.msra.mxu0 0.0
        %2222 = vmatpush.msra.mxu0 0.0
        %2223 = vmatpush.msra.mxu0 0.0
        %2224 = vmatpush.msra.mxu0 %v793
        %2225 = vmatpush.msra.mxu0 %v764
        %2226 = vmatpush.msra.mxu0 %v760
        %2227 = vmatpush.msra.mxu0 %v756
        %2228 = vmatmul.f32.gmra.mxu0 %v1510
        %v2229 = vpop.f32.mrf.mxu0
        %v2230 = vadd.f32 0.0, %v2229
        %2231 = vdwg.mxu0
        %2232 = vmatpush.msra.mxu0 0.0
        %2233 = vmatpush.msra.mxu0 0.0
        %2234 = vmatpush.msra.mxu0 0.0
        %2235 = vmatpush.msra.mxu0 0.0
        %2236 = vmatpush.msra.mxu0 0.0
        %2237 = vmatpush.msra.mxu0 0.0
        %2238 = vmatpush.msra.mxu0 0.0
        %2239 = vmatpush.msra.mxu0 0.0
        %2240 = vmatpush.msra.mxu0 0.0
        %2241 = vmatpush.msra.mxu0 0.0
        %2242 = vmatpush.msra.mxu0 0.0
        %2243 = vmatpush.msra.mxu0 0.0
        %2244 = vmatpush.msra.mxu0 %v796
        %2245 = vmatpush.msra.mxu0 %v765
        %2246 = vmatpush.msra.mxu0 %v761
        %2247 = vmatpush.msra.mxu0 %v757
        %2248 = vmatmul.f32.gmra.mxu0 %v1510
        %v2249 = vpop.f32.mrf.mxu0
        %v2250 = vadd.f32 0.0, %v2249
        %2251 = vdwg.mxu0
        %2252 = vmatpush.msra.mxu0 0.0
        %2253 = vmatpush.msra.mxu0 0.0
        %2254 = vmatpush.msra.mxu0 0.0
        %2255 = vmatpush.msra.mxu0 0.0
        %2256 = vmatpush.msra.mxu0 0.0
        %2257 = vmatpush.msra.mxu0 0.0
        %2258 = vmatpush.msra.mxu0 0.0
        %2259 = vmatpush.msra.mxu0 0.0
        %2260 = vmatpush.msra.mxu0 0.0
        %2261 = vmatpush.msra.mxu0 0.0
        %2262 = vmatpush.msra.mxu0 0.0
        %2263 = vmatpush.msra.mxu0 0.0
        %2264 = vmatpush.msra.mxu0 %v799
        %2265 = vmatpush.msra.mxu0 %v766
        %2266 = vmatpush.msra.mxu0 %v762
        %2267 = vmatpush.msra.mxu0 %v758
        %2268 = vmatmul.f32.gmra.mxu0 %v1510
        %v2269 = vpop.f32.mrf.mxu0
        %v2270 = vadd.f32 0.0, %v2269
        %2271 = vdwg.mxu0
        %v2272 = vadd.f32 %v2130, %v2210
        %v2273 = vadd.f32 %v2150, %v2230
        %v2274 = vadd.f32 %v2170, %v2250
        %v2275 = vadd.f32 %v2190, %v2270
        %2276 = vmatpush.msra.mxu0 0.0
        %2277 = vmatpush.msra.mxu0 0.0
        %2278 = vmatpush.msra.mxu0 0.0
        %2279 = vmatpush.msra.mxu0 0.0
        %2280 = vmatpush.msra.mxu0 0.0
        %2281 = vmatpush.msra.mxu0 0.0
        %2282 = vmatpush.msra.mxu0 0.0
        %2283 = vmatpush.msra.mxu0 0.0
        %2284 = vmatpush.msra.mxu0 0.0
        %2285 = vmatpush.msra.mxu0 0.0
        %2286 = vmatpush.msra.mxu0 0.0
        %2287 = vmatpush.msra.mxu0 0.0
        %2288 = vmatpush.msra.mxu0 %v927
        %2289 = vmatpush.msra.mxu0 %v900
        %2290 = vmatpush.msra.mxu0 %v896
        %2291 = vmatpush.msra.mxu0 %v892
        %2292 = vmatmul.f32.gmra.mxu0 %v1946
        %v2293 = vpop.f32.mrf.mxu0
        %v2294 = vadd.f32 0.0, %v2293
        %2295 = vdwg.mxu0
        %2296 = vmatpush.msra.mxu0 0.0
        %2297 = vmatpush.msra.mxu0 0.0
        %2298 = vmatpush.msra.mxu0 0.0
        %2299 = vmatpush.msra.mxu0 0.0
        %2300 = vmatpush.msra.mxu0 0.0
        %2301 = vmatpush.msra.mxu0 0.0
        %2302 = vmatpush.msra.mxu0 0.0
        %2303 = vmatpush.msra.mxu0 0.0
        %2304 = vmatpush.msra.mxu0 0.0
        %2305 = vmatpush.msra.mxu0 0.0
        %2306 = vmatpush.msra.mxu0 0.0
        %2307 = vmatpush.msra.mxu0 0.0
        %2308 = vmatpush.msra.mxu0 %v930
        %2309 = vmatpush.msra.mxu0 %v901
        %2310 = vmatpush.msra.mxu0 %v897
        %2311 = vmatpush.msra.mxu0 %v893
        %2312 = vmatmul.f32.gmra.mxu0 %v1946
        %v2313 = vpop.f32.mrf.mxu0
        %v2314 = vadd.f32 0.0, %v2313
        %2315 = vdwg.mxu0
        %2316 = vmatpush.msra.mxu0 0.0
        %2317 = vmatpush.msra.mxu0 0.0
        %2318 = vmatpush.msra.mxu0 0.0
        %2319 = vmatpush.msra.mxu0 0.0
        %2320 = vmatpush.msra.mxu0 0.0
        %2321 = vmatpush.msra.mxu0 0.0
        %2322 = vmatpush.msra.mxu0 0.0
        %2323 = vmatpush.msra.mxu0 0.0
        %2324 = vmatpush.msra.mxu0 0.0
        %2325 = vmatpush.msra.mxu0 0.0
        %2326 = vmatpush.msra.mxu0 0.0
        %2327 = vmatpush.msra.mxu0 0.0
        %2328 = vmatpush.msra.mxu0 %v933
        %2329 = vmatpush.msra.mxu0 %v902
        %2330 = vmatpush.msra.mxu0 %v898
        %2331 = vmatpush.msra.mxu0 %v894
        %2332 = vmatmul.f32.gmra.mxu0 %v1946
        %v2333 = vpop.f32.mrf.mxu0
        %v2334 = vadd.f32 0.0, %v2333
        %2335 = vdwg.mxu0
        %2336 = vmatpush.msra.mxu0 0.0
        %2337 = vmatpush.msra.mxu0 0.0
        %2338 = vmatpush.msra.mxu0 0.0
        %2339 = vmatpush.msra.mxu0 0.0
        %2340 = vmatpush.msra.mxu0 0.0
        %2341 = vmatpush.msra.mxu0 0.0
        %2342 = vmatpush.msra.mxu0 0.0
        %2343 = vmatpush.msra.mxu0 0.0
        %2344 = vmatpush.msra.mxu0 0.0
        %2345 = vmatpush.msra.mxu0 0.0
        %2346 = vmatpush.msra.mxu0 0.0
        %2347 = vmatpush.msra.mxu0 0.0
        %2348 = vmatpush.msra.mxu0 %v936
        %2349 = vmatpush.msra.mxu0 %v903
        %2350 = vmatpush.msra.mxu0 %v899
        %2351 = vmatpush.msra.mxu0 %v895
        %2352 = vmatmul.f32.gmra.mxu0 %v1946
        %v2353 = vpop.f32.mrf.mxu0
        %v2354 = vadd.f32 0.0, %v2353
        %2355 = vdwg.mxu0
        %v2356 = vadd.f32 %v2272, %v2294
        %v2357 = vadd.f32 %v2273, %v2314
        %v2358 = vadd.f32 %v2274, %v2334
        %v2359 = vadd.f32 %v2275, %v2354
        %v2360 = vld [vmem:[%s1022 + $0x3] sm:$0x1]
        %v2361 = vld [vmem:[%s1022 + $0x7] sm:$0x1]
        %v2362 = vld [vmem:[%s1022 + $0xb] sm:$0x1]
        %v2363 = vld [vmem:[%s1022 + $0xf] sm:$0x1]
        %v2364 = vld [vmem:[%s1022 + $0x13] sm:$0x1]
        %v2365 = vld [vmem:[%s1022 + $0x17] sm:$0x1]
        %v2372 = vrot.slane %v2361, 7
        %v2373 = vsel %vm528, %v2372, %v2360
        %v2374 = vrot.slane %v2362, 6
        %v2375 = vsel %vm531, %v2374, %v2373
        %v2376 = vrot.slane %v2363, 5
        %v2377 = vsel %vm534, %v2376, %v2375
        %v2378 = vrot.slane %v2364, 4
        %v2379 = vsel %vm537, %v2378, %v2377
        %v2380 = vrot.slane %v2365, 3
        %v2381 = vsel %vm540, %v2380, %v2379
        %v2382 = vsel %vm542, %v2381, 0
        %2384 = vmatpush.msra.mxu0 0.0
        %2385 = vmatpush.msra.mxu0 0.0
        %2386 = vmatpush.msra.mxu0 0.0
        %2387 = vmatpush.msra.mxu0 0.0
        %2388 = vmatpush.msra.mxu0 0.0
        %2389 = vmatpush.msra.mxu0 0.0
        %2390 = vmatpush.msra.mxu0 0.0
        %2391 = vmatpush.msra.mxu0 0.0
        %2392 = vmatpush.msra.mxu0 0.0
        %2393 = vmatpush.msra.mxu0 0.0
        %2394 = vmatpush.msra.mxu0 0.0
        %2395 = vmatpush.msra.mxu0 0.0
        %2396 = vmatpush.msra.mxu0 %v1065
        %2397 = vmatpush.msra.mxu0 %v1038
        %2398 = vmatpush.msra.mxu0 %v1034
        %2399 = vmatpush.msra.mxu0 %v1030
        %2400 = vmatmul.f32.gmra.mxu0 %v2382
        %v2401 = vpop.f32.mrf.mxu0
        %v2402 = vadd.f32 0.0, %v2401
        %2403 = vdwg.mxu0
        %2404 = vmatpush.msra.mxu0 0.0
        %2405 = vmatpush.msra.mxu0 0.0
        %2406 = vmatpush.msra.mxu0 0.0
        %2407 = vmatpush.msra.mxu0 0.0
        %2408 = vmatpush.msra.mxu0 0.0
        %2409 = vmatpush.msra.mxu0 0.0
        %2410 = vmatpush.msra.mxu0 0.0
        %2411 = vmatpush.msra.mxu0 0.0
        %2412 = vmatpush.msra.mxu0 0.0
        %2413 = vmatpush.msra.mxu0 0.0
        %2414 = vmatpush.msra.mxu0 0.0
        %2415 = vmatpush.msra.mxu0 0.0
        %2416 = vmatpush.msra.mxu0 %v1068
        %2417 = vmatpush.msra.mxu0 %v1039
        %2418 = vmatpush.msra.mxu0 %v1035
        %2419 = vmatpush.msra.mxu0 %v1031
        %2420 = vmatmul.f32.gmra.mxu0 %v2382
        %v2421 = vpop.f32.mrf.mxu0
        %v2422 = vadd.f32 0.0, %v2421
        %2423 = vdwg.mxu0
        %2424 = vmatpush.msra.mxu0 0.0
        %2425 = vmatpush.msra.mxu0 0.0
        %2426 = vmatpush.msra.mxu0 0.0
        %2427 = vmatpush.msra.mxu0 0.0
        %2428 = vmatpush.msra.mxu0 0.0
        %2429 = vmatpush.msra.mxu0 0.0
        %2430 = vmatpush.msra.mxu0 0.0
        %2431 = vmatpush.msra.mxu0 0.0
        %2432 = vmatpush.msra.mxu0 0.0
        %2433 = vmatpush.msra.mxu0 0.0
        %2434 = vmatpush.msra.mxu0 0.0
        %2435 = vmatpush.msra.mxu0 0.0
        %2436 = vmatpush.msra.mxu0 %v1071
        %2437 = vmatpush.msra.mxu0 %v1040
        %2438 = vmatpush.msra.mxu0 %v1036
        %2439 = vmatpush.msra.mxu0 %v1032
        %2440 = vmatmul.f32.gmra.mxu0 %v2382
        %v2441 = vpop.f32.mrf.mxu0
        %v2442 = vadd.f32 0.0, %v2441
        %2443 = vdwg.mxu0
        %2444 = vmatpush.msra.mxu0 0.0
        %2445 = vmatpush.msra.mxu0 0.0
        %2446 = vmatpush.msra.mxu0 0.0
        %2447 = vmatpush.msra.mxu0 0.0
        %2448 = vmatpush.msra.mxu0 0.0
        %2449 = vmatpush.msra.mxu0 0.0
        %2450 = vmatpush.msra.mxu0 0.0
        %2451 = vmatpush.msra.mxu0 0.0
        %2452 = vmatpush.msra.mxu0 0.0
        %2453 = vmatpush.msra.mxu0 0.0
        %2454 = vmatpush.msra.mxu0 0.0
        %2455 = vmatpush.msra.mxu0 0.0
        %2456 = vmatpush.msra.mxu0 %v1074
        %2457 = vmatpush.msra.mxu0 %v1041
        %2458 = vmatpush.msra.mxu0 %v1037
        %2459 = vmatpush.msra.mxu0 %v1033
        %2460 = vmatmul.f32.gmra.mxu0 %v2382
        %v2461 = vpop.f32.mrf.mxu0
        %v2462 = vadd.f32 0.0, %v2461
        %2463 = vdwg.mxu0
        %v2464 = vadd.f32 %v2356, %v2402
        %v2465 = vadd.f32 %v2357, %v2422
        %v2466 = vadd.f32 %v2358, %v2442
        %v2467 = vadd.f32 %v2359, %v2462
        %v2468 = vld [vmem:[#allocation7] sm:$0x3]
        %v2469 = vmax.f32 %v1156, %v1592
        %v2470 = vmax.f32 %v1157, %v1593
        %v2471 = vmax.f32 %v1158, %v1594
        %v2472 = vmax.f32 %v1159, %v1595
        %v2473 = vmax.f32 %v2469, %v2471
        %v2474 = vmax.f32 %v2470, %v2472
        %v2476 = vperm.slane %v2468, 0
        %v2477 = vperm.slane %v2468, 1
        %v2480 = vadd.f32 %v2473, %v2476
        %v2481 = vadd.f32 %v2474, %v2477
        %v2482 = vmax.f32 %v2480, 0.0
        %v2483 = vmax.f32 %v2481, 0.0
        %v2484 = vmax.f32 %v2028, %v2464
        %v2485 = vmax.f32 %v2029, %v2465
        %v2486 = vmax.f32 %v2030, %v2466
        %v2487 = vmax.f32 %v2031, %v2467
        %v2488 = vmax.f32 %v2484, %v2486
        %v2489 = vmax.f32 %v2485, %v2487
        %v2490 = vadd.f32 %v2488, %v2476
        %v2491 = vadd.f32 %v2489, %v2477
        %v2492 = vmax.f32 %v2490, 0.0
        %v2493 = vmax.f32 %v2491, 0.0
        %v2494 = vld [vmem:[#allocation8] sm:$0xff]
        %v2495 = vld [vmem:[#allocation8 + $0x8] sm:$0xff]
        %v2496 = vld [vmem:[#allocation8 + $0x10] sm:$0xff]
        %v2497 = vld [vmem:[#allocation8 + $0x18] sm:$0xff]
        %v2498 = vld [vmem:[#allocation8 + $0x20] sm:$0xff]
        %v2499 = vld [vmem:[#allocation8 + $0x28] sm:$0xff]
        %v2500 = vld [vmem:[#allocation8 + $0x30] sm:$0xff]
        %v2501 = vld [vmem:[#allocation8 + $0x38] sm:$0xff]
        %v2502 = vld [vmem:[#allocation8 + $0x40] sm:$0xff]
        %v2503 = vld [vmem:[#allocation8 + $0x48] sm:$0xff]
        %v2504 = vld [vmem:[#allocation8 + $0x50] sm:$0xff]
        %v2505 = vld [vmem:[#allocation8 + $0x58] sm:$0xff]
        %v2506 = vld [vmem:[#allocation8 + $0x60] sm:$0xff]
        %v2507 = vld [vmem:[#allocation8 + $0x68] sm:$0xff]
        %v2508 = vld [vmem:[#allocation8 + $0x70] sm:$0xff]
        %v2509 = vld [vmem:[#allocation8 + $0x78] sm:$0xff]
        %v2510 = vld [vmem:[#allocation8 + $0x80] sm:$0xff]
        %v2511 = vld [vmem:[#allocation8 + $0x88] sm:$0xff]
        %v2512 = vld [vmem:[#allocation8 + $0x90] sm:$0xff]
        %v2513 = vld [vmem:[#allocation8 + $0x98] sm:$0xff]
        %v2514 = vld [vmem:[#allocation8 + $0xa0] sm:$0xff]
        %v2515 = vld [vmem:[#allocation8 + $0xa8] sm:$0xff]
        %v2516 = vld [vmem:[#allocation8 + $0xb0] sm:$0xff]
        %v2517 = vld [vmem:[#allocation8 + $0xb8] sm:$0xff]
        %v2518 = vld [vmem:[#allocation8 + $0xc0] sm:$0xff]
        %v2519 = vld [vmem:[#allocation8 + $0xc8] sm:$0xff]
        %v2520 = vld [vmem:[#allocation8 + $0xd0] sm:$0xff]
        %v2521 = vld [vmem:[#allocation8 + $0xd8] sm:$0xff]
        %v2522 = vld [vmem:[#allocation8 + $0xe0] sm:$0xff]
        %v2523 = vld [vmem:[#allocation8 + $0xe8] sm:$0xff]
        %v2524 = vld [vmem:[#allocation8 + $0xf0] sm:$0xff]
        %v2525 = vld [vmem:[#allocation8 + $0xf8] sm:$0xff]
        %v2526 = vld [vmem:[#allocation8 + $0x100] sm:$0xff]
        %v2527 = vld [vmem:[#allocation8 + $0x108] sm:$0xff]
        %v2528 = vld [vmem:[#allocation8 + $0x110] sm:$0xff]
        %v2529 = vld [vmem:[#allocation8 + $0x118] sm:$0xff]
        %v2530 = vld [vmem:[#allocation8 + $0x120] sm:$0xff]
        %v2531 = vld [vmem:[#allocation8 + $0x128] sm:$0xff]
        %v2532 = vld [vmem:[#allocation8 + $0x130] sm:$0xff]
        %v2533 = vld [vmem:[#allocation8 + $0x138] sm:$0xff]
        %v2534 = vld [vmem:[#allocation8 + $0x140] sm:$0xff]
        %v2535 = vld [vmem:[#allocation8 + $0x148] sm:$0xff]
        %v2536 = vld [vmem:[#allocation8 + $0x150] sm:$0xff]
        %v2537 = vld [vmem:[#allocation8 + $0x158] sm:$0xff]
        %v2538 = vld [vmem:[#allocation8 + $0x160] sm:$0xff]
        %v2539 = vld [vmem:[#allocation8 + $0x168] sm:$0xff]
        %v2540 = vld [vmem:[#allocation8 + $0x170] sm:$0xff]
        %v2541 = vld [vmem:[#allocation8 + $0x178] sm:$0xff]
        %v2542 = vld [vmem:[#allocation8 + $0x180] sm:$0xff]
        %v2543 = vld [vmem:[#allocation8 + $0x188] sm:$0xff]
        %v2544 = vld [vmem:[#allocation8 + $0x190] sm:$0xff]
        %v2545 = vld [vmem:[#allocation8 + $0x198] sm:$0xff]
        %v2546 = vld [vmem:[#allocation8 + $0x1a0] sm:$0xff]
        %v2547 = vld [vmem:[#allocation8 + $0x1a8] sm:$0xff]
        %v2548 = vld [vmem:[#allocation8 + $0x1b0] sm:$0xff]
        %v2549 = vld [vmem:[#allocation8 + $0x1b8] sm:$0xff]
        %v2550 = vld [vmem:[#allocation8 + $0x1c0] sm:$0xff]
        %v2551 = vld [vmem:[#allocation8 + $0x1c8] sm:$0xff]
        %v2552 = vld [vmem:[#allocation8 + $0x1d0] sm:$0xff]
        %v2553 = vld [vmem:[#allocation8 + $0x1d8] sm:$0xff]
        %v2554 = vld [vmem:[#allocation8 + $0x1e0] sm:$0xff]
        %v2555 = vld [vmem:[#allocation8 + $0x1e8] sm:$0xff]
        %v2556 = vld [vmem:[#allocation8 + $0x1f0] sm:$0xff]
        %v2557 = vld [vmem:[#allocation8 + $0x1f8] sm:$0xff]
        %s2558 = scalar_lea.vmem [#allocation8], 512
        %v2559 = vld [vmem:[%s2558] sm:$0xff]
        %v2560 = vld [vmem:[%s2558 + $0x8] sm:$0xff]
        %v2561 = vld [vmem:[%s2558 + $0x10] sm:$0xff]
        %v2562 = vld [vmem:[%s2558 + $0x18] sm:$0xff]
        %v2563 = vld [vmem:[%s2558 + $0x20] sm:$0xff]
        %v2564 = vld [vmem:[%s2558 + $0x28] sm:$0xff]
        %v2565 = vld [vmem:[%s2558 + $0x30] sm:$0xff]
        %v2566 = vld [vmem:[%s2558 + $0x38] sm:$0xff]
        %v2567 = vld [vmem:[%s2558 + $0x40] sm:$0xff]
        %v2568 = vld [vmem:[%s2558 + $0x48] sm:$0xff]
        %v2569 = vld [vmem:[%s2558 + $0x50] sm:$0xff]
        %v2570 = vld [vmem:[%s2558 + $0x58] sm:$0xff]
        %v2571 = vld [vmem:[%s2558 + $0x60] sm:$0xff]
        %v2572 = vld [vmem:[%s2558 + $0x68] sm:$0xff]
        %v2573 = vld [vmem:[%s2558 + $0x70] sm:$0xff]
        %v2574 = vld [vmem:[%s2558 + $0x78] sm:$0xff]
        %v2575 = vld [vmem:[%s2558 + $0x80] sm:$0xff]
        %v2576 = vld [vmem:[%s2558 + $0x88] sm:$0xff]
        %v2577 = vld [vmem:[%s2558 + $0x90] sm:$0xff]
        %v2578 = vld [vmem:[%s2558 + $0x98] sm:$0xff]
        %v2579 = vld [vmem:[%s2558 + $0xa0] sm:$0xff]
        %v2580 = vld [vmem:[%s2558 + $0xa8] sm:$0xff]
        %v2581 = vld [vmem:[%s2558 + $0xb0] sm:$0xff]
        %v2582 = vld [vmem:[%s2558 + $0xb8] sm:$0xff]
        %v2583 = vld [vmem:[%s2558 + $0xc0] sm:$0xff]
        %v2584 = vld [vmem:[%s2558 + $0xc8] sm:$0xff]
        %v2585 = vld [vmem:[%s2558 + $0xd0] sm:$0xff]
        %v2586 = vld [vmem:[%s2558 + $0xd8] sm:$0xff]
        %v2587 = vld [vmem:[%s2558 + $0xe0] sm:$0xff]
        %v2588 = vld [vmem:[%s2558 + $0xe8] sm:$0xff]
        %v2589 = vld [vmem:[%s2558 + $0xf0] sm:$0xff]
        %v2590 = vld [vmem:[%s2558 + $0xf8] sm:$0xff]
        %v2591 = vld [vmem:[%s2558 + $0x100] sm:$0xff]
        %v2592 = vld [vmem:[%s2558 + $0x108] sm:$0xff]
        %v2593 = vld [vmem:[%s2558 + $0x110] sm:$0xff]
        %v2594 = vld [vmem:[%s2558 + $0x118] sm:$0xff]
        %v2595 = vld [vmem:[%s2558 + $0x120] sm:$0xff]
        %v2596 = vld [vmem:[%s2558 + $0x128] sm:$0xff]
        %v2597 = vld [vmem:[%s2558 + $0x130] sm:$0xff]
        %v2598 = vld [vmem:[%s2558 + $0x138] sm:$0xff]
        %v2599 = vld [vmem:[%s2558 + $0x140] sm:$0xff]
        %v2600 = vld [vmem:[%s2558 + $0x148] sm:$0xff]
        %v2601 = vld [vmem:[%s2558 + $0x150] sm:$0xff]
        %v2602 = vld [vmem:[%s2558 + $0x158] sm:$0xff]
        %v2603 = vld [vmem:[%s2558 + $0x160] sm:$0xff]
        %v2604 = vld [vmem:[%s2558 + $0x168] sm:$0xff]
        %v2605 = vld [vmem:[%s2558 + $0x170] sm:$0xff]
        %v2606 = vld [vmem:[%s2558 + $0x178] sm:$0xff]
        %v2607 = vld [vmem:[%s2558 + $0x180] sm:$0xff]
        %v2608 = vld [vmem:[%s2558 + $0x188] sm:$0xff]
        %v2609 = vld [vmem:[%s2558 + $0x190] sm:$0xff]
        %v2610 = vld [vmem:[%s2558 + $0x198] sm:$0xff]
        %v2611 = vld [vmem:[%s2558 + $0x1a0] sm:$0xff]
        %v2612 = vld [vmem:[%s2558 + $0x1a8] sm:$0xff]
        %v2613 = vld [vmem:[%s2558 + $0x1b0] sm:$0xff]
        %v2614 = vld [vmem:[%s2558 + $0x1b8] sm:$0xff]
        %v2615 = vld [vmem:[%s2558 + $0x1c0] sm:$0xff]
        %v2616 = vld [vmem:[%s2558 + $0x1c8] sm:$0xff]
        %v2617 = vld [vmem:[%s2558 + $0x1d0] sm:$0xff]
        %v2618 = vld [vmem:[%s2558 + $0x1d8] sm:$0xff]
        %v2619 = vld [vmem:[%s2558 + $0x1e0] sm:$0xff]
        %v2620 = vld [vmem:[%s2558 + $0x1e8] sm:$0xff]
        %v2621 = vld [vmem:[%s2558 + $0x1f0] sm:$0xff]
        %v2622 = vld [vmem:[%s2558 + $0x1f8] sm:$0xff]
        %2623 = vmatpush.msra.mxu0 %v2589
        %2624 = vmatpush.msra.mxu0 %v2587
        %2625 = vmatpush.msra.mxu0 %v2585
        %2626 = vmatpush.msra.mxu0 %v2583
        %2627 = vmatpush.msra.mxu0 %v2581
        %2628 = vmatpush.msra.mxu0 %v2579
        %2629 = vmatpush.msra.mxu0 %v2577
        %2630 = vmatpush.msra.mxu0 %v2575
        %2631 = vmatpush.msra.mxu0 %v2573
        %2632 = vmatpush.msra.mxu0 %v2571
        %2633 = vmatpush.msra.mxu0 %v2569
        %2634 = vmatpush.msra.mxu0 %v2567
        %2635 = vmatpush.msra.mxu0 %v2565
        %2636 = vmatpush.msra.mxu0 %v2563
        %2637 = vmatpush.msra.mxu0 %v2561
        %2638 = vmatpush.msra.mxu0 %v2559
        %2639 = vmatmul.f32.gmra.mxu0 %v2492
        %v2640 = vpop.f32.mrf.mxu0
        %v2641 = vadd.f32 0.0, %v2640
        %2642 = vdwg.mxu0
        %2643 = vmatpush.msra.mxu0 %v2621
        %2644 = vmatpush.msra.mxu0 %v2619
        %2645 = vmatpush.msra.mxu0 %v2617
        %2646 = vmatpush.msra.mxu0 %v2615
        %2647 = vmatpush.msra.mxu0 %v2613
        %2648 = vmatpush.msra.mxu0 %v2611
        %2649 = vmatpush.msra.mxu0 %v2609
        %2650 = vmatpush.msra.mxu0 %v2607
        %2651 = vmatpush.msra.mxu0 %v2605
        %2652 = vmatpush.msra.mxu0 %v2603
        %2653 = vmatpush.msra.mxu0 %v2601
        %2654 = vmatpush.msra.mxu0 %v2599
        %2655 = vmatpush.msra.mxu0 %v2597
        %2656 = vmatpush.msra.mxu0 %v2595
        %2657 = vmatpush.msra.mxu0 %v2593
        %2658 = vmatpush.msra.mxu0 %v2591
        %2659 = vmatmul.f32.gmra.mxu0 %v2493
        %v2660 = vpop.f32.mrf.mxu0
        %v2661 = vadd.f32 %v2641, %v2660
        %2662 = vdwg.mxu0
        %2663 = vmatpush.msra.mxu0 %v2590
        %2664 = vmatpush.msra.mxu0 %v2588
        %2665 = vmatpush.msra.mxu0 %v2586
        %2666 = vmatpush.msra.mxu0 %v2584
        %2667 = vmatpush.msra.mxu0 %v2582
        %2668 = vmatpush.msra.mxu0 %v2580
        %2669 = vmatpush.msra.mxu0 %v2578
        %2670 = vmatpush.msra.mxu0 %v2576
        %2671 = vmatpush.msra.mxu0 %v2574
        %2672 = vmatpush.msra.mxu0 %v2572
        %2673 = vmatpush.msra.mxu0 %v2570
        %2674 = vmatpush.msra.mxu0 %v2568
        %2675 = vmatpush.msra.mxu0 %v2566
        %2676 = vmatpush.msra.mxu0 %v2564
        %2677 = vmatpush.msra.mxu0 %v2562
        %2678 = vmatpush.msra.mxu0 %v2560
        %2679 = vmatmul.f32.gmra.mxu0 %v2492
        %v2680 = vpop.f32.mrf.mxu0
        %v2681 = vadd.f32 0.0, %v2680
        %2682 = vdwg.mxu0
        %2683 = vmatpush.msra.mxu0 %v2622
        %2684 = vmatpush.msra.mxu0 %v2620
        %2685 = vmatpush.msra.mxu0 %v2618
        %2686 = vmatpush.msra.mxu0 %v2616
        %2687 = vmatpush.msra.mxu0 %v2614
        %2688 = vmatpush.msra.mxu0 %v2612
        %2689 = vmatpush.msra.mxu0 %v2610
        %2690 = vmatpush.msra.mxu0 %v2608
        %2691 = vmatpush.msra.mxu0 %v2606
        %2692 = vmatpush.msra.mxu0 %v2604
        %2693 = vmatpush.msra.mxu0 %v2602
        %2694 = vmatpush.msra.mxu0 %v2600
        %2695 = vmatpush.msra.mxu0 %v2598
        %2696 = vmatpush.msra.mxu0 %v2596
        %2697 = vmatpush.msra.mxu0 %v2594
        %2698 = vmatpush.msra.mxu0 %v2592
        %2699 = vmatmul.f32.gmra.mxu0 %v2493
        %v2700 = vpop.f32.mrf.mxu0
        %v2701 = vadd.f32 %v2681, %v2700
        %2702 = vdwg.mxu0
        %2703 = vmatpush.msra.mxu0 %v2524
        %2704 = vmatpush.msra.mxu0 %v2522
        %2705 = vmatpush.msra.mxu0 %v2520
        %2706 = vmatpush.msra.mxu0 %v2518
        %2707 = vmatpush.msra.mxu0 %v2516
        %2708 = vmatpush.msra.mxu0 %v2514
        %2709 = vmatpush.msra.mxu0 %v2512
        %2710 = vmatpush.msra.mxu0 %v2510
        %2711 = vmatpush.msra.mxu0 %v2508
        %2712 = vmatpush.msra.mxu0 %v2506
        %2713 = vmatpush.msra.mxu0 %v2504
        %2714 = vmatpush.msra.mxu0 %v2502
        %2715 = vmatpush.msra.mxu0 %v2500
        %2716 = vmatpush.msra.mxu0 %v2498
        %2717 = vmatpush.msra.mxu0 %v2496
        %2718 = vmatpush.msra.mxu0 %v2494
        %2719 = vmatmul.f32.gmra.mxu0 %v2482
        %v2720 = vpop.f32.mrf.mxu0
        %v2721 = vadd.f32 %v2661, %v2720
        %2722 = vdwg.mxu0
        %2723 = vmatpush.msra.mxu0 %v2556
        %2724 = vmatpush.msra.mxu0 %v2554
        %2725 = vmatpush.msra.mxu0 %v2552
        %2726 = vmatpush.msra.mxu0 %v2550
        %2727 = vmatpush.msra.mxu0 %v2548
        %2728 = vmatpush.msra.mxu0 %v2546
        %2729 = vmatpush.msra.mxu0 %v2544
        %2730 = vmatpush.msra.mxu0 %v2542
        %2731 = vmatpush.msra.mxu0 %v2540
        %2732 = vmatpush.msra.mxu0 %v2538
        %2733 = vmatpush.msra.mxu0 %v2536
        %2734 = vmatpush.msra.mxu0 %v2534
        %2735 = vmatpush.msra.mxu0 %v2532
        %2736 = vmatpush.msra.mxu0 %v2530
        %2737 = vmatpush.msra.mxu0 %v2528
        %2738 = vmatpush.msra.mxu0 %v2526
        %2739 = vmatmul.f32.gmra.mxu0 %v2483
        %v2740 = vpop.f32.mrf.mxu0
        %v2741 = vadd.f32 %v2721, %v2740
        %2742 = vdwg.mxu0
        %2743 = vmatpush.msra.mxu0 %v2525
        %2744 = vmatpush.msra.mxu0 %v2523
        %2745 = vmatpush.msra.mxu0 %v2521
        %2746 = vmatpush.msra.mxu0 %v2519
        %2747 = vmatpush.msra.mxu0 %v2517
        %2748 = vmatpush.msra.mxu0 %v2515
        %2749 = vmatpush.msra.mxu0 %v2513
        %2750 = vmatpush.msra.mxu0 %v2511
        %2751 = vmatpush.msra.mxu0 %v2509
        %2752 = vmatpush.msra.mxu0 %v2507
        %2753 = vmatpush.msra.mxu0 %v2505
        %2754 = vmatpush.msra.mxu0 %v2503
        %2755 = vmatpush.msra.mxu0 %v2501
        %2756 = vmatpush.msra.mxu0 %v2499
        %2757 = vmatpush.msra.mxu0 %v2497
        %2758 = vmatpush.msra.mxu0 %v2495
        %2759 = vmatmul.f32.gmra.mxu0 %v2482
        %v2760 = vpop.f32.mrf.mxu0
        %v2761 = vadd.f32 %v2701, %v2760
        %2762 = vdwg.mxu0
        %2763 = vmatpush.msra.mxu0 %v2557
        %2764 = vmatpush.msra.mxu0 %v2555
        %2765 = vmatpush.msra.mxu0 %v2553
        %2766 = vmatpush.msra.mxu0 %v2551
        %2767 = vmatpush.msra.mxu0 %v2549
        %2768 = vmatpush.msra.mxu0 %v2547
        %2769 = vmatpush.msra.mxu0 %v2545
        %2770 = vmatpush.msra.mxu0 %v2543
        %2771 = vmatpush.msra.mxu0 %v2541
        %2772 = vmatpush.msra.mxu0 %v2539
        %2773 = vmatpush.msra.mxu0 %v2537
        %2774 = vmatpush.msra.mxu0 %v2535
        %2775 = vmatpush.msra.mxu0 %v2533
        %2776 = vmatpush.msra.mxu0 %v2531
        %2777 = vmatpush.msra.mxu0 %v2529
        %2778 = vmatpush.msra.mxu0 %v2527
        %2779 = vmatmul.f32.gmra.mxu0 %v2483
        %v2780 = vpop.f32.mrf.mxu0
        %v2781 = vadd.f32 %v2761, %v2780
        %2782 = vdwg.mxu0
        %s2783 = scalar_lea.vmem [#allocation8], 1024
        %v2784 = vld [vmem:[%s2783] sm:$0xff]
        %v2785 = vld [vmem:[%s2783 + $0x8] sm:$0xff]
        %v2786 = vld [vmem:[%s2783 + $0x10] sm:$0xff]
        %v2787 = vld [vmem:[%s2783 + $0x18] sm:$0xff]
        %v2788 = vld [vmem:[%s2783 + $0x20] sm:$0xff]
        %v2789 = vld [vmem:[%s2783 + $0x28] sm:$0xff]
        %v2790 = vld [vmem:[%s2783 + $0x30] sm:$0xff]
        %v2791 = vld [vmem:[%s2783 + $0x38] sm:$0xff]
        %v2792 = vld [vmem:[%s2783 + $0x40] sm:$0xff]
        %v2793 = vld [vmem:[%s2783 + $0x48] sm:$0xff]
        %v2794 = vld [vmem:[%s2783 + $0x50] sm:$0xff]
        %v2795 = vld [vmem:[%s2783 + $0x58] sm:$0xff]
        %v2796 = vld [vmem:[%s2783 + $0x60] sm:$0xff]
        %v2797 = vld [vmem:[%s2783 + $0x68] sm:$0xff]
        %v2798 = vld [vmem:[%s2783 + $0x70] sm:$0xff]
        %v2799 = vld [vmem:[%s2783 + $0x78] sm:$0xff]
        %v2800 = vld [vmem:[%s2783 + $0x80] sm:$0xff]
        %v2801 = vld [vmem:[%s2783 + $0x88] sm:$0xff]
        %v2802 = vld [vmem:[%s2783 + $0x90] sm:$0xff]
        %v2803 = vld [vmem:[%s2783 + $0x98] sm:$0xff]
        %v2804 = vld [vmem:[%s2783 + $0xa0] sm:$0xff]
        %v2805 = vld [vmem:[%s2783 + $0xa8] sm:$0xff]
        %v2806 = vld [vmem:[%s2783 + $0xb0] sm:$0xff]
        %v2807 = vld [vmem:[%s2783 + $0xb8] sm:$0xff]
        %v2808 = vld [vmem:[%s2783 + $0xc0] sm:$0xff]
        %v2809 = vld [vmem:[%s2783 + $0xc8] sm:$0xff]
        %v2810 = vld [vmem:[%s2783 + $0xd0] sm:$0xff]
        %v2811 = vld [vmem:[%s2783 + $0xd8] sm:$0xff]
        %v2812 = vld [vmem:[%s2783 + $0xe0] sm:$0xff]
        %v2813 = vld [vmem:[%s2783 + $0xe8] sm:$0xff]
        %v2814 = vld [vmem:[%s2783 + $0xf0] sm:$0xff]
        %v2815 = vld [vmem:[%s2783 + $0xf8] sm:$0xff]
        %v2816 = vld [vmem:[%s2783 + $0x100] sm:$0xff]
        %v2817 = vld [vmem:[%s2783 + $0x108] sm:$0xff]
        %v2818 = vld [vmem:[%s2783 + $0x110] sm:$0xff]
        %v2819 = vld [vmem:[%s2783 + $0x118] sm:$0xff]
        %v2820 = vld [vmem:[%s2783 + $0x120] sm:$0xff]
        %v2821 = vld [vmem:[%s2783 + $0x128] sm:$0xff]
        %v2822 = vld [vmem:[%s2783 + $0x130] sm:$0xff]
        %v2823 = vld [vmem:[%s2783 + $0x138] sm:$0xff]
        %v2824 = vld [vmem:[%s2783 + $0x140] sm:$0xff]
        %v2825 = vld [vmem:[%s2783 + $0x148] sm:$0xff]
        %v2826 = vld [vmem:[%s2783 + $0x150] sm:$0xff]
        %v2827 = vld [vmem:[%s2783 + $0x158] sm:$0xff]
        %v2828 = vld [vmem:[%s2783 + $0x160] sm:$0xff]
        %v2829 = vld [vmem:[%s2783 + $0x168] sm:$0xff]
        %v2830 = vld [vmem:[%s2783 + $0x170] sm:$0xff]
        %v2831 = vld [vmem:[%s2783 + $0x178] sm:$0xff]
        %v2832 = vld [vmem:[%s2783 + $0x180] sm:$0xff]
        %v2833 = vld [vmem:[%s2783 + $0x188] sm:$0xff]
        %v2834 = vld [vmem:[%s2783 + $0x190] sm:$0xff]
        %v2835 = vld [vmem:[%s2783 + $0x198] sm:$0xff]
        %v2836 = vld [vmem:[%s2783 + $0x1a0] sm:$0xff]
        %v2837 = vld [vmem:[%s2783 + $0x1a8] sm:$0xff]
        %v2838 = vld [vmem:[%s2783 + $0x1b0] sm:$0xff]
        %v2839 = vld [vmem:[%s2783 + $0x1b8] sm:$0xff]
        %v2840 = vld [vmem:[%s2783 + $0x1c0] sm:$0xff]
        %v2841 = vld [vmem:[%s2783 + $0x1c8] sm:$0xff]
        %v2842 = vld [vmem:[%s2783 + $0x1d0] sm:$0xff]
        %v2843 = vld [vmem:[%s2783 + $0x1d8] sm:$0xff]
        %v2844 = vld [vmem:[%s2783 + $0x1e0] sm:$0xff]
        %v2845 = vld [vmem:[%s2783 + $0x1e8] sm:$0xff]
        %v2846 = vld [vmem:[%s2783 + $0x1f0] sm:$0xff]
        %v2847 = vld [vmem:[%s2783 + $0x1f8] sm:$0xff]
        %v2850 = vrot.slane %v2482, 1
        %v2851 = vrot.slane %v2483, 1
        %2854 = vmatpush.msra.mxu0 %v2814
        %2855 = vmatpush.msra.mxu0 %v2812
        %2856 = vmatpush.msra.mxu0 %v2810
        %2857 = vmatpush.msra.mxu0 %v2808
        %2858 = vmatpush.msra.mxu0 %v2806
        %2859 = vmatpush.msra.mxu0 %v2804
        %2860 = vmatpush.msra.mxu0 %v2802
        %2861 = vmatpush.msra.mxu0 %v2800
        %2862 = vmatpush.msra.mxu0 %v2798
        %2863 = vmatpush.msra.mxu0 %v2796
        %2864 = vmatpush.msra.mxu0 %v2794
        %2865 = vmatpush.msra.mxu0 %v2792
        %2866 = vmatpush.msra.mxu0 %v2790
        %2867 = vmatpush.msra.mxu0 %v2788
        %2868 = vmatpush.msra.mxu0 %v2786
        %2869 = vmatpush.msra.mxu0 %v2784
        %2870 = vmatmul.f32.gmra.mxu0 %v2850
        %v2871 = vpop.f32.mrf.mxu0
        %v2872 = vadd.f32 0.0, %v2871
        %2873 = vdwg.mxu0
        %2874 = vmatpush.msra.mxu0 %v2846
        %2875 = vmatpush.msra.mxu0 %v2844
        %2876 = vmatpush.msra.mxu0 %v2842
        %2877 = vmatpush.msra.mxu0 %v2840
        %2878 = vmatpush.msra.mxu0 %v2838
        %2879 = vmatpush.msra.mxu0 %v2836
        %2880 = vmatpush.msra.mxu0 %v2834
        %2881 = vmatpush.msra.mxu0 %v2832
        %2882 = vmatpush.msra.mxu0 %v2830
        %2883 = vmatpush.msra.mxu0 %v2828
        %2884 = vmatpush.msra.mxu0 %v2826
        %2885 = vmatpush.msra.mxu0 %v2824
        %2886 = vmatpush.msra.mxu0 %v2822
        %2887 = vmatpush.msra.mxu0 %v2820
        %2888 = vmatpush.msra.mxu0 %v2818
        %2889 = vmatpush.msra.mxu0 %v2816
        %2890 = vmatmul.f32.gmra.mxu0 %v2851
        %v2891 = vpop.f32.mrf.mxu0
        %v2892 = vadd.f32 %v2872, %v2891
        %2893 = vdwg.mxu0
        %2894 = vmatpush.msra.mxu0 %v2815
        %2895 = vmatpush.msra.mxu0 %v2813
        %2896 = vmatpush.msra.mxu0 %v2811
        %2897 = vmatpush.msra.mxu0 %v2809
        %2898 = vmatpush.msra.mxu0 %v2807
        %2899 = vmatpush.msra.mxu0 %v2805
        %2900 = vmatpush.msra.mxu0 %v2803
        %2901 = vmatpush.msra.mxu0 %v2801
        %2902 = vmatpush.msra.mxu0 %v2799
        %2903 = vmatpush.msra.mxu0 %v2797
        %2904 = vmatpush.msra.mxu0 %v2795
        %2905 = vmatpush.msra.mxu0 %v2793
        %2906 = vmatpush.msra.mxu0 %v2791
        %2907 = vmatpush.msra.mxu0 %v2789
        %2908 = vmatpush.msra.mxu0 %v2787
        %2909 = vmatpush.msra.mxu0 %v2785
        %2910 = vmatmul.f32.gmra.mxu0 %v2850
        %v2911 = vpop.f32.mrf.mxu0
        %v2912 = vadd.f32 0.0, %v2911
        %2913 = vdwg.mxu0
        %2914 = vmatpush.msra.mxu0 %v2847
        %2915 = vmatpush.msra.mxu0 %v2845
        %2916 = vmatpush.msra.mxu0 %v2843
        %2917 = vmatpush.msra.mxu0 %v2841
        %2918 = vmatpush.msra.mxu0 %v2839
        %2919 = vmatpush.msra.mxu0 %v2837
        %2920 = vmatpush.msra.mxu0 %v2835
        %2921 = vmatpush.msra.mxu0 %v2833
        %2922 = vmatpush.msra.mxu0 %v2831
        %2923 = vmatpush.msra.mxu0 %v2829
        %2924 = vmatpush.msra.mxu0 %v2827
        %2925 = vmatpush.msra.mxu0 %v2825
        %2926 = vmatpush.msra.mxu0 %v2823
        %2927 = vmatpush.msra.mxu0 %v2821
        %2928 = vmatpush.msra.mxu0 %v2819
        %2929 = vmatpush.msra.mxu0 %v2817
        %2930 = vmatmul.f32.gmra.mxu0 %v2851
        %v2931 = vpop.f32.mrf.mxu0
        %v2932 = vadd.f32 %v2912, %v2931
        %2933 = vdwg.mxu0
        %v2934 = vadd.f32 %v2741, %v2892
        %v2935 = vadd.f32 %v2781, %v2932
        %s2936 = scalar_lea.vmem [#allocation8], 1536
        %v2937 = vld [vmem:[%s2936] sm:$0xff]
        %v2938 = vld [vmem:[%s2936 + $0x8] sm:$0xff]
        %v2939 = vld [vmem:[%s2936 + $0x10] sm:$0xff]
        %v2940 = vld [vmem:[%s2936 + $0x18] sm:$0xff]
        %v2941 = vld [vmem:[%s2936 + $0x20] sm:$0xff]
        %v2942 = vld [vmem:[%s2936 + $0x28] sm:$0xff]
        %v2943 = vld [vmem:[%s2936 + $0x30] sm:$0xff]
        %v2944 = vld [vmem:[%s2936 + $0x38] sm:$0xff]
        %v2945 = vld [vmem:[%s2936 + $0x40] sm:$0xff]
        %v2946 = vld [vmem:[%s2936 + $0x48] sm:$0xff]
        %v2947 = vld [vmem:[%s2936 + $0x50] sm:$0xff]
        %v2948 = vld [vmem:[%s2936 + $0x58] sm:$0xff]
        %v2949 = vld [vmem:[%s2936 + $0x60] sm:$0xff]
        %v2950 = vld [vmem:[%s2936 + $0x68] sm:$0xff]
        %v2951 = vld [vmem:[%s2936 + $0x70] sm:$0xff]
        %v2952 = vld [vmem:[%s2936 + $0x78] sm:$0xff]
        %v2953 = vld [vmem:[%s2936 + $0x80] sm:$0xff]
        %v2954 = vld [vmem:[%s2936 + $0x88] sm:$0xff]
        %v2955 = vld [vmem:[%s2936 + $0x90] sm:$0xff]
        %v2956 = vld [vmem:[%s2936 + $0x98] sm:$0xff]
        %v2957 = vld [vmem:[%s2936 + $0xa0] sm:$0xff]
        %v2958 = vld [vmem:[%s2936 + $0xa8] sm:$0xff]
        %v2959 = vld [vmem:[%s2936 + $0xb0] sm:$0xff]
        %v2960 = vld [vmem:[%s2936 + $0xb8] sm:$0xff]
        %v2961 = vld [vmem:[%s2936 + $0xc0] sm:$0xff]
        %v2962 = vld [vmem:[%s2936 + $0xc8] sm:$0xff]
        %v2963 = vld [vmem:[%s2936 + $0xd0] sm:$0xff]
        %v2964 = vld [vmem:[%s2936 + $0xd8] sm:$0xff]
        %v2965 = vld [vmem:[%s2936 + $0xe0] sm:$0xff]
        %v2966 = vld [vmem:[%s2936 + $0xe8] sm:$0xff]
        %v2967 = vld [vmem:[%s2936 + $0xf0] sm:$0xff]
        %v2968 = vld [vmem:[%s2936 + $0xf8] sm:$0xff]
        %v2969 = vld [vmem:[%s2936 + $0x100] sm:$0xff]
        %v2970 = vld [vmem:[%s2936 + $0x108] sm:$0xff]
        %v2971 = vld [vmem:[%s2936 + $0x110] sm:$0xff]
        %v2972 = vld [vmem:[%s2936 + $0x118] sm:$0xff]
        %v2973 = vld [vmem:[%s2936 + $0x120] sm:$0xff]
        %v2974 = vld [vmem:[%s2936 + $0x128] sm:$0xff]
        %v2975 = vld [vmem:[%s2936 + $0x130] sm:$0xff]
        %v2976 = vld [vmem:[%s2936 + $0x138] sm:$0xff]
        %v2977 = vld [vmem:[%s2936 + $0x140] sm:$0xff]
        %v2978 = vld [vmem:[%s2936 + $0x148] sm:$0xff]
        %v2979 = vld [vmem:[%s2936 + $0x150] sm:$0xff]
        %v2980 = vld [vmem:[%s2936 + $0x158] sm:$0xff]
        %v2981 = vld [vmem:[%s2936 + $0x160] sm:$0xff]
        %v2982 = vld [vmem:[%s2936 + $0x168] sm:$0xff]
        %v2983 = vld [vmem:[%s2936 + $0x170] sm:$0xff]
        %v2984 = vld [vmem:[%s2936 + $0x178] sm:$0xff]
        %v2985 = vld [vmem:[%s2936 + $0x180] sm:$0xff]
        %v2986 = vld [vmem:[%s2936 + $0x188] sm:$0xff]
        %v2987 = vld [vmem:[%s2936 + $0x190] sm:$0xff]
        %v2988 = vld [vmem:[%s2936 + $0x198] sm:$0xff]
        %v2989 = vld [vmem:[%s2936 + $0x1a0] sm:$0xff]
        %v2990 = vld [vmem:[%s2936 + $0x1a8] sm:$0xff]
        %v2991 = vld [vmem:[%s2936 + $0x1b0] sm:$0xff]
        %v2992 = vld [vmem:[%s2936 + $0x1b8] sm:$0xff]
        %v2993 = vld [vmem:[%s2936 + $0x1c0] sm:$0xff]
        %v2994 = vld [vmem:[%s2936 + $0x1c8] sm:$0xff]
        %v2995 = vld [vmem:[%s2936 + $0x1d0] sm:$0xff]
        %v2996 = vld [vmem:[%s2936 + $0x1d8] sm:$0xff]
        %v2997 = vld [vmem:[%s2936 + $0x1e0] sm:$0xff]
        %v2998 = vld [vmem:[%s2936 + $0x1e8] sm:$0xff]
        %v2999 = vld [vmem:[%s2936 + $0x1f0] sm:$0xff]
        %v3000 = vld [vmem:[%s2936 + $0x1f8] sm:$0xff]
        %v3003 = vrot.slane %v2492, 1
        %v3004 = vrot.slane %v2493, 1
        %3007 = vmatpush.msra.mxu0 %v2967
        %3008 = vmatpush.msra.mxu0 %v2965
        %3009 = vmatpush.msra.mxu0 %v2963
        %3010 = vmatpush.msra.mxu0 %v2961
        %3011 = vmatpush.msra.mxu0 %v2959
        %3012 = vmatpush.msra.mxu0 %v2957
        %3013 = vmatpush.msra.mxu0 %v2955
        %3014 = vmatpush.msra.mxu0 %v2953
        %3015 = vmatpush.msra.mxu0 %v2951
        %3016 = vmatpush.msra.mxu0 %v2949
        %3017 = vmatpush.msra.mxu0 %v2947
        %3018 = vmatpush.msra.mxu0 %v2945
        %3019 = vmatpush.msra.mxu0 %v2943
        %3020 = vmatpush.msra.mxu0 %v2941
        %3021 = vmatpush.msra.mxu0 %v2939
        %3022 = vmatpush.msra.mxu0 %v2937
        %3023 = vmatmul.f32.gmra.mxu0 %v3003
        %v3024 = vpop.f32.mrf.mxu0
        %v3025 = vadd.f32 0.0, %v3024
        %3026 = vdwg.mxu0
        %3027 = vmatpush.msra.mxu0 %v2999
        %3028 = vmatpush.msra.mxu0 %v2997
        %3029 = vmatpush.msra.mxu0 %v2995
        %3030 = vmatpush.msra.mxu0 %v2993
        %3031 = vmatpush.msra.mxu0 %v2991
        %3032 = vmatpush.msra.mxu0 %v2989
        %3033 = vmatpush.msra.mxu0 %v2987
        %3034 = vmatpush.msra.mxu0 %v2985
        %3035 = vmatpush.msra.mxu0 %v2983
        %3036 = vmatpush.msra.mxu0 %v2981
        %3037 = vmatpush.msra.mxu0 %v2979
        %3038 = vmatpush.msra.mxu0 %v2977
        %3039 = vmatpush.msra.mxu0 %v2975
        %3040 = vmatpush.msra.mxu0 %v2973
        %3041 = vmatpush.msra.mxu0 %v2971
        %3042 = vmatpush.msra.mxu0 %v2969
        %3043 = vmatmul.f32.gmra.mxu0 %v3004
        %v3044 = vpop.f32.mrf.mxu0
        %v3045 = vadd.f32 %v3025, %v3044
        %3046 = vdwg.mxu0
        %3047 = vmatpush.msra.mxu0 %v2968
        %3048 = vmatpush.msra.mxu0 %v2966
        %3049 = vmatpush.msra.mxu0 %v2964
        %3050 = vmatpush.msra.mxu0 %v2962
        %3051 = vmatpush.msra.mxu0 %v2960
        %3052 = vmatpush.msra.mxu0 %v2958
        %3053 = vmatpush.msra.mxu0 %v2956
        %3054 = vmatpush.msra.mxu0 %v2954
        %3055 = vmatpush.msra.mxu0 %v2952
        %3056 = vmatpush.msra.mxu0 %v2950
        %3057 = vmatpush.msra.mxu0 %v2948
        %3058 = vmatpush.msra.mxu0 %v2946
        %3059 = vmatpush.msra.mxu0 %v2944
        %3060 = vmatpush.msra.mxu0 %v2942
        %3061 = vmatpush.msra.mxu0 %v2940
        %3062 = vmatpush.msra.mxu0 %v2938
        %3063 = vmatmul.f32.gmra.mxu0 %v3003
        %v3064 = vpop.f32.mrf.mxu0
        %v3065 = vadd.f32 0.0, %v3064
        %3066 = vdwg.mxu0
        %3067 = vmatpush.msra.mxu0 %v3000
        %3068 = vmatpush.msra.mxu0 %v2998
        %3069 = vmatpush.msra.mxu0 %v2996
        %3070 = vmatpush.msra.mxu0 %v2994
        %3071 = vmatpush.msra.mxu0 %v2992
        %3072 = vmatpush.msra.mxu0 %v2990
        %3073 = vmatpush.msra.mxu0 %v2988
        %3074 = vmatpush.msra.mxu0 %v2986
        %3075 = vmatpush.msra.mxu0 %v2984
        %3076 = vmatpush.msra.mxu0 %v2982
        %3077 = vmatpush.msra.mxu0 %v2980
        %3078 = vmatpush.msra.mxu0 %v2978
        %3079 = vmatpush.msra.mxu0 %v2976
        %3080 = vmatpush.msra.mxu0 %v2974
        %3081 = vmatpush.msra.mxu0 %v2972
        %3082 = vmatpush.msra.mxu0 %v2970
        %3083 = vmatmul.f32.gmra.mxu0 %v3004
        %v3084 = vpop.f32.mrf.mxu0
        %v3085 = vadd.f32 %v3065, %v3084
        %3086 = vdwg.mxu0
        %v3087 = vadd.f32 %v2934, %v3045
        %v3088 = vadd.f32 %v2935, %v3085
        %s3089 = scalar_lea.vmem [#allocation8], 2048
        %v3090 = vld [vmem:[%s3089] sm:$0xff]
        %v3091 = vld [vmem:[%s3089 + $0x8] sm:$0xff]
        %v3092 = vld [vmem:[%s3089 + $0x10] sm:$0xff]
        %v3093 = vld [vmem:[%s3089 + $0x18] sm:$0xff]
        %v3094 = vld [vmem:[%s3089 + $0x20] sm:$0xff]
        %v3095 = vld [vmem:[%s3089 + $0x28] sm:$0xff]
        %v3096 = vld [vmem:[%s3089 + $0x30] sm:$0xff]
        %v3097 = vld [vmem:[%s3089 + $0x38] sm:$0xff]
        %v3098 = vld [vmem:[%s3089 + $0x40] sm:$0xff]
        %v3099 = vld [vmem:[%s3089 + $0x48] sm:$0xff]
        %v3100 = vld [vmem:[%s3089 + $0x50] sm:$0xff]
        %v3101 = vld [vmem:[%s3089 + $0x58] sm:$0xff]
        %v3102 = vld [vmem:[%s3089 + $0x60] sm:$0xff]
        %v3103 = vld [vmem:[%s3089 + $0x68] sm:$0xff]
        %v3104 = vld [vmem:[%s3089 + $0x70] sm:$0xff]
        %v3105 = vld [vmem:[%s3089 + $0x78] sm:$0xff]
        %v3106 = vld [vmem:[%s3089 + $0x80] sm:$0xff]
        %v3107 = vld [vmem:[%s3089 + $0x88] sm:$0xff]
        %v3108 = vld [vmem:[%s3089 + $0x90] sm:$0xff]
        %v3109 = vld [vmem:[%s3089 + $0x98] sm:$0xff]
        %v3110 = vld [vmem:[%s3089 + $0xa0] sm:$0xff]
        %v3111 = vld [vmem:[%s3089 + $0xa8] sm:$0xff]
        %v3112 = vld [vmem:[%s3089 + $0xb0] sm:$0xff]
        %v3113 = vld [vmem:[%s3089 + $0xb8] sm:$0xff]
        %v3114 = vld [vmem:[%s3089 + $0xc0] sm:$0xff]
        %v3115 = vld [vmem:[%s3089 + $0xc8] sm:$0xff]
        %v3116 = vld [vmem:[%s3089 + $0xd0] sm:$0xff]
        %v3117 = vld [vmem:[%s3089 + $0xd8] sm:$0xff]
        %v3118 = vld [vmem:[%s3089 + $0xe0] sm:$0xff]
        %v3119 = vld [vmem:[%s3089 + $0xe8] sm:$0xff]
        %v3120 = vld [vmem:[%s3089 + $0xf0] sm:$0xff]
        %v3121 = vld [vmem:[%s3089 + $0xf8] sm:$0xff]
        %v3122 = vld [vmem:[%s3089 + $0x100] sm:$0xff]
        %v3123 = vld [vmem:[%s3089 + $0x108] sm:$0xff]
        %v3124 = vld [vmem:[%s3089 + $0x110] sm:$0xff]
        %v3125 = vld [vmem:[%s3089 + $0x118] sm:$0xff]
        %v3126 = vld [vmem:[%s3089 + $0x120] sm:$0xff]
        %v3127 = vld [vmem:[%s3089 + $0x128] sm:$0xff]
        %v3128 = vld [vmem:[%s3089 + $0x130] sm:$0xff]
        %v3129 = vld [vmem:[%s3089 + $0x138] sm:$0xff]
        %v3130 = vld [vmem:[%s3089 + $0x140] sm:$0xff]
        %v3131 = vld [vmem:[%s3089 + $0x148] sm:$0xff]
        %v3132 = vld [vmem:[%s3089 + $0x150] sm:$0xff]
        %v3133 = vld [vmem:[%s3089 + $0x158] sm:$0xff]
        %v3134 = vld [vmem:[%s3089 + $0x160] sm:$0xff]
        %v3135 = vld [vmem:[%s3089 + $0x168] sm:$0xff]
        %v3136 = vld [vmem:[%s3089 + $0x170] sm:$0xff]
        %v3137 = vld [vmem:[%s3089 + $0x178] sm:$0xff]
        %v3138 = vld [vmem:[%s3089 + $0x180] sm:$0xff]
        %v3139 = vld [vmem:[%s3089 + $0x188] sm:$0xff]
        %v3140 = vld [vmem:[%s3089 + $0x190] sm:$0xff]
        %v3141 = vld [vmem:[%s3089 + $0x198] sm:$0xff]
        %v3142 = vld [vmem:[%s3089 + $0x1a0] sm:$0xff]
        %v3143 = vld [vmem:[%s3089 + $0x1a8] sm:$0xff]
        %v3144 = vld [vmem:[%s3089 + $0x1b0] sm:$0xff]
        %v3145 = vld [vmem:[%s3089 + $0x1b8] sm:$0xff]
        %v3146 = vld [vmem:[%s3089 + $0x1c0] sm:$0xff]
        %v3147 = vld [vmem:[%s3089 + $0x1c8] sm:$0xff]
        %v3148 = vld [vmem:[%s3089 + $0x1d0] sm:$0xff]
        %v3149 = vld [vmem:[%s3089 + $0x1d8] sm:$0xff]
        %v3150 = vld [vmem:[%s3089 + $0x1e0] sm:$0xff]
        %v3151 = vld [vmem:[%s3089 + $0x1e8] sm:$0xff]
        %v3152 = vld [vmem:[%s3089 + $0x1f0] sm:$0xff]
        %v3153 = vld [vmem:[%s3089 + $0x1f8] sm:$0xff]
        %v3154 = vrot.slane %v2482, 2
        %v3155 = vrot.slane %v2483, 2
        %3158 = vmatpush.msra.mxu0 %v3120
        %3159 = vmatpush.msra.mxu0 %v3118
        %3160 = vmatpush.msra.mxu0 %v3116
        %3161 = vmatpush.msra.mxu0 %v3114
        %3162 = vmatpush.msra.mxu0 %v3112
        %3163 = vmatpush.msra.mxu0 %v3110
        %3164 = vmatpush.msra.mxu0 %v3108
        %3165 = vmatpush.msra.mxu0 %v3106
        %3166 = vmatpush.msra.mxu0 %v3104
        %3167 = vmatpush.msra.mxu0 %v3102
        %3168 = vmatpush.msra.mxu0 %v3100
        %3169 = vmatpush.msra.mxu0 %v3098
        %3170 = vmatpush.msra.mxu0 %v3096
        %3171 = vmatpush.msra.mxu0 %v3094
        %3172 = vmatpush.msra.mxu0 %v3092
        %3173 = vmatpush.msra.mxu0 %v3090
        %3174 = vmatmul.f32.gmra.mxu0 %v3154
        %v3175 = vpop.f32.mrf.mxu0
        %v3176 = vadd.f32 0.0, %v3175
        %3177 = vdwg.mxu0
        %3178 = vmatpush.msra.mxu0 %v3152
        %3179 = vmatpush.msra.mxu0 %v3150
        %3180 = vmatpush.msra.mxu0 %v3148
        %3181 = vmatpush.msra.mxu0 %v3146
        %3182 = vmatpush.msra.mxu0 %v3144
        %3183 = vmatpush.msra.mxu0 %v3142
        %3184 = vmatpush.msra.mxu0 %v3140
        %3185 = vmatpush.msra.mxu0 %v3138
        %3186 = vmatpush.msra.mxu0 %v3136
        %3187 = vmatpush.msra.mxu0 %v3134
        %3188 = vmatpush.msra.mxu0 %v3132
        %3189 = vmatpush.msra.mxu0 %v3130
        %3190 = vmatpush.msra.mxu0 %v3128
        %3191 = vmatpush.msra.mxu0 %v3126
        %3192 = vmatpush.msra.mxu0 %v3124
        %3193 = vmatpush.msra.mxu0 %v3122
        %3194 = vmatmul.f32.gmra.mxu0 %v3155
        %v3195 = vpop.f32.mrf.mxu0
        %v3196 = vadd.f32 %v3176, %v3195
        %3197 = vdwg.mxu0
        %3198 = vmatpush.msra.mxu0 %v3121
        %3199 = vmatpush.msra.mxu0 %v3119
        %3200 = vmatpush.msra.mxu0 %v3117
        %3201 = vmatpush.msra.mxu0 %v3115
        %3202 = vmatpush.msra.mxu0 %v3113
        %3203 = vmatpush.msra.mxu0 %v3111
        %3204 = vmatpush.msra.mxu0 %v3109
        %3205 = vmatpush.msra.mxu0 %v3107
        %3206 = vmatpush.msra.mxu0 %v3105
        %3207 = vmatpush.msra.mxu0 %v3103
        %3208 = vmatpush.msra.mxu0 %v3101
        %3209 = vmatpush.msra.mxu0 %v3099
        %3210 = vmatpush.msra.mxu0 %v3097
        %3211 = vmatpush.msra.mxu0 %v3095
        %3212 = vmatpush.msra.mxu0 %v3093
        %3213 = vmatpush.msra.mxu0 %v3091
        %3214 = vmatmul.f32.gmra.mxu0 %v3154
        %v3215 = vpop.f32.mrf.mxu0
        %v3216 = vadd.f32 0.0, %v3215
        %3217 = vdwg.mxu0
        %3218 = vmatpush.msra.mxu0 %v3153
        %3219 = vmatpush.msra.mxu0 %v3151
        %3220 = vmatpush.msra.mxu0 %v3149
        %3221 = vmatpush.msra.mxu0 %v3147
        %3222 = vmatpush.msra.mxu0 %v3145
        %3223 = vmatpush.msra.mxu0 %v3143
        %3224 = vmatpush.msra.mxu0 %v3141
        %3225 = vmatpush.msra.mxu0 %v3139
        %3226 = vmatpush.msra.mxu0 %v3137
        %3227 = vmatpush.msra.mxu0 %v3135
        %3228 = vmatpush.msra.mxu0 %v3133
        %3229 = vmatpush.msra.mxu0 %v3131
        %3230 = vmatpush.msra.mxu0 %v3129
        %3231 = vmatpush.msra.mxu0 %v3127
        %3232 = vmatpush.msra.mxu0 %v3125
        %3233 = vmatpush.msra.mxu0 %v3123
        %3234 = vmatmul.f32.gmra.mxu0 %v3155
        %v3235 = vpop.f32.mrf.mxu0
        %v3236 = vadd.f32 %v3216, %v3235
        %3237 = vdwg.mxu0
        %v3238 = vadd.f32 %v3087, %v3196
        %v3239 = vadd.f32 %v3088, %v3236
        %3240 = vmatpush.msra.mxu0 %v2589
        %3241 = vmatpush.msra.mxu0 %v2587
        %3242 = vmatpush.msra.mxu0 %v2585
        %3243 = vmatpush.msra.mxu0 %v2583
        %3244 = vmatpush.msra.mxu0 %v2581
        %3245 = vmatpush.msra.mxu0 %v2579
        %3246 = vmatpush.msra.mxu0 %v2577
        %3247 = vmatpush.msra.mxu0 %v2575
        %3248 = vmatpush.msra.mxu0 %v2573
        %3249 = vmatpush.msra.mxu0 %v2571
        %3250 = vmatpush.msra.mxu0 %v2569
        %3251 = vmatpush.msra.mxu0 %v2567
        %3252 = vmatpush.msra.mxu0 %v2565
        %3253 = vmatpush.msra.mxu0 %v2563
        %3254 = vmatpush.msra.mxu0 %v2561
        %3255 = vmatpush.msra.mxu0 %v2559
        %3256 = vmatmul.f32.gmra.mxu0 %v2850
        %v3257 = vpop.f32.mrf.mxu0
        %v3258 = vadd.f32 0.0, %v3257
        %3259 = vdwg.mxu0
        %3260 = vmatpush.msra.mxu0 %v2621
        %3261 = vmatpush.msra.mxu0 %v2619
        %3262 = vmatpush.msra.mxu0 %v2617
        %3263 = vmatpush.msra.mxu0 %v2615
        %3264 = vmatpush.msra.mxu0 %v2613
        %3265 = vmatpush.msra.mxu0 %v2611
        %3266 = vmatpush.msra.mxu0 %v2609
        %3267 = vmatpush.msra.mxu0 %v2607
        %3268 = vmatpush.msra.mxu0 %v2605
        %3269 = vmatpush.msra.mxu0 %v2603
        %3270 = vmatpush.msra.mxu0 %v2601
        %3271 = vmatpush.msra.mxu0 %v2599
        %3272 = vmatpush.msra.mxu0 %v2597
        %3273 = vmatpush.msra.mxu0 %v2595
        %3274 = vmatpush.msra.mxu0 %v2593
        %3275 = vmatpush.msra.mxu0 %v2591
        %3276 = vmatmul.f32.gmra.mxu0 %v2851
        %v3277 = vpop.f32.mrf.mxu0
        %v3278 = vadd.f32 %v3258, %v3277
        %3279 = vdwg.mxu0
        %3280 = vmatpush.msra.mxu0 %v2590
        %3281 = vmatpush.msra.mxu0 %v2588
        %3282 = vmatpush.msra.mxu0 %v2586
        %3283 = vmatpush.msra.mxu0 %v2584
        %3284 = vmatpush.msra.mxu0 %v2582
        %3285 = vmatpush.msra.mxu0 %v2580
        %3286 = vmatpush.msra.mxu0 %v2578
        %3287 = vmatpush.msra.mxu0 %v2576
        %3288 = vmatpush.msra.mxu0 %v2574
        %3289 = vmatpush.msra.mxu0 %v2572
        %3290 = vmatpush.msra.mxu0 %v2570
        %3291 = vmatpush.msra.mxu0 %v2568
        %3292 = vmatpush.msra.mxu0 %v2566
        %3293 = vmatpush.msra.mxu0 %v2564
        %3294 = vmatpush.msra.mxu0 %v2562
        %3295 = vmatpush.msra.mxu0 %v2560
        %3296 = vmatmul.f32.gmra.mxu0 %v2850
        %v3297 = vpop.f32.mrf.mxu0
        %v3298 = vadd.f32 0.0, %v3297
        %3299 = vdwg.mxu0
        %3300 = vmatpush.msra.mxu0 %v2622
        %3301 = vmatpush.msra.mxu0 %v2620
        %3302 = vmatpush.msra.mxu0 %v2618
        %3303 = vmatpush.msra.mxu0 %v2616
        %3304 = vmatpush.msra.mxu0 %v2614
        %3305 = vmatpush.msra.mxu0 %v2612
        %3306 = vmatpush.msra.mxu0 %v2610
        %3307 = vmatpush.msra.mxu0 %v2608
        %3308 = vmatpush.msra.mxu0 %v2606
        %3309 = vmatpush.msra.mxu0 %v2604
        %3310 = vmatpush.msra.mxu0 %v2602
        %3311 = vmatpush.msra.mxu0 %v2600
        %3312 = vmatpush.msra.mxu0 %v2598
        %3313 = vmatpush.msra.mxu0 %v2596
        %3314 = vmatpush.msra.mxu0 %v2594
        %3315 = vmatpush.msra.mxu0 %v2592
        %3316 = vmatmul.f32.gmra.mxu0 %v2851
        %v3317 = vpop.f32.mrf.mxu0
        %v3318 = vadd.f32 %v3298, %v3317
        %3319 = vdwg.mxu0
        %3320 = vmatpush.msra.mxu0 %v2524
        %3321 = vmatpush.msra.mxu0 %v2522
        %3322 = vmatpush.msra.mxu0 %v2520
        %3323 = vmatpush.msra.mxu0 %v2518
        %3324 = vmatpush.msra.mxu0 %v2516
        %3325 = vmatpush.msra.mxu0 %v2514
        %3326 = vmatpush.msra.mxu0 %v2512
        %3327 = vmatpush.msra.mxu0 %v2510
        %3328 = vmatpush.msra.mxu0 %v2508
        %3329 = vmatpush.msra.mxu0 %v2506
        %3330 = vmatpush.msra.mxu0 %v2504
        %3331 = vmatpush.msra.mxu0 %v2502
        %3332 = vmatpush.msra.mxu0 %v2500
        %3333 = vmatpush.msra.mxu0 %v2498
        %3334 = vmatpush.msra.mxu0 %v2496
        %3335 = vmatpush.msra.mxu0 %v2494
        %3336 = vmatmul.f32.gmra.mxu0 %v2492
        %v3337 = vpop.f32.mrf.mxu0
        %v3338 = vadd.f32 %v3278, %v3337
        %3339 = vdwg.mxu0
        %3340 = vmatpush.msra.mxu0 %v2556
        %3341 = vmatpush.msra.mxu0 %v2554
        %3342 = vmatpush.msra.mxu0 %v2552
        %3343 = vmatpush.msra.mxu0 %v2550
        %3344 = vmatpush.msra.mxu0 %v2548
        %3345 = vmatpush.msra.mxu0 %v2546
        %3346 = vmatpush.msra.mxu0 %v2544
        %3347 = vmatpush.msra.mxu0 %v2542
        %3348 = vmatpush.msra.mxu0 %v2540
        %3349 = vmatpush.msra.mxu0 %v2538
        %3350 = vmatpush.msra.mxu0 %v2536
        %3351 = vmatpush.msra.mxu0 %v2534
        %3352 = vmatpush.msra.mxu0 %v2532
        %3353 = vmatpush.msra.mxu0 %v2530
        %3354 = vmatpush.msra.mxu0 %v2528
        %3355 = vmatpush.msra.mxu0 %v2526
        %3356 = vmatmul.f32.gmra.mxu0 %v2493
        %v3357 = vpop.f32.mrf.mxu0
        %v3358 = vadd.f32 %v3338, %v3357
        %3359 = vdwg.mxu0
        %3360 = vmatpush.msra.mxu0 %v2525
        %3361 = vmatpush.msra.mxu0 %v2523
        %3362 = vmatpush.msra.mxu0 %v2521
        %3363 = vmatpush.msra.mxu0 %v2519
        %3364 = vmatpush.msra.mxu0 %v2517
        %3365 = vmatpush.msra.mxu0 %v2515
        %3366 = vmatpush.msra.mxu0 %v2513
        %3367 = vmatpush.msra.mxu0 %v2511
        %3368 = vmatpush.msra.mxu0 %v2509
        %3369 = vmatpush.msra.mxu0 %v2507
        %3370 = vmatpush.msra.mxu0 %v2505
        %3371 = vmatpush.msra.mxu0 %v2503
        %3372 = vmatpush.msra.mxu0 %v2501
        %3373 = vmatpush.msra.mxu0 %v2499
        %3374 = vmatpush.msra.mxu0 %v2497
        %3375 = vmatpush.msra.mxu0 %v2495
        %3376 = vmatmul.f32.gmra.mxu0 %v2492
        %v3377 = vpop.f32.mrf.mxu0
        %v3378 = vadd.f32 %v3318, %v3377
        %3379 = vdwg.mxu0
        %3380 = vmatpush.msra.mxu0 %v2557
        %3381 = vmatpush.msra.mxu0 %v2555
        %3382 = vmatpush.msra.mxu0 %v2553
        %3383 = vmatpush.msra.mxu0 %v2551
        %3384 = vmatpush.msra.mxu0 %v2549
        %3385 = vmatpush.msra.mxu0 %v2547
        %3386 = vmatpush.msra.mxu0 %v2545
        %3387 = vmatpush.msra.mxu0 %v2543
        %3388 = vmatpush.msra.mxu0 %v2541
        %3389 = vmatpush.msra.mxu0 %v2539
        %3390 = vmatpush.msra.mxu0 %v2537
        %3391 = vmatpush.msra.mxu0 %v2535
        %3392 = vmatpush.msra.mxu0 %v2533
        %3393 = vmatpush.msra.mxu0 %v2531
        %3394 = vmatpush.msra.mxu0 %v2529
        %3395 = vmatpush.msra.mxu0 %v2527
        %3396 = vmatmul.f32.gmra.mxu0 %v2493
        %v3397 = vpop.f32.mrf.mxu0
        %v3398 = vadd.f32 %v3378, %v3397
        %3399 = vdwg.mxu0
        %3400 = vmatpush.msra.mxu0 %v2814
        %3401 = vmatpush.msra.mxu0 %v2812
        %3402 = vmatpush.msra.mxu0 %v2810
        %3403 = vmatpush.msra.mxu0 %v2808
        %3404 = vmatpush.msra.mxu0 %v2806
        %3405 = vmatpush.msra.mxu0 %v2804
        %3406 = vmatpush.msra.mxu0 %v2802
        %3407 = vmatpush.msra.mxu0 %v2800
        %3408 = vmatpush.msra.mxu0 %v2798
        %3409 = vmatpush.msra.mxu0 %v2796
        %3410 = vmatpush.msra.mxu0 %v2794
        %3411 = vmatpush.msra.mxu0 %v2792
        %3412 = vmatpush.msra.mxu0 %v2790
        %3413 = vmatpush.msra.mxu0 %v2788
        %3414 = vmatpush.msra.mxu0 %v2786
        %3415 = vmatpush.msra.mxu0 %v2784
        %3416 = vmatmul.f32.gmra.mxu0 %v3003
        %v3417 = vpop.f32.mrf.mxu0
        %v3418 = vadd.f32 0.0, %v3417
        %3419 = vdwg.mxu0
        %3420 = vmatpush.msra.mxu0 %v2846
        %3421 = vmatpush.msra.mxu0 %v2844
        %3422 = vmatpush.msra.mxu0 %v2842
        %3423 = vmatpush.msra.mxu0 %v2840
        %3424 = vmatpush.msra.mxu0 %v2838
        %3425 = vmatpush.msra.mxu0 %v2836
        %3426 = vmatpush.msra.mxu0 %v2834
        %3427 = vmatpush.msra.mxu0 %v2832
        %3428 = vmatpush.msra.mxu0 %v2830
        %3429 = vmatpush.msra.mxu0 %v2828
        %3430 = vmatpush.msra.mxu0 %v2826
        %3431 = vmatpush.msra.mxu0 %v2824
        %3432 = vmatpush.msra.mxu0 %v2822
        %3433 = vmatpush.msra.mxu0 %v2820
        %3434 = vmatpush.msra.mxu0 %v2818
        %3435 = vmatpush.msra.mxu0 %v2816
        %3436 = vmatmul.f32.gmra.mxu0 %v3004
        %v3437 = vpop.f32.mrf.mxu0
        %v3438 = vadd.f32 %v3418, %v3437
        %3439 = vdwg.mxu0
        %3440 = vmatpush.msra.mxu0 %v2815
        %3441 = vmatpush.msra.mxu0 %v2813
        %3442 = vmatpush.msra.mxu0 %v2811
        %3443 = vmatpush.msra.mxu0 %v2809
        %3444 = vmatpush.msra.mxu0 %v2807
        %3445 = vmatpush.msra.mxu0 %v2805
        %3446 = vmatpush.msra.mxu0 %v2803
        %3447 = vmatpush.msra.mxu0 %v2801
        %3448 = vmatpush.msra.mxu0 %v2799
        %3449 = vmatpush.msra.mxu0 %v2797
        %3450 = vmatpush.msra.mxu0 %v2795
        %3451 = vmatpush.msra.mxu0 %v2793
        %3452 = vmatpush.msra.mxu0 %v2791
        %3453 = vmatpush.msra.mxu0 %v2789
        %3454 = vmatpush.msra.mxu0 %v2787
        %3455 = vmatpush.msra.mxu0 %v2785
        %3456 = vmatmul.f32.gmra.mxu0 %v3003
        %v3457 = vpop.f32.mrf.mxu0
        %v3458 = vadd.f32 0.0, %v3457
        %3459 = vdwg.mxu0
        %3460 = vmatpush.msra.mxu0 %v2847
        %3461 = vmatpush.msra.mxu0 %v2845
        %3462 = vmatpush.msra.mxu0 %v2843
        %3463 = vmatpush.msra.mxu0 %v2841
        %3464 = vmatpush.msra.mxu0 %v2839
        %3465 = vmatpush.msra.mxu0 %v2837
        %3466 = vmatpush.msra.mxu0 %v2835
        %3467 = vmatpush.msra.mxu0 %v2833
        %3468 = vmatpush.msra.mxu0 %v2831
        %3469 = vmatpush.msra.mxu0 %v2829
        %3470 = vmatpush.msra.mxu0 %v2827
        %3471 = vmatpush.msra.mxu0 %v2825
        %3472 = vmatpush.msra.mxu0 %v2823
        %3473 = vmatpush.msra.mxu0 %v2821
        %3474 = vmatpush.msra.mxu0 %v2819
        %3475 = vmatpush.msra.mxu0 %v2817
        %3476 = vmatmul.f32.gmra.mxu0 %v3004
        %v3477 = vpop.f32.mrf.mxu0
        %v3478 = vadd.f32 %v3458, %v3477
        %3479 = vdwg.mxu0
        %v3480 = vadd.f32 %v3358, %v3438
        %v3481 = vadd.f32 %v3398, %v3478
        %3482 = vmatpush.msra.mxu0 %v2967
        %3483 = vmatpush.msra.mxu0 %v2965
        %3484 = vmatpush.msra.mxu0 %v2963
        %3485 = vmatpush.msra.mxu0 %v2961
        %3486 = vmatpush.msra.mxu0 %v2959
        %3487 = vmatpush.msra.mxu0 %v2957
        %3488 = vmatpush.msra.mxu0 %v2955
        %3489 = vmatpush.msra.mxu0 %v2953
        %3490 = vmatpush.msra.mxu0 %v2951
        %3491 = vmatpush.msra.mxu0 %v2949
        %3492 = vmatpush.msra.mxu0 %v2947
        %3493 = vmatpush.msra.mxu0 %v2945
        %3494 = vmatpush.msra.mxu0 %v2943
        %3495 = vmatpush.msra.mxu0 %v2941
        %3496 = vmatpush.msra.mxu0 %v2939
        %3497 = vmatpush.msra.mxu0 %v2937
        %3498 = vmatmul.f32.gmra.mxu0 %v3154
        %v3499 = vpop.f32.mrf.mxu0
        %v3500 = vadd.f32 0.0, %v3499
        %3501 = vdwg.mxu0
        %3502 = vmatpush.msra.mxu0 %v2999
        %3503 = vmatpush.msra.mxu0 %v2997
        %3504 = vmatpush.msra.mxu0 %v2995
        %3505 = vmatpush.msra.mxu0 %v2993
        %3506 = vmatpush.msra.mxu0 %v2991
        %3507 = vmatpush.msra.mxu0 %v2989
        %3508 = vmatpush.msra.mxu0 %v2987
        %3509 = vmatpush.msra.mxu0 %v2985
        %3510 = vmatpush.msra.mxu0 %v2983
        %3511 = vmatpush.msra.mxu0 %v2981
        %3512 = vmatpush.msra.mxu0 %v2979
        %3513 = vmatpush.msra.mxu0 %v2977
        %3514 = vmatpush.msra.mxu0 %v2975
        %3515 = vmatpush.msra.mxu0 %v2973
        %3516 = vmatpush.msra.mxu0 %v2971
        %3517 = vmatpush.msra.mxu0 %v2969
        %3518 = vmatmul.f32.gmra.mxu0 %v3155
        %v3519 = vpop.f32.mrf.mxu0
        %v3520 = vadd.f32 %v3500, %v3519
        %3521 = vdwg.mxu0
        %3522 = vmatpush.msra.mxu0 %v2968
        %3523 = vmatpush.msra.mxu0 %v2966
        %3524 = vmatpush.msra.mxu0 %v2964
        %3525 = vmatpush.msra.mxu0 %v2962
        %3526 = vmatpush.msra.mxu0 %v2960
        %3527 = vmatpush.msra.mxu0 %v2958
        %3528 = vmatpush.msra.mxu0 %v2956
        %3529 = vmatpush.msra.mxu0 %v2954
        %3530 = vmatpush.msra.mxu0 %v2952
        %3531 = vmatpush.msra.mxu0 %v2950
        %3532 = vmatpush.msra.mxu0 %v2948
        %3533 = vmatpush.msra.mxu0 %v2946
        %3534 = vmatpush.msra.mxu0 %v2944
        %3535 = vmatpush.msra.mxu0 %v2942
        %3536 = vmatpush.msra.mxu0 %v2940
        %3537 = vmatpush.msra.mxu0 %v2938
        %3538 = vmatmul.f32.gmra.mxu0 %v3154
        %v3539 = vpop.f32.mrf.mxu0
        %v3540 = vadd.f32 0.0, %v3539
        %3541 = vdwg.mxu0
        %3542 = vmatpush.msra.mxu0 %v3000
        %3543 = vmatpush.msra.mxu0 %v2998
        %3544 = vmatpush.msra.mxu0 %v2996
        %3545 = vmatpush.msra.mxu0 %v2994
        %3546 = vmatpush.msra.mxu0 %v2992
        %3547 = vmatpush.msra.mxu0 %v2990
        %3548 = vmatpush.msra.mxu0 %v2988
        %3549 = vmatpush.msra.mxu0 %v2986
        %3550 = vmatpush.msra.mxu0 %v2984
        %3551 = vmatpush.msra.mxu0 %v2982
        %3552 = vmatpush.msra.mxu0 %v2980
        %3553 = vmatpush.msra.mxu0 %v2978
        %3554 = vmatpush.msra.mxu0 %v2976
        %3555 = vmatpush.msra.mxu0 %v2974
        %3556 = vmatpush.msra.mxu0 %v2972
        %3557 = vmatpush.msra.mxu0 %v2970
        %3558 = vmatmul.f32.gmra.mxu0 %v3155
        %v3559 = vpop.f32.mrf.mxu0
        %v3560 = vadd.f32 %v3540, %v3559
        %3561 = vdwg.mxu0
        %v3562 = vadd.f32 %v3480, %v3520
        %v3563 = vadd.f32 %v3481, %v3560
        %v3564 = vrot.slane %v2492, 2
        %v3565 = vrot.slane %v2493, 2
        %3568 = vmatpush.msra.mxu0 %v3120
        %3569 = vmatpush.msra.mxu0 %v3118
        %3570 = vmatpush.msra.mxu0 %v3116
        %3571 = vmatpush.msra.mxu0 %v3114
        %3572 = vmatpush.msra.mxu0 %v3112
        %3573 = vmatpush.msra.mxu0 %v3110
        %3574 = vmatpush.msra.mxu0 %v3108
        %3575 = vmatpush.msra.mxu0 %v3106
        %3576 = vmatpush.msra.mxu0 %v3104
        %3577 = vmatpush.msra.mxu0 %v3102
        %3578 = vmatpush.msra.mxu0 %v3100
        %3579 = vmatpush.msra.mxu0 %v3098
        %3580 = vmatpush.msra.mxu0 %v3096
        %3581 = vmatpush.msra.mxu0 %v3094
        %3582 = vmatpush.msra.mxu0 %v3092
        %3583 = vmatpush.msra.mxu0 %v3090
        %3584 = vmatmul.f32.gmra.mxu0 %v3564
        %v3585 = vpop.f32.mrf.mxu0
        %v3586 = vadd.f32 0.0, %v3585
        %3587 = vdwg.mxu0
        %3588 = vmatpush.msra.mxu0 %v3152
        %3589 = vmatpush.msra.mxu0 %v3150
        %3590 = vmatpush.msra.mxu0 %v3148
        %3591 = vmatpush.msra.mxu0 %v3146
        %3592 = vmatpush.msra.mxu0 %v3144
        %3593 = vmatpush.msra.mxu0 %v3142
        %3594 = vmatpush.msra.mxu0 %v3140
        %3595 = vmatpush.msra.mxu0 %v3138
        %3596 = vmatpush.msra.mxu0 %v3136
        %3597 = vmatpush.msra.mxu0 %v3134
        %3598 = vmatpush.msra.mxu0 %v3132
        %3599 = vmatpush.msra.mxu0 %v3130
        %3600 = vmatpush.msra.mxu0 %v3128
        %3601 = vmatpush.msra.mxu0 %v3126
        %3602 = vmatpush.msra.mxu0 %v3124
        %3603 = vmatpush.msra.mxu0 %v3122
        %3604 = vmatmul.f32.gmra.mxu0 %v3565
        %v3605 = vpop.f32.mrf.mxu0
        %v3606 = vadd.f32 %v3586, %v3605
        %3607 = vdwg.mxu0
        %3608 = vmatpush.msra.mxu0 %v3121
        %3609 = vmatpush.msra.mxu0 %v3119
        %3610 = vmatpush.msra.mxu0 %v3117
        %3611 = vmatpush.msra.mxu0 %v3115
        %3612 = vmatpush.msra.mxu0 %v3113
        %3613 = vmatpush.msra.mxu0 %v3111
        %3614 = vmatpush.msra.mxu0 %v3109
        %3615 = vmatpush.msra.mxu0 %v3107
        %3616 = vmatpush.msra.mxu0 %v3105
        %3617 = vmatpush.msra.mxu0 %v3103
        %3618 = vmatpush.msra.mxu0 %v3101
        %3619 = vmatpush.msra.mxu0 %v3099
        %3620 = vmatpush.msra.mxu0 %v3097
        %3621 = vmatpush.msra.mxu0 %v3095
        %3622 = vmatpush.msra.mxu0 %v3093
        %3623 = vmatpush.msra.mxu0 %v3091
        %3624 = vmatmul.f32.gmra.mxu0 %v3564
        %v3625 = vpop.f32.mrf.mxu0
        %v3626 = vadd.f32 0.0, %v3625
        %3627 = vdwg.mxu0
        %3628 = vmatpush.msra.mxu0 %v3153
        %3629 = vmatpush.msra.mxu0 %v3151
        %3630 = vmatpush.msra.mxu0 %v3149
        %3631 = vmatpush.msra.mxu0 %v3147
        %3632 = vmatpush.msra.mxu0 %v3145
        %3633 = vmatpush.msra.mxu0 %v3143
        %3634 = vmatpush.msra.mxu0 %v3141
        %3635 = vmatpush.msra.mxu0 %v3139
        %3636 = vmatpush.msra.mxu0 %v3137
        %3637 = vmatpush.msra.mxu0 %v3135
        %3638 = vmatpush.msra.mxu0 %v3133
        %3639 = vmatpush.msra.mxu0 %v3131
        %3640 = vmatpush.msra.mxu0 %v3129
        %3641 = vmatpush.msra.mxu0 %v3127
        %3642 = vmatpush.msra.mxu0 %v3125
        %3643 = vmatpush.msra.mxu0 %v3123
        %3644 = vmatmul.f32.gmra.mxu0 %v3565
        %v3645 = vpop.f32.mrf.mxu0
        %v3646 = vadd.f32 %v3626, %v3645
        %3647 = vdwg.mxu0
        %v3648 = vadd.f32 %v3562, %v3606
        %v3649 = vadd.f32 %v3563, %v3646
        %v3650 = vmax.f32 %v3238, %v3648
        %v3651 = vmax.f32 %v3239, %v3649
        %v3652 = vmax.f32 %v3650, %v3651
        %v3653 = vld [vmem:[#allocation10] sm:$0x1]
        %v3655 = vperm.slane %v3653, 0
        %v3657 = vadd.f32 %v3652, %v3655
        %v3658 = vmax.f32 %v3657, 0.0
        %v3659 = vld [vmem:[#allocation13] sm:$0xf]
        %v3660 = vld [vmem:[#allocation11] sm:$0xff]
        %v3661 = vld [vmem:[#allocation11 + $0x8] sm:$0xff]
        %v3662 = vld [vmem:[#allocation11 + $0x10] sm:$0xff]
        %v3663 = vld [vmem:[#allocation11 + $0x18] sm:$0xff]
        %v3664 = vld [vmem:[#allocation11 + $0x20] sm:$0xff]
        %v3665 = vld [vmem:[#allocation11 + $0x28] sm:$0xff]
        %v3666 = vld [vmem:[#allocation11 + $0x30] sm:$0xff]
        %v3667 = vld [vmem:[#allocation11 + $0x38] sm:$0xff]
        %v3668 = vld [vmem:[#allocation11 + $0x40] sm:$0xff]
        %v3669 = vld [vmem:[#allocation11 + $0x48] sm:$0xff]
        %v3670 = vld [vmem:[#allocation11 + $0x50] sm:$0xff]
        %v3671 = vld [vmem:[#allocation11 + $0x58] sm:$0xff]
        %v3672 = vld [vmem:[#allocation11 + $0x60] sm:$0xff]
        %v3673 = vld [vmem:[#allocation11 + $0x68] sm:$0xff]
        %v3674 = vld [vmem:[#allocation11 + $0x70] sm:$0xff]
        %v3675 = vld [vmem:[#allocation11 + $0x78] sm:$0xff]
        %v3676 = vld [vmem:[#allocation11 + $0x80] sm:$0xff]
        %v3677 = vld [vmem:[#allocation11 + $0x88] sm:$0xff]
        %v3678 = vld [vmem:[#allocation11 + $0x90] sm:$0xff]
        %v3679 = vld [vmem:[#allocation11 + $0x98] sm:$0xff]
        %v3680 = vld [vmem:[#allocation11 + $0xa0] sm:$0xff]
        %v3681 = vld [vmem:[#allocation11 + $0xa8] sm:$0xff]
        %v3682 = vld [vmem:[#allocation11 + $0xb0] sm:$0xff]
        %v3683 = vld [vmem:[#allocation11 + $0xb8] sm:$0xff]
        %v3684 = vld [vmem:[#allocation11 + $0xc0] sm:$0xff]
        %v3685 = vld [vmem:[#allocation11 + $0xc8] sm:$0xff]
        %v3686 = vld [vmem:[#allocation11 + $0xd0] sm:$0xff]
        %v3687 = vld [vmem:[#allocation11 + $0xd8] sm:$0xff]
        %v3688 = vld [vmem:[#allocation11 + $0xe0] sm:$0xff]
        %v3689 = vld [vmem:[#allocation11 + $0xe8] sm:$0xff]
        %v3690 = vld [vmem:[#allocation11 + $0xf0] sm:$0xff]
        %v3691 = vld [vmem:[#allocation11 + $0xf8] sm:$0xff]
        %v3692 = vld [vmem:[#allocation11 + $0x100] sm:$0xff]
        %v3693 = vld [vmem:[#allocation11 + $0x108] sm:$0xff]
        %v3694 = vld [vmem:[#allocation11 + $0x110] sm:$0xff]
        %v3695 = vld [vmem:[#allocation11 + $0x118] sm:$0xff]
        %v3696 = vld [vmem:[#allocation11 + $0x120] sm:$0xff]
        %v3697 = vld [vmem:[#allocation11 + $0x128] sm:$0xff]
        %v3698 = vld [vmem:[#allocation11 + $0x130] sm:$0xff]
        %v3699 = vld [vmem:[#allocation11 + $0x138] sm:$0xff]
        %v3700 = vld [vmem:[#allocation11 + $0x140] sm:$0xff]
        %v3701 = vld [vmem:[#allocation11 + $0x148] sm:$0xff]
        %v3702 = vld [vmem:[#allocation11 + $0x150] sm:$0xff]
        %v3703 = vld [vmem:[#allocation11 + $0x158] sm:$0xff]
        %v3704 = vld [vmem:[#allocation11 + $0x160] sm:$0xff]
        %v3705 = vld [vmem:[#allocation11 + $0x168] sm:$0xff]
        %v3706 = vld [vmem:[#allocation11 + $0x170] sm:$0xff]
        %v3707 = vld [vmem:[#allocation11 + $0x178] sm:$0xff]
        %v3708 = vld [vmem:[#allocation11 + $0x180] sm:$0xff]
        %v3709 = vld [vmem:[#allocation11 + $0x188] sm:$0xff]
        %v3710 = vld [vmem:[#allocation11 + $0x190] sm:$0xff]
        %v3711 = vld [vmem:[#allocation11 + $0x198] sm:$0xff]
        %v3712 = vld [vmem:[#allocation11 + $0x1a0] sm:$0xff]
        %v3713 = vld [vmem:[#allocation11 + $0x1a8] sm:$0xff]
        %v3714 = vld [vmem:[#allocation11 + $0x1b0] sm:$0xff]
        %v3715 = vld [vmem:[#allocation11 + $0x1b8] sm:$0xff]
        %v3716 = vld [vmem:[#allocation11 + $0x1c0] sm:$0xff]
        %v3717 = vld [vmem:[#allocation11 + $0x1c8] sm:$0xff]
        %v3718 = vld [vmem:[#allocation11 + $0x1d0] sm:$0xff]
        %v3719 = vld [vmem:[#allocation11 + $0x1d8] sm:$0xff]
        %v3720 = vld [vmem:[#allocation11 + $0x1e0] sm:$0xff]
        %v3721 = vld [vmem:[#allocation11 + $0x1e8] sm:$0xff]
        %v3722 = vld [vmem:[#allocation11 + $0x1f0] sm:$0xff]
        %v3723 = vld [vmem:[#allocation11 + $0x1f8] sm:$0xff]
        %3724 = vmatpush.msra.mxu0 %v3720
        %3725 = vmatpush.msra.mxu0 %v3716
        %3726 = vmatpush.msra.mxu0 %v3712
        %3727 = vmatpush.msra.mxu0 %v3708
        %3728 = vmatpush.msra.mxu0 %v3704
        %3729 = vmatpush.msra.mxu0 %v3700
        %3730 = vmatpush.msra.mxu0 %v3696
        %3731 = vmatpush.msra.mxu0 %v3692
        %3732 = vmatpush.msra.mxu0 %v3688
        %3733 = vmatpush.msra.mxu0 %v3684
        %3734 = vmatpush.msra.mxu0 %v3680
        %3735 = vmatpush.msra.mxu0 %v3676
        %3736 = vmatpush.msra.mxu0 %v3672
        %3737 = vmatpush.msra.mxu0 %v3668
        %3738 = vmatpush.msra.mxu0 %v3664
        %3739 = vmatpush.msra.mxu0 %v3660
        %3740 = vmatmul.f32.gmra.mxu0 %v3658
        %v3741 = vpop.f32.mrf.mxu0
        %v3742 = vadd.f32 0.0, %v3741
        %3743 = vdwg.mxu0
        %3744 = vmatpush.msra.mxu0 %v3721
        %3745 = vmatpush.msra.mxu0 %v3717
        %3746 = vmatpush.msra.mxu0 %v3713
        %3747 = vmatpush.msra.mxu0 %v3709
        %3748 = vmatpush.msra.mxu0 %v3705
        %3749 = vmatpush.msra.mxu0 %v3701
        %3750 = vmatpush.msra.mxu0 %v3697
        %3751 = vmatpush.msra.mxu0 %v3693
        %3752 = vmatpush.msra.mxu0 %v3689
        %3753 = vmatpush.msra.mxu0 %v3685
        %3754 = vmatpush.msra.mxu0 %v3681
        %3755 = vmatpush.msra.mxu0 %v3677
        %3756 = vmatpush.msra.mxu0 %v3673
        %3757 = vmatpush.msra.mxu0 %v3669
        %3758 = vmatpush.msra.mxu0 %v3665
        %3759 = vmatpush.msra.mxu0 %v3661
        %3760 = vmatmul.f32.gmra.mxu0 %v3658
        %v3761 = vpop.f32.mrf.mxu0
        %v3762 = vadd.f32 0.0, %v3761
        %3763 = vdwg.mxu0
        %3764 = vmatpush.msra.mxu0 %v3722
        %3765 = vmatpush.msra.mxu0 %v3718
        %3766 = vmatpush.msra.mxu0 %v3714
        %3767 = vmatpush.msra.mxu0 %v3710
        %3768 = vmatpush.msra.mxu0 %v3706
        %3769 = vmatpush.msra.mxu0 %v3702
        %3770 = vmatpush.msra.mxu0 %v3698
        %3771 = vmatpush.msra.mxu0 %v3694
        %3772 = vmatpush.msra.mxu0 %v3690
        %3773 = vmatpush.msra.mxu0 %v3686
        %3774 = vmatpush.msra.mxu0 %v3682
        %3775 = vmatpush.msra.mxu0 %v3678
        %3776 = vmatpush.msra.mxu0 %v3674
        %3777 = vmatpush.msra.mxu0 %v3670
        %3778 = vmatpush.msra.mxu0 %v3666
        %3779 = vmatpush.msra.mxu0 %v3662
        %3780 = vmatmul.f32.gmra.mxu0 %v3658
        %v3781 = vpop.f32.mrf.mxu0
        %v3782 = vadd.f32 0.0, %v3781
        %3783 = vdwg.mxu0
        %3784 = vmatpush.msra.mxu0 %v3723
        %3785 = vmatpush.msra.mxu0 %v3719
        %3786 = vmatpush.msra.mxu0 %v3715
        %3787 = vmatpush.msra.mxu0 %v3711
        %3788 = vmatpush.msra.mxu0 %v3707
        %3789 = vmatpush.msra.mxu0 %v3703
        %3790 = vmatpush.msra.mxu0 %v3699
        %3791 = vmatpush.msra.mxu0 %v3695
        %3792 = vmatpush.msra.mxu0 %v3691
        %3793 = vmatpush.msra.mxu0 %v3687
        %3794 = vmatpush.msra.mxu0 %v3683
        %3795 = vmatpush.msra.mxu0 %v3679
        %3796 = vmatpush.msra.mxu0 %v3675
        %3797 = vmatpush.msra.mxu0 %v3671
        %3798 = vmatpush.msra.mxu0 %v3667
        %3799 = vmatpush.msra.mxu0 %v3663
        %3800 = vmatmul.f32.gmra.mxu0 %v3658
        %v3801 = vpop.f32.mrf.mxu0
        %v3802 = vadd.f32 0.0, %v3801
        %3803 = vdwg.mxu0
        %v3808 = vrot.slane %v3762, 7
        %v3809 = vrot.slane %v3782, 6
        %v3810 = vrot.slane %v3802, 5
        %vm3811 = vcmask 1040384
        %v3812 = vsel %vm3811, %v3742, %v3808
        %v3813 = vsel %vm531, %v3809, %v3810
        %vm3814 = vcmask 1041408
        %v3815 = vsel %vm3814, %v3812, %v3813
        %v3817 = vadd.f32 %v3659, %v3815
        %s3818 = scalar_lea.vmem [#allocation11], 512
        %v3819 = vld [vmem:[%s3818] sm:$0xff]
        %v3820 = vld [vmem:[%s3818 + $0x8] sm:$0xff]
        %v3821 = vld [vmem:[%s3818 + $0x10] sm:$0xff]
        %v3822 = vld [vmem:[%s3818 + $0x18] sm:$0xff]
        %v3823 = vld [vmem:[%s3818 + $0x20] sm:$0xff]
        %v3824 = vld [vmem:[%s3818 + $0x28] sm:$0xff]
        %v3825 = vld [vmem:[%s3818 + $0x30] sm:$0xff]
        %v3826 = vld [vmem:[%s3818 + $0x38] sm:$0xff]
        %v3827 = vld [vmem:[%s3818 + $0x40] sm:$0xff]
        %v3828 = vld [vmem:[%s3818 + $0x48] sm:$0xff]
        %v3829 = vld [vmem:[%s3818 + $0x50] sm:$0xff]
        %v3830 = vld [vmem:[%s3818 + $0x58] sm:$0xff]
        %v3831 = vld [vmem:[%s3818 + $0x60] sm:$0xff]
        %v3832 = vld [vmem:[%s3818 + $0x68] sm:$0xff]
        %v3833 = vld [vmem:[%s3818 + $0x70] sm:$0xff]
        %v3834 = vld [vmem:[%s3818 + $0x78] sm:$0xff]
        %v3835 = vld [vmem:[%s3818 + $0x80] sm:$0xff]
        %v3836 = vld [vmem:[%s3818 + $0x88] sm:$0xff]
        %v3837 = vld [vmem:[%s3818 + $0x90] sm:$0xff]
        %v3838 = vld [vmem:[%s3818 + $0x98] sm:$0xff]
        %v3839 = vld [vmem:[%s3818 + $0xa0] sm:$0xff]
        %v3840 = vld [vmem:[%s3818 + $0xa8] sm:$0xff]
        %v3841 = vld [vmem:[%s3818 + $0xb0] sm:$0xff]
        %v3842 = vld [vmem:[%s3818 + $0xb8] sm:$0xff]
        %v3843 = vld [vmem:[%s3818 + $0xc0] sm:$0xff]
        %v3844 = vld [vmem:[%s3818 + $0xc8] sm:$0xff]
        %v3845 = vld [vmem:[%s3818 + $0xd0] sm:$0xff]
        %v3846 = vld [vmem:[%s3818 + $0xd8] sm:$0xff]
        %v3847 = vld [vmem:[%s3818 + $0xe0] sm:$0xff]
        %v3848 = vld [vmem:[%s3818 + $0xe8] sm:$0xff]
        %v3849 = vld [vmem:[%s3818 + $0xf0] sm:$0xff]
        %v3850 = vld [vmem:[%s3818 + $0xf8] sm:$0xff]
        %v3851 = vld [vmem:[%s3818 + $0x100] sm:$0xff]
        %v3852 = vld [vmem:[%s3818 + $0x108] sm:$0xff]
        %v3853 = vld [vmem:[%s3818 + $0x110] sm:$0xff]
        %v3854 = vld [vmem:[%s3818 + $0x118] sm:$0xff]
        %v3855 = vld [vmem:[%s3818 + $0x120] sm:$0xff]
        %v3856 = vld [vmem:[%s3818 + $0x128] sm:$0xff]
        %v3857 = vld [vmem:[%s3818 + $0x130] sm:$0xff]
        %v3858 = vld [vmem:[%s3818 + $0x138] sm:$0xff]
        %v3859 = vld [vmem:[%s3818 + $0x140] sm:$0xff]
        %v3860 = vld [vmem:[%s3818 + $0x148] sm:$0xff]
        %v3861 = vld [vmem:[%s3818 + $0x150] sm:$0xff]
        %v3862 = vld [vmem:[%s3818 + $0x158] sm:$0xff]
        %v3863 = vld [vmem:[%s3818 + $0x160] sm:$0xff]
        %v3864 = vld [vmem:[%s3818 + $0x168] sm:$0xff]
        %v3865 = vld [vmem:[%s3818 + $0x170] sm:$0xff]
        %v3866 = vld [vmem:[%s3818 + $0x178] sm:$0xff]
        %v3867 = vld [vmem:[%s3818 + $0x180] sm:$0xff]
        %v3868 = vld [vmem:[%s3818 + $0x188] sm:$0xff]
        %v3869 = vld [vmem:[%s3818 + $0x190] sm:$0xff]
        %v3870 = vld [vmem:[%s3818 + $0x198] sm:$0xff]
        %v3871 = vld [vmem:[%s3818 + $0x1a0] sm:$0xff]
        %v3872 = vld [vmem:[%s3818 + $0x1a8] sm:$0xff]
        %v3873 = vld [vmem:[%s3818 + $0x1b0] sm:$0xff]
        %v3874 = vld [vmem:[%s3818 + $0x1b8] sm:$0xff]
        %v3875 = vld [vmem:[%s3818 + $0x1c0] sm:$0xff]
        %v3876 = vld [vmem:[%s3818 + $0x1c8] sm:$0xff]
        %v3877 = vld [vmem:[%s3818 + $0x1d0] sm:$0xff]
        %v3878 = vld [vmem:[%s3818 + $0x1d8] sm:$0xff]
        %v3879 = vld [vmem:[%s3818 + $0x1e0] sm:$0xff]
        %v3880 = vld [vmem:[%s3818 + $0x1e8] sm:$0xff]
        %v3881 = vld [vmem:[%s3818 + $0x1f0] sm:$0xff]
        %v3882 = vld [vmem:[%s3818 + $0x1f8] sm:$0xff]
        %v3884 = vrot.slane %v3658, 1
        %3886 = vmatpush.msra.mxu0 %v3879
        %3887 = vmatpush.msra.mxu0 %v3875
        %3888 = vmatpush.msra.mxu0 %v3871
        %3889 = vmatpush.msra.mxu0 %v3867
        %3890 = vmatpush.msra.mxu0 %v3863
        %3891 = vmatpush.msra.mxu0 %v3859
        %3892 = vmatpush.msra.mxu0 %v3855
        %3893 = vmatpush.msra.mxu0 %v3851
        %3894 = vmatpush.msra.mxu0 %v3847
        %3895 = vmatpush.msra.mxu0 %v3843
        %3896 = vmatpush.msra.mxu0 %v3839
        %3897 = vmatpush.msra.mxu0 %v3835
        %3898 = vmatpush.msra.mxu0 %v3831
        %3899 = vmatpush.msra.mxu0 %v3827
        %3900 = vmatpush.msra.mxu0 %v3823
        %3901 = vmatpush.msra.mxu0 %v3819
        %3902 = vmatmul.f32.gmra.mxu0 %v3884
        %v3903 = vpop.f32.mrf.mxu0
        %v3904 = vadd.f32 0.0, %v3903
        %3905 = vdwg.mxu0
        %3906 = vmatpush.msra.mxu0 %v3880
        %3907 = vmatpush.msra.mxu0 %v3876
        %3908 = vmatpush.msra.mxu0 %v3872
        %3909 = vmatpush.msra.mxu0 %v3868
        %3910 = vmatpush.msra.mxu0 %v3864
        %3911 = vmatpush.msra.mxu0 %v3860
        %3912 = vmatpush.msra.mxu0 %v3856
        %3913 = vmatpush.msra.mxu0 %v3852
        %3914 = vmatpush.msra.mxu0 %v3848
        %3915 = vmatpush.msra.mxu0 %v3844
        %3916 = vmatpush.msra.mxu0 %v3840
        %3917 = vmatpush.msra.mxu0 %v3836
        %3918 = vmatpush.msra.mxu0 %v3832
        %3919 = vmatpush.msra.mxu0 %v3828
        %3920 = vmatpush.msra.mxu0 %v3824
        %3921 = vmatpush.msra.mxu0 %v3820
        %3922 = vmatmul.f32.gmra.mxu0 %v3884
        %v3923 = vpop.f32.mrf.mxu0
        %v3924 = vadd.f32 0.0, %v3923
        %3925 = vdwg.mxu0
        %3926 = vmatpush.msra.mxu0 %v3881
        %3927 = vmatpush.msra.mxu0 %v3877
        %3928 = vmatpush.msra.mxu0 %v3873
        %3929 = vmatpush.msra.mxu0 %v3869
        %3930 = vmatpush.msra.mxu0 %v3865
        %3931 = vmatpush.msra.mxu0 %v3861
        %3932 = vmatpush.msra.mxu0 %v3857
        %3933 = vmatpush.msra.mxu0 %v3853
        %3934 = vmatpush.msra.mxu0 %v3849
        %3935 = vmatpush.msra.mxu0 %v3845
        %3936 = vmatpush.msra.mxu0 %v3841
        %3937 = vmatpush.msra.mxu0 %v3837
        %3938 = vmatpush.msra.mxu0 %v3833
        %3939 = vmatpush.msra.mxu0 %v3829
        %3940 = vmatpush.msra.mxu0 %v3825
        %3941 = vmatpush.msra.mxu0 %v3821
        %3942 = vmatmul.f32.gmra.mxu0 %v3884
        %v3943 = vpop.f32.mrf.mxu0
        %v3944 = vadd.f32 0.0, %v3943
        %3945 = vdwg.mxu0
        %3946 = vmatpush.msra.mxu0 %v3882
        %3947 = vmatpush.msra.mxu0 %v3878
        %3948 = vmatpush.msra.mxu0 %v3874
        %3949 = vmatpush.msra.mxu0 %v3870
        %3950 = vmatpush.msra.mxu0 %v3866
        %3951 = vmatpush.msra.mxu0 %v3862
        %3952 = vmatpush.msra.mxu0 %v3858
        %3953 = vmatpush.msra.mxu0 %v3854
        %3954 = vmatpush.msra.mxu0 %v3850
        %3955 = vmatpush.msra.mxu0 %v3846
        %3956 = vmatpush.msra.mxu0 %v3842
        %3957 = vmatpush.msra.mxu0 %v3838
        %3958 = vmatpush.msra.mxu0 %v3834
        %3959 = vmatpush.msra.mxu0 %v3830
        %3960 = vmatpush.msra.mxu0 %v3826
        %3961 = vmatpush.msra.mxu0 %v3822
        %3962 = vmatmul.f32.gmra.mxu0 %v3884
        %v3963 = vpop.f32.mrf.mxu0
        %v3964 = vadd.f32 0.0, %v3963
        %3965 = vdwg.mxu0
        %v3970 = vrot.slane %v3924, 7
        %v3971 = vrot.slane %v3944, 6
        %v3972 = vrot.slane %v3964, 5
        %v3973 = vsel %vm3811, %v3904, %v3970
        %v3974 = vsel %vm531, %v3971, %v3972
        %v3975 = vsel %vm3814, %v3973, %v3974
        %v3977 = vadd.f32 %v3817, %v3975
        %s3978 = scalar_lea.vmem [#allocation11], 1024
        %v3979 = vld [vmem:[%s3978] sm:$0xff]
        %v3980 = vld [vmem:[%s3978 + $0x8] sm:$0xff]
        %v3981 = vld [vmem:[%s3978 + $0x10] sm:$0xff]
        %v3982 = vld [vmem:[%s3978 + $0x18] sm:$0xff]
        %v3983 = vld [vmem:[%s3978 + $0x20] sm:$0xff]
        %v3984 = vld [vmem:[%s3978 + $0x28] sm:$0xff]
        %v3985 = vld [vmem:[%s3978 + $0x30] sm:$0xff]
        %v3986 = vld [vmem:[%s3978 + $0x38] sm:$0xff]
        %v3987 = vld [vmem:[%s3978 + $0x40] sm:$0xff]
        %v3988 = vld [vmem:[%s3978 + $0x48] sm:$0xff]
        %v3989 = vld [vmem:[%s3978 + $0x50] sm:$0xff]
        %v3990 = vld [vmem:[%s3978 + $0x58] sm:$0xff]
        %v3991 = vld [vmem:[%s3978 + $0x60] sm:$0xff]
        %v3992 = vld [vmem:[%s3978 + $0x68] sm:$0xff]
        %v3993 = vld [vmem:[%s3978 + $0x70] sm:$0xff]
        %v3994 = vld [vmem:[%s3978 + $0x78] sm:$0xff]
        %v3995 = vld [vmem:[%s3978 + $0x80] sm:$0xff]
        %v3996 = vld [vmem:[%s3978 + $0x88] sm:$0xff]
        %v3997 = vld [vmem:[%s3978 + $0x90] sm:$0xff]
        %v3998 = vld [vmem:[%s3978 + $0x98] sm:$0xff]
        %v3999 = vld [vmem:[%s3978 + $0xa0] sm:$0xff]
        %v4000 = vld [vmem:[%s3978 + $0xa8] sm:$0xff]
        %v4001 = vld [vmem:[%s3978 + $0xb0] sm:$0xff]
        %v4002 = vld [vmem:[%s3978 + $0xb8] sm:$0xff]
        %v4003 = vld [vmem:[%s3978 + $0xc0] sm:$0xff]
        %v4004 = vld [vmem:[%s3978 + $0xc8] sm:$0xff]
        %v4005 = vld [vmem:[%s3978 + $0xd0] sm:$0xff]
        %v4006 = vld [vmem:[%s3978 + $0xd8] sm:$0xff]
        %v4007 = vld [vmem:[%s3978 + $0xe0] sm:$0xff]
        %v4008 = vld [vmem:[%s3978 + $0xe8] sm:$0xff]
        %v4009 = vld [vmem:[%s3978 + $0xf0] sm:$0xff]
        %v4010 = vld [vmem:[%s3978 + $0xf8] sm:$0xff]
        %v4011 = vld [vmem:[%s3978 + $0x100] sm:$0xff]
        %v4012 = vld [vmem:[%s3978 + $0x108] sm:$0xff]
        %v4013 = vld [vmem:[%s3978 + $0x110] sm:$0xff]
        %v4014 = vld [vmem:[%s3978 + $0x118] sm:$0xff]
        %v4015 = vld [vmem:[%s3978 + $0x120] sm:$0xff]
        %v4016 = vld [vmem:[%s3978 + $0x128] sm:$0xff]
        %v4017 = vld [vmem:[%s3978 + $0x130] sm:$0xff]
        %v4018 = vld [vmem:[%s3978 + $0x138] sm:$0xff]
        %v4019 = vld [vmem:[%s3978 + $0x140] sm:$0xff]
        %v4020 = vld [vmem:[%s3978 + $0x148] sm:$0xff]
        %v4021 = vld [vmem:[%s3978 + $0x150] sm:$0xff]
        %v4022 = vld [vmem:[%s3978 + $0x158] sm:$0xff]
        %v4023 = vld [vmem:[%s3978 + $0x160] sm:$0xff]
        %v4024 = vld [vmem:[%s3978 + $0x168] sm:$0xff]
        %v4025 = vld [vmem:[%s3978 + $0x170] sm:$0xff]
        %v4026 = vld [vmem:[%s3978 + $0x178] sm:$0xff]
        %v4027 = vld [vmem:[%s3978 + $0x180] sm:$0xff]
        %v4028 = vld [vmem:[%s3978 + $0x188] sm:$0xff]
        %v4029 = vld [vmem:[%s3978 + $0x190] sm:$0xff]
        %v4030 = vld [vmem:[%s3978 + $0x198] sm:$0xff]
        %v4031 = vld [vmem:[%s3978 + $0x1a0] sm:$0xff]
        %v4032 = vld [vmem:[%s3978 + $0x1a8] sm:$0xff]
        %v4033 = vld [vmem:[%s3978 + $0x1b0] sm:$0xff]
        %v4034 = vld [vmem:[%s3978 + $0x1b8] sm:$0xff]
        %v4035 = vld [vmem:[%s3978 + $0x1c0] sm:$0xff]
        %v4036 = vld [vmem:[%s3978 + $0x1c8] sm:$0xff]
        %v4037 = vld [vmem:[%s3978 + $0x1d0] sm:$0xff]
        %v4038 = vld [vmem:[%s3978 + $0x1d8] sm:$0xff]
        %v4039 = vld [vmem:[%s3978 + $0x1e0] sm:$0xff]
        %v4040 = vld [vmem:[%s3978 + $0x1e8] sm:$0xff]
        %v4041 = vld [vmem:[%s3978 + $0x1f0] sm:$0xff]
        %v4042 = vld [vmem:[%s3978 + $0x1f8] sm:$0xff]
        %v4043 = vrot.slane %v3658, 2
        %4045 = vmatpush.msra.mxu0 %v4039
        %4046 = vmatpush.msra.mxu0 %v4035
        %4047 = vmatpush.msra.mxu0 %v4031
        %4048 = vmatpush.msra.mxu0 %v4027
        %4049 = vmatpush.msra.mxu0 %v4023
        %4050 = vmatpush.msra.mxu0 %v4019
        %4051 = vmatpush.msra.mxu0 %v4015
        %4052 = vmatpush.msra.mxu0 %v4011
        %4053 = vmatpush.msra.mxu0 %v4007
        %4054 = vmatpush.msra.mxu0 %v4003
        %4055 = vmatpush.msra.mxu0 %v3999
        %4056 = vmatpush.msra.mxu0 %v3995
        %4057 = vmatpush.msra.mxu0 %v3991
        %4058 = vmatpush.msra.mxu0 %v3987
        %4059 = vmatpush.msra.mxu0 %v3983
        %4060 = vmatpush.msra.mxu0 %v3979
        %4061 = vmatmul.f32.gmra.mxu0 %v4043
        %v4062 = vpop.f32.mrf.mxu0
        %v4063 = vadd.f32 0.0, %v4062
        %4064 = vdwg.mxu0
        %4065 = vmatpush.msra.mxu0 %v4040
        %4066 = vmatpush.msra.mxu0 %v4036
        %4067 = vmatpush.msra.mxu0 %v4032
        %4068 = vmatpush.msra.mxu0 %v4028
        %4069 = vmatpush.msra.mxu0 %v4024
        %4070 = vmatpush.msra.mxu0 %v4020
        %4071 = vmatpush.msra.mxu0 %v4016
        %4072 = vmatpush.msra.mxu0 %v4012
        %4073 = vmatpush.msra.mxu0 %v4008
        %4074 = vmatpush.msra.mxu0 %v4004
        %4075 = vmatpush.msra.mxu0 %v4000
        %4076 = vmatpush.msra.mxu0 %v3996
        %4077 = vmatpush.msra.mxu0 %v3992
        %4078 = vmatpush.msra.mxu0 %v3988
        %4079 = vmatpush.msra.mxu0 %v3984
        %4080 = vmatpush.msra.mxu0 %v3980
        %4081 = vmatmul.f32.gmra.mxu0 %v4043
        %v4082 = vpop.f32.mrf.mxu0
        %v4083 = vadd.f32 0.0, %v4082
        %4084 = vdwg.mxu0
        %4085 = vmatpush.msra.mxu0 %v4041
        %4086 = vmatpush.msra.mxu0 %v4037
        %4087 = vmatpush.msra.mxu0 %v4033
        %4088 = vmatpush.msra.mxu0 %v4029
        %4089 = vmatpush.msra.mxu0 %v4025
        %4090 = vmatpush.msra.mxu0 %v4021
        %4091 = vmatpush.msra.mxu0 %v4017
        %4092 = vmatpush.msra.mxu0 %v4013
        %4093 = vmatpush.msra.mxu0 %v4009
        %4094 = vmatpush.msra.mxu0 %v4005
        %4095 = vmatpush.msra.mxu0 %v4001
        %4096 = vmatpush.msra.mxu0 %v3997
        %4097 = vmatpush.msra.mxu0 %v3993
        %4098 = vmatpush.msra.mxu0 %v3989
        %4099 = vmatpush.msra.mxu0 %v3985
        %4100 = vmatpush.msra.mxu0 %v3981
        %4101 = vmatmul.f32.gmra.mxu0 %v4043
        %v4102 = vpop.f32.mrf.mxu0
        %v4103 = vadd.f32 0.0, %v4102
        %4104 = vdwg.mxu0
        %4105 = vmatpush.msra.mxu0 %v4042
        %4106 = vmatpush.msra.mxu0 %v4038
        %4107 = vmatpush.msra.mxu0 %v4034
        %4108 = vmatpush.msra.mxu0 %v4030
        %4109 = vmatpush.msra.mxu0 %v4026
        %4110 = vmatpush.msra.mxu0 %v4022
        %4111 = vmatpush.msra.mxu0 %v4018
        %4112 = vmatpush.msra.mxu0 %v4014
        %4113 = vmatpush.msra.mxu0 %v4010
        %4114 = vmatpush.msra.mxu0 %v4006
        %4115 = vmatpush.msra.mxu0 %v4002
        %4116 = vmatpush.msra.mxu0 %v3998
        %4117 = vmatpush.msra.mxu0 %v3994
        %4118 = vmatpush.msra.mxu0 %v3990
        %4119 = vmatpush.msra.mxu0 %v3986
        %4120 = vmatpush.msra.mxu0 %v3982
        %4121 = vmatmul.f32.gmra.mxu0 %v4043
        %v4122 = vpop.f32.mrf.mxu0
        %v4123 = vadd.f32 0.0, %v4122
        %4124 = vdwg.mxu0
        %v4129 = vrot.slane %v4083, 7
        %v4130 = vrot.slane %v4103, 6
        %v4131 = vrot.slane %v4123, 5
        %v4132 = vsel %vm3811, %v4063, %v4129
        %v4133 = vsel %vm531, %v4130, %v4131
        %v4134 = vsel %vm3814, %v4132, %v4133
        %v4136 = vadd.f32 %v3977, %v4134
        %s4137 = scalar_lea.vmem [#allocation11], 1536
        %v4138 = vld [vmem:[%s4137] sm:$0xff]
        %v4139 = vld [vmem:[%s4137 + $0x8] sm:$0xff]
        %v4140 = vld [vmem:[%s4137 + $0x10] sm:$0xff]
        %v4141 = vld [vmem:[%s4137 + $0x18] sm:$0xff]
        %v4142 = vld [vmem:[%s4137 + $0x20] sm:$0xff]
        %v4143 = vld [vmem:[%s4137 + $0x28] sm:$0xff]
        %v4144 = vld [vmem:[%s4137 + $0x30] sm:$0xff]
        %v4145 = vld [vmem:[%s4137 + $0x38] sm:$0xff]
        %v4146 = vld [vmem:[%s4137 + $0x40] sm:$0xff]
        %v4147 = vld [vmem:[%s4137 + $0x48] sm:$0xff]
        %v4148 = vld [vmem:[%s4137 + $0x50] sm:$0xff]
        %v4149 = vld [vmem:[%s4137 + $0x58] sm:$0xff]
        %v4150 = vld [vmem:[%s4137 + $0x60] sm:$0xff]
        %v4151 = vld [vmem:[%s4137 + $0x68] sm:$0xff]
        %v4152 = vld [vmem:[%s4137 + $0x70] sm:$0xff]
        %v4153 = vld [vmem:[%s4137 + $0x78] sm:$0xff]
        %v4154 = vld [vmem:[%s4137 + $0x80] sm:$0xff]
        %v4155 = vld [vmem:[%s4137 + $0x88] sm:$0xff]
        %v4156 = vld [vmem:[%s4137 + $0x90] sm:$0xff]
        %v4157 = vld [vmem:[%s4137 + $0x98] sm:$0xff]
        %v4158 = vld [vmem:[%s4137 + $0xa0] sm:$0xff]
        %v4159 = vld [vmem:[%s4137 + $0xa8] sm:$0xff]
        %v4160 = vld [vmem:[%s4137 + $0xb0] sm:$0xff]
        %v4161 = vld [vmem:[%s4137 + $0xb8] sm:$0xff]
        %v4162 = vld [vmem:[%s4137 + $0xc0] sm:$0xff]
        %v4163 = vld [vmem:[%s4137 + $0xc8] sm:$0xff]
        %v4164 = vld [vmem:[%s4137 + $0xd0] sm:$0xff]
        %v4165 = vld [vmem:[%s4137 + $0xd8] sm:$0xff]
        %v4166 = vld [vmem:[%s4137 + $0xe0] sm:$0xff]
        %v4167 = vld [vmem:[%s4137 + $0xe8] sm:$0xff]
        %v4168 = vld [vmem:[%s4137 + $0xf0] sm:$0xff]
        %v4169 = vld [vmem:[%s4137 + $0xf8] sm:$0xff]
        %v4170 = vld [vmem:[%s4137 + $0x100] sm:$0xff]
        %v4171 = vld [vmem:[%s4137 + $0x108] sm:$0xff]
        %v4172 = vld [vmem:[%s4137 + $0x110] sm:$0xff]
        %v4173 = vld [vmem:[%s4137 + $0x118] sm:$0xff]
        %v4174 = vld [vmem:[%s4137 + $0x120] sm:$0xff]
        %v4175 = vld [vmem:[%s4137 + $0x128] sm:$0xff]
        %v4176 = vld [vmem:[%s4137 + $0x130] sm:$0xff]
        %v4177 = vld [vmem:[%s4137 + $0x138] sm:$0xff]
        %v4178 = vld [vmem:[%s4137 + $0x140] sm:$0xff]
        %v4179 = vld [vmem:[%s4137 + $0x148] sm:$0xff]
        %v4180 = vld [vmem:[%s4137 + $0x150] sm:$0xff]
        %v4181 = vld [vmem:[%s4137 + $0x158] sm:$0xff]
        %v4182 = vld [vmem:[%s4137 + $0x160] sm:$0xff]
        %v4183 = vld [vmem:[%s4137 + $0x168] sm:$0xff]
        %v4184 = vld [vmem:[%s4137 + $0x170] sm:$0xff]
        %v4185 = vld [vmem:[%s4137 + $0x178] sm:$0xff]
        %v4186 = vld [vmem:[%s4137 + $0x180] sm:$0xff]
        %v4187 = vld [vmem:[%s4137 + $0x188] sm:$0xff]
        %v4188 = vld [vmem:[%s4137 + $0x190] sm:$0xff]
        %v4189 = vld [vmem:[%s4137 + $0x198] sm:$0xff]
        %v4190 = vld [vmem:[%s4137 + $0x1a0] sm:$0xff]
        %v4191 = vld [vmem:[%s4137 + $0x1a8] sm:$0xff]
        %v4192 = vld [vmem:[%s4137 + $0x1b0] sm:$0xff]
        %v4193 = vld [vmem:[%s4137 + $0x1b8] sm:$0xff]
        %v4194 = vld [vmem:[%s4137 + $0x1c0] sm:$0xff]
        %v4195 = vld [vmem:[%s4137 + $0x1c8] sm:$0xff]
        %v4196 = vld [vmem:[%s4137 + $0x1d0] sm:$0xff]
        %v4197 = vld [vmem:[%s4137 + $0x1d8] sm:$0xff]
        %v4198 = vld [vmem:[%s4137 + $0x1e0] sm:$0xff]
        %v4199 = vld [vmem:[%s4137 + $0x1e8] sm:$0xff]
        %v4200 = vld [vmem:[%s4137 + $0x1f0] sm:$0xff]
        %v4201 = vld [vmem:[%s4137 + $0x1f8] sm:$0xff]
        %v4202 = vrot.slane %v3658, 3
        %4204 = vmatpush.msra.mxu0 %v4198
        %4205 = vmatpush.msra.mxu0 %v4194
        %4206 = vmatpush.msra.mxu0 %v4190
        %4207 = vmatpush.msra.mxu0 %v4186
        %4208 = vmatpush.msra.mxu0 %v4182
        %4209 = vmatpush.msra.mxu0 %v4178
        %4210 = vmatpush.msra.mxu0 %v4174
        %4211 = vmatpush.msra.mxu0 %v4170
        %4212 = vmatpush.msra.mxu0 %v4166
        %4213 = vmatpush.msra.mxu0 %v4162
        %4214 = vmatpush.msra.mxu0 %v4158
        %4215 = vmatpush.msra.mxu0 %v4154
        %4216 = vmatpush.msra.mxu0 %v4150
        %4217 = vmatpush.msra.mxu0 %v4146
        %4218 = vmatpush.msra.mxu0 %v4142
        %4219 = vmatpush.msra.mxu0 %v4138
        %4220 = vmatmul.f32.gmra.mxu0 %v4202
        %v4221 = vpop.f32.mrf.mxu0
        %v4222 = vadd.f32 0.0, %v4221
        %4223 = vdwg.mxu0
        %4224 = vmatpush.msra.mxu0 %v4199
        %4225 = vmatpush.msra.mxu0 %v4195
        %4226 = vmatpush.msra.mxu0 %v4191
        %4227 = vmatpush.msra.mxu0 %v4187
        %4228 = vmatpush.msra.mxu0 %v4183
        %4229 = vmatpush.msra.mxu0 %v4179
        %4230 = vmatpush.msra.mxu0 %v4175
        %4231 = vmatpush.msra.mxu0 %v4171
        %4232 = vmatpush.msra.mxu0 %v4167
        %4233 = vmatpush.msra.mxu0 %v4163
        %4234 = vmatpush.msra.mxu0 %v4159
        %4235 = vmatpush.msra.mxu0 %v4155
        %4236 = vmatpush.msra.mxu0 %v4151
        %4237 = vmatpush.msra.mxu0 %v4147
        %4238 = vmatpush.msra.mxu0 %v4143
        %4239 = vmatpush.msra.mxu0 %v4139
        %4240 = vmatmul.f32.gmra.mxu0 %v4202
        %v4241 = vpop.f32.mrf.mxu0
        %v4242 = vadd.f32 0.0, %v4241
        %4243 = vdwg.mxu0
        %4244 = vmatpush.msra.mxu0 %v4200
        %4245 = vmatpush.msra.mxu0 %v4196
        %4246 = vmatpush.msra.mxu0 %v4192
        %4247 = vmatpush.msra.mxu0 %v4188
        %4248 = vmatpush.msra.mxu0 %v4184
        %4249 = vmatpush.msra.mxu0 %v4180
        %4250 = vmatpush.msra.mxu0 %v4176
        %4251 = vmatpush.msra.mxu0 %v4172
        %4252 = vmatpush.msra.mxu0 %v4168
        %4253 = vmatpush.msra.mxu0 %v4164
        %4254 = vmatpush.msra.mxu0 %v4160
        %4255 = vmatpush.msra.mxu0 %v4156
        %4256 = vmatpush.msra.mxu0 %v4152
        %4257 = vmatpush.msra.mxu0 %v4148
        %4258 = vmatpush.msra.mxu0 %v4144
        %4259 = vmatpush.msra.mxu0 %v4140
        %4260 = vmatmul.f32.gmra.mxu0 %v4202
        %v4261 = vpop.f32.mrf.mxu0
        %v4262 = vadd.f32 0.0, %v4261
        %4263 = vdwg.mxu0
        %4264 = vmatpush.msra.mxu0 %v4201
        %4265 = vmatpush.msra.mxu0 %v4197
        %4266 = vmatpush.msra.mxu0 %v4193
        %4267 = vmatpush.msra.mxu0 %v4189
        %4268 = vmatpush.msra.mxu0 %v4185
        %4269 = vmatpush.msra.mxu0 %v4181
        %4270 = vmatpush.msra.mxu0 %v4177
        %4271 = vmatpush.msra.mxu0 %v4173
        %4272 = vmatpush.msra.mxu0 %v4169
        %4273 = vmatpush.msra.mxu0 %v4165
        %4274 = vmatpush.msra.mxu0 %v4161
        %4275 = vmatpush.msra.mxu0 %v4157
        %4276 = vmatpush.msra.mxu0 %v4153
        %4277 = vmatpush.msra.mxu0 %v4149
        %4278 = vmatpush.msra.mxu0 %v4145
        %4279 = vmatpush.msra.mxu0 %v4141
        %4280 = vmatmul.f32.gmra.mxu0 %v4202
        %v4281 = vpop.f32.mrf.mxu0
        %v4282 = vadd.f32 0.0, %v4281
        %4283 = vdwg.mxu0
        %v4288 = vrot.slane %v4242, 7
        %v4289 = vrot.slane %v4262, 6
        %v4290 = vrot.slane %v4282, 5
        %v4291 = vsel %vm3811, %v4222, %v4288
        %v4292 = vsel %vm531, %v4289, %v4290
        %v4293 = vsel %vm3814, %v4291, %v4292
        %v4295 = vadd.f32 %v4136, %v4293
        %v4296 = vmax.f32 %v4295, 0.0
        %v4297 = vld [vmem:[#allocation14] sm:$0xff]
        %v4298 = vld [vmem:[#allocation14 + $0x8] sm:$0xff]
        %v4299 = vld [vmem:[#allocation14 + $0x10] sm:$0xff]
        %v4300 = vld [vmem:[#allocation14 + $0x18] sm:$0xff]
        %v4301 = vld [vmem:[#allocation14 + $0x20] sm:$0xff]
        %v4302 = vld [vmem:[#allocation14 + $0x28] sm:$0xff]
        %v4303 = vld [vmem:[#allocation14 + $0x30] sm:$0xff]
        %v4304 = vld [vmem:[#allocation14 + $0x38] sm:$0xff]
        %v4305 = vld [vmem:[#allocation14 + $0x40] sm:$0xff]
        %v4306 = vld [vmem:[#allocation14 + $0x48] sm:$0xff]
        %v4307 = vld [vmem:[#allocation14 + $0x50] sm:$0xff]
        %v4308 = vld [vmem:[#allocation14 + $0x58] sm:$0xff]
        %v4309 = vld [vmem:[#allocation14 + $0x60] sm:$0xff]
        %v4310 = vld [vmem:[#allocation14 + $0x68] sm:$0xff]
        %v4311 = vld [vmem:[#allocation14 + $0x70] sm:$0xff]
        %v4312 = vld [vmem:[#allocation14 + $0x78] sm:$0xff]
        %v4313 = vld [vmem:[#allocation14 + $0x80] sm:$0xff]
        %v4314 = vld [vmem:[#allocation14 + $0x88] sm:$0xff]
        %v4315 = vld [vmem:[#allocation14 + $0x90] sm:$0xff]
        %v4316 = vld [vmem:[#allocation14 + $0x98] sm:$0xff]
        %v4317 = vld [vmem:[#allocation14 + $0xa0] sm:$0xff]
        %v4318 = vld [vmem:[#allocation14 + $0xa8] sm:$0xff]
        %v4319 = vld [vmem:[#allocation14 + $0xb0] sm:$0xff]
        %v4320 = vld [vmem:[#allocation14 + $0xb8] sm:$0xff]
        %v4321 = vld [vmem:[#allocation14 + $0xc0] sm:$0xff]
        %v4322 = vld [vmem:[#allocation14 + $0xc8] sm:$0xff]
        %v4323 = vld [vmem:[#allocation14 + $0xd0] sm:$0xff]
        %v4324 = vld [vmem:[#allocation14 + $0xd8] sm:$0xff]
        %v4325 = vld [vmem:[#allocation14 + $0xe0] sm:$0xff]
        %v4326 = vld [vmem:[#allocation14 + $0xe8] sm:$0xff]
        %v4327 = vld [vmem:[#allocation14 + $0xf0] sm:$0xff]
        %v4328 = vld [vmem:[#allocation14 + $0xf8] sm:$0xff]
        %v4329 = vld [vmem:[#allocation14 + $0x100] sm:$0xff]
        %v4330 = vld [vmem:[#allocation14 + $0x108] sm:$0xff]
        %v4331 = vld [vmem:[#allocation14 + $0x110] sm:$0xff]
        %v4332 = vld [vmem:[#allocation14 + $0x118] sm:$0xff]
        %v4333 = vld [vmem:[#allocation14 + $0x120] sm:$0xff]
        %v4334 = vld [vmem:[#allocation14 + $0x128] sm:$0xff]
        %v4335 = vld [vmem:[#allocation14 + $0x130] sm:$0xff]
        %v4336 = vld [vmem:[#allocation14 + $0x138] sm:$0xff]
        %v4337 = vld [vmem:[#allocation14 + $0x140] sm:$0xff]
        %v4338 = vld [vmem:[#allocation14 + $0x148] sm:$0xff]
        %v4339 = vld [vmem:[#allocation14 + $0x150] sm:$0xff]
        %v4340 = vld [vmem:[#allocation14 + $0x158] sm:$0xff]
        %v4341 = vld [vmem:[#allocation14 + $0x160] sm:$0xff]
        %v4342 = vld [vmem:[#allocation14 + $0x168] sm:$0xff]
        %v4343 = vld [vmem:[#allocation14 + $0x170] sm:$0xff]
        %v4344 = vld [vmem:[#allocation14 + $0x178] sm:$0xff]
        %v4345 = vld [vmem:[#allocation14 + $0x180] sm:$0xff]
        %v4346 = vld [vmem:[#allocation14 + $0x188] sm:$0xff]
        %v4347 = vld [vmem:[#allocation14 + $0x190] sm:$0xff]
        %v4348 = vld [vmem:[#allocation14 + $0x198] sm:$0xff]
        %v4349 = vld [vmem:[#allocation14 + $0x1a0] sm:$0xff]
        %v4350 = vld [vmem:[#allocation14 + $0x1a8] sm:$0xff]
        %v4351 = vld [vmem:[#allocation14 + $0x1b0] sm:$0xff]
        %v4352 = vld [vmem:[#allocation14 + $0x1b8] sm:$0xff]
        %v4353 = vld [vmem:[#allocation14 + $0x1c0] sm:$0xff]
        %v4354 = vld [vmem:[#allocation14 + $0x1c8] sm:$0xff]
        %v4355 = vld [vmem:[#allocation14 + $0x1d0] sm:$0xff]
        %v4356 = vld [vmem:[#allocation14 + $0x1d8] sm:$0xff]
        %v4357 = vld [vmem:[#allocation14 + $0x1e0] sm:$0xff]
        %v4358 = vld [vmem:[#allocation14 + $0x1e8] sm:$0xff]
        %v4359 = vld [vmem:[#allocation14 + $0x1f0] sm:$0xff]
        %v4360 = vld [vmem:[#allocation14 + $0x1f8] sm:$0xff]
        %v4361 = vld [vmem:[#allocation16] sm:$0x1]
        %v4363 = vperm.slane %v4296, 0
        %v4364 = vperm.slane %v4296, 1
        %v4365 = vperm.slane %v4296, 2
        %v4366 = vperm.slane %v4296, 3
        %4371 = vmatpush.msra.mxu0 %v4312
        %4372 = vmatpush.msra.mxu0 %v4311
        %4373 = vmatpush.msra.mxu0 %v4310
        %4374 = vmatpush.msra.mxu0 %v4309
        %4375 = vmatpush.msra.mxu0 %v4308
        %4376 = vmatpush.msra.mxu0 %v4307
        %4377 = vmatpush.msra.mxu0 %v4306
        %4378 = vmatpush.msra.mxu0 %v4305
        %4379 = vmatpush.msra.mxu0 %v4304
        %4380 = vmatpush.msra.mxu0 %v4303
        %4381 = vmatpush.msra.mxu0 %v4302
        %4382 = vmatpush.msra.mxu0 %v4301
        %4383 = vmatpush.msra.mxu0 %v4300
        %4384 = vmatpush.msra.mxu0 %v4299
        %4385 = vmatpush.msra.mxu0 %v4298
        %4386 = vmatpush.msra.mxu0 %v4297
        %4387 = vmatmul.f32.gmra.mxu0 %v4363
        %v4388 = vpop.f32.mrf.mxu0
        %v4389 = vadd.f32 %v4361, %v4388
        %4390 = vdwg.mxu0
        %4391 = vmatpush.msra.mxu0 %v4328
        %4392 = vmatpush.msra.mxu0 %v4327
        %4393 = vmatpush.msra.mxu0 %v4326
        %4394 = vmatpush.msra.mxu0 %v4325
        %4395 = vmatpush.msra.mxu0 %v4324
        %4396 = vmatpush.msra.mxu0 %v4323
        %4397 = vmatpush.msra.mxu0 %v4322
        %4398 = vmatpush.msra.mxu0 %v4321
        %4399 = vmatpush.msra.mxu0 %v4320
        %4400 = vmatpush.msra.mxu0 %v4319
        %4401 = vmatpush.msra.mxu0 %v4318
        %4402 = vmatpush.msra.mxu0 %v4317
        %4403 = vmatpush.msra.mxu0 %v4316
        %4404 = vmatpush.msra.mxu0 %v4315
        %4405 = vmatpush.msra.mxu0 %v4314
        %4406 = vmatpush.msra.mxu0 %v4313
        %4407 = vmatmul.f32.gmra.mxu0 %v4364
        %v4408 = vpop.f32.mrf.mxu0
        %v4409 = vadd.f32 %v4389, %v4408
        %4410 = vdwg.mxu0
        %4411 = vmatpush.msra.mxu0 %v4344
        %4412 = vmatpush.msra.mxu0 %v4343
        %4413 = vmatpush.msra.mxu0 %v4342
        %4414 = vmatpush.msra.mxu0 %v4341
        %4415 = vmatpush.msra.mxu0 %v4340
        %4416 = vmatpush.msra.mxu0 %v4339
        %4417 = vmatpush.msra.mxu0 %v4338
        %4418 = vmatpush.msra.mxu0 %v4337
        %4419 = vmatpush.msra.mxu0 %v4336
        %4420 = vmatpush.msra.mxu0 %v4335
        %4421 = vmatpush.msra.mxu0 %v4334
        %4422 = vmatpush.msra.mxu0 %v4333
        %4423 = vmatpush.msra.mxu0 %v4332
        %4424 = vmatpush.msra.mxu0 %v4331
        %4425 = vmatpush.msra.mxu0 %v4330
        %4426 = vmatpush.msra.mxu0 %v4329
        %4427 = vmatmul.f32.gmra.mxu0 %v4365
        %v4428 = vpop.f32.mrf.mxu0
        %v4429 = vadd.f32 %v4409, %v4428
        %4430 = vdwg.mxu0
        %4431 = vmatpush.msra.mxu0 %v4360
        %4432 = vmatpush.msra.mxu0 %v4359
        %4433 = vmatpush.msra.mxu0 %v4358
        %4434 = vmatpush.msra.mxu0 %v4357
        %4435 = vmatpush.msra.mxu0 %v4356
        %4436 = vmatpush.msra.mxu0 %v4355
        %4437 = vmatpush.msra.mxu0 %v4354
        %4438 = vmatpush.msra.mxu0 %v4353
        %4439 = vmatpush.msra.mxu0 %v4352
        %4440 = vmatpush.msra.mxu0 %v4351
        %4441 = vmatpush.msra.mxu0 %v4350
        %4442 = vmatpush.msra.mxu0 %v4349
        %4443 = vmatpush.msra.mxu0 %v4348
        %4444 = vmatpush.msra.mxu0 %v4347
        %4445 = vmatpush.msra.mxu0 %v4346
        %4446 = vmatpush.msra.mxu0 %v4345
        %4447 = vmatmul.f32.gmra.mxu0 %v4366
        %v4448 = vpop.f32.mrf.mxu0
        %v4449 = vadd.f32 %v4429, %v4448
        %4450 = vdwg.mxu0
        %4451 = vst [vmem:[%s475] sm:$0x1] %v4449
        %s4452 = sand.u32 %s232, 1
        %s4453 = scalar_lea.sflag [#allocation4], %s4452
        %s4454 = sand.u32 %s232, 1
        %s4455 = scalar_lea.vmem [#allocation17], %s4454
        // Predicated region
        $region93: #{mnist_cnn_forward.1} parent=55 // pred_check
          %p4456 = pneg %p242
        $region94: #{mnist_cnn_forward.1} parent=55 // pred_check_branch
          %4458 = sbr.rel (%p4456) target = $region96
        $region95: #{mnist_cnn_forward.1} parent=55 // pred_region
          %4460 = vsyncadd %s4453, 0
          %s4461 = scalar_lea.hbm %s9, %s30
          %s4463 = sshll.u32 %s4455, 4
          %s4464 = int_to_ptr.vmem [resolvable:$true] %s4463
          %s4465 = sshll.u32 %s4461, 4
          %s4466 = int_to_ptr.hbm [resolvable:$true] %s4465
          %4468 = dma.vmem_to_hbm [thread:$0]  %s4464, 16, %s4466, %s4453
        $region96: #{mnist_cnn_forward.1} parent=55 // pred_fallthru
          _
      $region56: #{mnist_cnn_forward.1} parent=5 // pred_fallthru
        _
      %p4469 = scmp.le.s32.totalorder 2, %s25
      // Predicated region
      $region97: #{mnist_cnn_forward.1} parent=5 // pred_check
        %p4470 = pneg %p4469
      $region98: #{mnist_cnn_forward.1} parent=5 // pred_check_branch
        %4472 = sbr.rel (%p4470) target = $region100
      $region99: #{mnist_cnn_forward.1} parent=5 // pred_region
        %s4473 = ssub.s32 %s25, 2
        // Predicated region
        $region101: #{mnist_cnn_forward.1} parent=99 // pred_check
          %p4474 = pneg %p248
        $region102: #{mnist_cnn_forward.1} parent=99 // pred_check_branch
          %4476 = sbr.rel (%p4474) target = $region104
        $region103: #{mnist_cnn_forward.1} parent=99 // pred_region
          %s4477 = sand.u32 %s233, 1
          %s4478 = scalar_lea.sflag [#allocation4], %s4477
          %s4479 = sand.u32 %s233, 1
          %s4480 = scalar_lea.vmem [#allocation17], %s4479
          %4482 = dma.done %s4478, 16
        $region104: #{mnist_cnn_forward.1} parent=99 // pred_fallthru
          _
      $region100: #{mnist_cnn_forward.1} parent=5 // pred_fallthru
        _
    $region6: #{mnist_cnn_forward.1} parent=1 // loop_footer
      %s29 = sadd.s32 1, %s25
    $region7: #{mnist_cnn_forward.1} parent=1 // loop_footer_branch
      %24 = sbr.rel target = $region3
    $region8: #{mnist_cnn_forward.1} parent=1 // loop_exit
      _
    %4483 = vsyncpa [#allocation3], 1
    %s4484 = scalar_lea.sflag [#allocation3], 1
    %4485 = vsyncpa %s4484, 1
    %4486 = vsyncpa [#allocation6], 1
    %4487 = vsyncpa [#allocation9], 1
    %4488 = vsyncpa [#allocation12], 1
    %4489 = vsyncpa [#allocation15], 1
    %4490 = vsyncpa [#allocation4], 1
    %s4491 = scalar_lea.sflag [#allocation4], 1
    %4492 = vsyncpa %s4491, 1

</llo_original>
